<compile_context>
chip_gen: v6e
topology: v6e:2x2x1
jax: 0.10.0
libtpu: 0.0.40
codegen_flags: <defaults>
</compile_context>

<pallas_src>
import jax
import jax.numpy as jnp
from jax.experimental import pallas as pl
from jax.experimental.pallas import tpu as pltpu

EPS = 1e-5
LANE = 128
VMEM_LIMIT = 32 * 1024 * 1024   # safe vs every generation's scoped-VMEM budget
TILE_M = 1024                   # rows per block for the final BN+ReLU pass


def _round_up(x, m):
    return ((x + m - 1) // m) * m


# ----------------------------------------------------------------------------
# Kernel A: 3x3 conv (padding=1) as 3 accumulating MXU dots (K = 3*Cin_p) over a
#           VMEM-halo-padded plane, per-image partial BN stats, bf16 output.
#           Optionally applies the previous layer's BN FMA + ReLU to its input.
# ----------------------------------------------------------------------------
def make_conv_stats_kernel(H, W, cin_p, cout_p, fuse_bn_relu):
    def kernel(*refs):
        if fuse_bn_relu:
            (x_ref, scale_ref, shift_ref, w_ref,
             y_ref, stats_ref, xp_scr, xcat_scr, acc_scr) = refs
        else:
            (x_ref, w_ref,
             y_ref, stats_ref, xp_scr, xcat_scr, acc_scr) = refs

        # ---- prepare the input plane (fused BN-apply + ReLU for layer 2) ----
        x = x_ref[0]                                    # (H, W, cin_p)
        if fuse_bn_relu:
            a = x.astype(jnp.float32) * scale_ref[0] + shift_ref[0]
            a = jnp.maximum(a, 0.0)
        else:
            a = x
        a = a.astype(jnp.bfloat16)

        # ---- zero-halo padding entirely in VMEM (no wrapper-side jnp.pad) ----
        # Full-scratch zero every step: cheap, and correct under megacore
        # grid sharding (each core owns its own scratch).
        xp_scr[...] = jnp.zeros_like(xp_scr)
        xp_scr[pl.ds(1, H), pl.ds(1, W), :] = a

        # ---- build the kw-concatenated LHS slab once: K = 3*cin_p ------------
        # xcat[(p*W + w), kw*cin_p + c] = xp[p, w + kw, c]
        for kw in range(3):
            xcat_scr[:, pl.ds(kw * cin_p, cin_p)] = (
                xp_scr[:, pl.ds(kw, W), :].reshape((H + 2) * W, cin_p))

        # ---- 3 accumulating MXU dots (one per kh), f32 acc in VMEM -----------
        for kh in range(3):
            lhs = xcat_scr[pl.ds(kh * W, H * W), :]          # (H*W, 3*cin_p) bf16
            part = jnp.dot(lhs, w_ref[kh],
                           preferred_element_type=jnp.float32)
            if kh == 0:
                acc_scr[...] = part
            else:
                acc_scr[...] += part

        acc = acc_scr[...]
        # Per-image partial BN statistics from the f32 accumulator.
        # (E[x^2]-E[x]^2 downstream: fine for near-zero-mean conv outputs.)
        s = jnp.sum(acc, axis=0, keepdims=True)              # (1, cout_p)
        sq = jnp.sum(acc * acc, axis=0, keepdims=True)       # (1, cout_p)
        stats_ref[...] = jnp.concatenate([s, sq], axis=0)[None]
        # bf16 un-normalized conv output: halves HBM bytes of the big intermediate.
        y_ref[...] = acc.reshape(1, H, W, cout_p).astype(jnp.bfloat16)

    return kernel


def conv3x3_with_stats(x_nhwc, w3, scale=None, shift=None):
    """x_nhwc: (N, H, W, Cin_p) [f32 or bf16]; w3: (3, 3*Cin_p, Cout_p) bf16.

    If scale/shift (each (1, Cout_p) f32) are given, the previous layer's BN
    FMA + ReLU is applied to x inside the kernel before the convolution.
    """
    N, H, W, cin_p = x_nhwc.shape
    cout_p = w3.shape[-1]
    fuse = scale is not None
    w2p = _round_up(W + 2, 8)   # sublane-aligned padded width (extra cols never read)

    in_specs = [pl.BlockSpec((1, H, W, cin_p), lambda n: (n, 0, 0, 0))]
    operands = [x_nhwc]
    if fuse:
        in_specs += [pl.BlockSpec((1, cout_p), lambda n: (0, 0)),
                     pl.BlockSpec((1, cout_p), lambda n: (0, 0))]
        operands += [scale, shift]
    in_specs += [pl.BlockSpec((3, 3 * cin_p, cout_p), lambda n: (0, 0, 0))]
    operands += [w3]

    y, stats = pl.pallas_call(
        make_conv_stats_kernel(H, W, cin_p, cout_p, fuse),
        out_shape=(
            jax.ShapeDtypeStruct((N, H, W, cout_p), jnp.bfloat16),
            jax.ShapeDtypeStruct((N, 2, cout_p), jnp.float32),
        ),
        grid=(N,),
        in_specs=in_specs,
        out_specs=(
            pl.BlockSpec((1, H, W, cout_p), lambda n: (n, 0, 0, 0)),
            pl.BlockSpec((1, 2, cout_p), lambda n: (n, 0, 0)),
        ),
        scratch_shapes=[
            pltpu.VMEM((H + 2, w2p, cin_p), jnp.bfloat16),      # halo-padded plane
            pltpu.VMEM(((H + 2) * W, 3 * cin_p), jnp.bfloat16),  # kw-concat LHS slab
            pltpu.VMEM((H * W, cout_p), jnp.float32),            # f32 accumulator
        ],
        compiler_params=pltpu.CompilerParams(
            dimension_semantics=("parallel",),
            vmem_limit_bytes=VMEM_LIMIT,
        ),
    )(*operands)
    return y, stats


# ----------------------------------------------------------------------------
# Kernel B: fused BatchNorm-apply (per-channel FMA) + ReLU over lane-dense rows.
# Only needed for the final layer's output (layer-1's copy is fused into kernel A).
# ----------------------------------------------------------------------------
def bn_relu_kernel(y_ref, scale_ref, shift_ref, o_ref):
    o_ref[...] = jnp.maximum(
        y_ref[...].astype(jnp.float32) * scale_ref[...] + shift_ref[...], 0.0)


def bn_relu(y2d, scale, shift):
    M, cp = y2d.shape
    tile_m = M if M <= TILE_M else TILE_M       # full array or 1024-row blocks
    return pl.pallas_call(
        bn_relu_kernel,
        out_shape=jax.ShapeDtypeStruct((M, cp), jnp.float32),
        grid=(pl.cdiv(M, tile_m),),
        in_specs=[
            pl.BlockSpec((tile_m, cp), lambda i: (i, 0)),
            pl.BlockSpec((1, cp), lambda i: (0, 0)),
            pl.BlockSpec((1, cp), lambda i: (0, 0)),
        ],
        out_specs=pl.BlockSpec((tile_m, cp), lambda i: (i, 0)),
        compiler_params=pltpu.CompilerParams(
            dimension_semantics=("parallel",),
            vmem_limit_bytes=VMEM_LIMIT,
        ),
    )(y2d, scale, shift)


def bn_scale_shift(stats, count, gamma_p, beta_p):
    """Tiny plain-JAX reduction of per-image partial stats -> one FMA per channel."""
    s = jnp.sum(stats[:, 0, :], axis=0)
    sq = jnp.sum(stats[:, 1, :], axis=0)
    mean = s / count
    var = jnp.maximum(sq / count - mean * mean, 0.0)   # biased var (training-mode BN)
    scale = gamma_p * jax.lax.rsqrt(var + EPS)
    shift = beta_p - scale * mean
    return scale.reshape(1, -1), shift.reshape(1, -1)


# ----------------------------------------------------------------------------
# Weight / parameter plumbing
# ----------------------------------------------------------------------------
def conv_weight_to_k3(w, cin_p, cout_p):
    """PyTorch conv weight (Cout, Cin, 3, 3) -> (3, 3*Cin_p, Cout_p) bf16.

    K ordering per kh is [kw=0 channels, kw=1 channels, kw=2 channels], matching
    the kernel's kw-concatenated LHS slab.
    """
    co, ci, _, _ = w.shape
    wt = jnp.transpose(w, (2, 3, 1, 0))                                # (3,3,Cin,Cout)
    wt = jnp.pad(wt, ((0, 0), (0, 0), (0, cin_p - ci), (0, cout_p - co)))
    return wt.reshape(3, 3 * cin_p, cout_p).astype(jnp.bfloat16)


class ConvBlockPallas:
    def __init__(self, key, in_channels, out_channels):
        k1, k2 = jax.random.split(key, 2)
        self.cin = in_channels
        self.cout = out_channels
        self.cin_p = _round_up(in_channels, LANE)
        self.cout_p = _round_up(out_channels, LANE)

        # nn.Conv2d default init: uniform(-1/sqrt(fan_in), +1/sqrt(fan_in)).
        # Conv biases are intentionally omitted: training-mode BatchNorm's mean
        # subtraction cancels them exactly, so they never affect the output.
        bound1 = 1.0 / ((in_channels * 9) ** 0.5)
        bound2 = 1.0 / ((out_channels * 9) ** 0.5)
        self.w1 = jax.random.uniform(k1, (out_channels, in_channels, 3, 3),
                                     jnp.float32, -bound1, bound1)
        self.w2 = jax.random.uniform(k2, (out_channels, out_channels, 3, 3),
                                     jnp.float32, -bound2, bound2)
        self.w1_k3 = conv_weight_to_k3(self.w1, self.cin_p, self.cout_p)
        self.w2_k3 = conv_weight_to_k3(self.w2, self.cout_p, self.cout_p)

        # Fresh nn.BatchNorm2d affine params (gamma=1, beta=0); zero-padded channels
        # get gamma=0/beta=0 so padded outputs stay exactly 0 (no NaNs, no leakage).
        self.gamma1_p = jnp.pad(jnp.ones((out_channels,), jnp.float32),
                                (0, self.cout_p - out_channels))
        self.beta1_p = jnp.zeros((self.cout_p,), jnp.float32)
        self.gamma2_p = self.gamma1_p
        self.beta2_p = self.beta1_p

    def __call__(self, x_nchw):
        N, cin, H, W = x_nchw.shape
        assert cin == self.cin
        m_total = N * H * W

        # NCHW -> NHWC once at the boundary; pad channels to a lane-dense multiple
        # of 128 (stays padded NHWC through the whole block; bf16 cast is in-kernel).
        x = jnp.transpose(x_nchw, (0, 2, 3, 1))
        x = jnp.pad(x, ((0, 0), (0, 0), (0, 0), (0, self.cin_p - cin)))

        # Layer 1: conv + per-image partial stats (bf16 y1).
        y1, st1 = conv3x3_with_stats(x, self.w1_k3)
        scale1, shift1 = bn_scale_shift(st1, m_total, self.gamma1_p, self.beta1_p)

        # Layer 2: BN1-apply + ReLU fused into the conv kernel (no a1 HBM round trip).
        y2, st2 = conv3x3_with_stats(y1, self.w2_k3, scale1, shift1)
        scale2, shift2 = bn_scale_shift(st2, m_total, self.gamma2_p, self.beta2_p)

        # Final BN-apply + ReLU (module output, f32).
        a2 = bn_relu(y2.reshape(m_total, self.cout_p), scale2, shift2)
        a2 = a2.reshape(N, H, W, self.cout_p)[..., :self.cout]
        return jnp.transpose(a2, (0, 3, 1, 2))


# ----------------------------------------------------------------------------
# Plain-JAX reference (f32) for a numerical sanity check.
# ----------------------------------------------------------------------------
def _reference_forward(x_nchw, w1, w2):
    def conv(x, w):
        return jax.lax.conv_general_dilated(
            x, w, window_strides=(1, 1), padding=((1, 1), (1, 1)),
            dimension_numbers=("NCHW", "OIHW", "NCHW"))

    def bnr(y):
        mean = jnp.mean(y, axis=(0, 2, 3), keepdims=True)
        var = jnp.mean((y - mean) ** 2, axis=(0, 2, 3), keepdims=True)
        return jnp.maximum((y - mean) * jax.lax.rsqrt(var + EPS), 0.0)

    return bnr(conv(bnr(conv(x_nchw, w1)), w2))


if __name__ == "__main__":
    key = jax.random.PRNGKey(0)
    kx, kp = jax.random.split(key)

    N, Cin, Cout, H, W = 2, 4, 8, 16, 16
    x = jax.random.normal(kx, (N, Cin, H, W), dtype=jnp.float32)

    block = ConvBlockPallas(kp, Cin, Cout)
    out = block(x)
    jax.block_until_ready(out)

    assert out.shape == (N, Cout, H, W)
    assert bool(jnp.all(jnp.isfinite(out)))
    assert bool(jnp.all(out >= 0.0))  # ReLU output sanity check

    # Loose tolerance: the Pallas path uses bf16 MXU inputs and bf16 intermediates
    # with f32 accumulation and f32 BN statistics.
    ref = _reference_forward(x, block.w1, block.w2)
    max_err = float(jnp.max(jnp.abs(out - ref)))
    assert max_err < 0.1, f"max abs error vs f32 reference too large: {max_err}"

    print("KERNEL_OK")
</pallas_src>

<mosaic_0001>
module attributes {stable_mosaic.version = 11 : i64} {
  func.func @kernel(%arg0: i32, %arg1: memref<1x16x16x128xf32, #tpu.memory_space<vmem>>, %arg2: memref<3x384x128xbf16, #tpu.memory_space<vmem>>, %arg3: memref<1x16x16x128xbf16, #tpu.memory_space<vmem>>, %arg4: memref<1x2x128xf32, #tpu.memory_space<vmem>>, %arg5: memref<18x24x128xbf16, #tpu.memory_space<vmem>>, %arg6: memref<288x384xbf16, #tpu.memory_space<vmem>>, %arg7: memref<256x128xf32, #tpu.memory_space<vmem>>) attributes {dimension_semantics = [#tpu.dimension_semantics<parallel>], iteration_bounds = array<i64: 2>, scalar_prefetch = 0 : i64, scratch_operands = 3 : i64, tpu.core_type = #tpu.core_type<tc>, window_params = [{transform_indices = @transform_0, window_bounds = array<i64: 1, 16, 16, 128>}, {pipeline_mode = #tpu.pipeline_mode<synchronous>, transform_indices = @transform_1, window_bounds = array<i64: 3, 384, 128>}, {transform_indices = @transform_2, window_bounds = array<i64: 1, 16, 16, 128>}, {transform_indices = @transform_3, window_bounds = array<i64: 1, 2, 128>}]} {
    %c0 = arith.constant 0 : index
    %c0_0 = arith.constant 0 : index
    %c0_1 = arith.constant 0 : index
    %c0_2 = arith.constant 0 : index
    %0 = vector.load %arg1[%c0, %c0_0, %c0_1, %c0_2] : memref<1x16x16x128xf32, #tpu.memory_space<vmem>>, vector<1x16x16x128xf32>
    %1 = vector.shape_cast %0 : vector<1x16x16x128xf32> to vector<16x16x128xf32>
    %2 = arith.truncf %1 : vector<16x16x128xf32> to vector<16x16x128xbf16>
    %cst = arith.constant 0.000000e+00 : bf16
    %3 = vector.broadcast %cst : bf16 to vector<18x24x128xbf16>
    %c0_3 = arith.constant 0 : index
    %c0_4 = arith.constant 0 : index
    %c0_5 = arith.constant 0 : index
    %4 = vector.load %arg5[%c0_3, %c0_4, %c0_5] : memref<18x24x128xbf16, #tpu.memory_space<vmem>>, vector<18x24x128xbf16>
    tpu.vector_store %arg5[%c0_3, %c0_4, %c0_5], %3 {strides = array<i32>} : memref<18x24x128xbf16, #tpu.memory_space<vmem>>, vector<18x24x128xbf16>,
    %c1 = arith.constant 1 : index
    %c1_6 = arith.constant 1 : index
    %c0_7 = arith.constant 0 : index
    %5 = vector.load %arg5[%c1, %c1_6, %c0_7] : memref<18x24x128xbf16, #tpu.memory_space<vmem>>, vector<16x16x128xbf16>
    tpu.vector_store %arg5[%c1, %c1_6, %c0_7], %2 {strides = array<i32>} : memref<18x24x128xbf16, #tpu.memory_space<vmem>>, vector<16x16x128xbf16>,
    %c0_8 = arith.constant 0 : index
    %c0_9 = arith.constant 0 : index
    %c0_10 = arith.constant 0 : index
    %6 = vector.load %arg5[%c0_8, %c0_9, %c0_10] : memref<18x24x128xbf16, #tpu.memory_space<vmem>>, vector<18x16x128xbf16>
    %7 = vector.shape_cast %6 : vector<18x16x128xbf16> to vector<288x128xbf16>
    %c0_11 = arith.constant 0 : index
    %c0_12 = arith.constant 0 : index
    %8 = vector.load %arg6[%c0_11, %c0_12] : memref<288x384xbf16, #tpu.memory_space<vmem>>, vector<288x128xbf16>
    tpu.vector_store %arg6[%c0_11, %c0_12], %7 {strides = array<i32>} : memref<288x384xbf16, #tpu.memory_space<vmem>>, vector<288x128xbf16>,
    %c0_13 = arith.constant 0 : index
    %c1_14 = arith.constant 1 : index
    %c0_15 = arith.constant 0 : index
    %9 = vector.load %arg5[%c0_13, %c1_14, %c0_15] : memref<18x24x128xbf16, #tpu.memory_space<vmem>>, vector<18x16x128xbf16>
    %10 = vector.shape_cast %9 : vector<18x16x128xbf16> to vector<288x128xbf16>
    %c0_16 = arith.constant 0 : index
    %c128 = arith.constant 128 : index
    %11 = vector.load %arg6[%c0_16, %c128] : memref<288x384xbf16, #tpu.memory_space<vmem>>, vector<288x128xbf16>
    tpu.vector_store %arg6[%c0_16, %c128], %10 {strides = array<i32>} : memref<288x384xbf16, #tpu.memory_space<vmem>>, vector<288x128xbf16>,
    %c0_17 = arith.constant 0 : index
    %c2 = arith.constant 2 : index
    %c0_18 = arith.constant 0 : index
    %12 = vector.load %arg5[%c0_17, %c2, %c0_18] : memref<18x24x128xbf16, #tpu.memory_space<vmem>>, vector<18x16x128xbf16>
    %13 = vector.shape_cast %12 : vector<18x16x128xbf16> to vector<288x128xbf16>
    %c0_19 = arith.constant 0 : index
    %c256 = arith.constant 256 : index
    %14 = vector.load %arg6[%c0_19, %c256] : memref<288x384xbf16, #tpu.memory_space<vmem>>, vector<288x128xbf16>
    tpu.vector_store %arg6[%c0_19, %c256], %13 {strides = array<i32>} : memref<288x384xbf16, #tpu.memory_space<vmem>>, vector<288x128xbf16>,
    %c0_20 = arith.constant 0 : index
    %c0_21 = arith.constant 0 : index
    %15 = vector.load %arg6[%c0_20, %c0_21] : memref<288x384xbf16, #tpu.memory_space<vmem>>, vector<256x384xbf16>
    %c0_22 = arith.constant 0 : index
    %c0_23 = arith.constant 0 : index
    %c0_24 = arith.constant 0 : index
    %16 = vector.load %arg2[%c0_22, %c0_23, %c0_24] : memref<3x384x128xbf16, #tpu.memory_space<vmem>>, vector<1x384x128xbf16>
    %17 = vector.shape_cast %16 : vector<1x384x128xbf16> to vector<384x128xbf16>
    %cst_25 = arith.constant dense<0.000000e+00> : vector<256x128xf32>
    %18 = tpu.matmul %15, %17, %cst_25 {dimension_numbers = #tpu.dot_dimension_numbers<[1], [0], [0], [1], [0, 0, 1, 1], [], []>} : vector<256x384xbf16>, vector<384x128xbf16>, vector<256x128xf32> -> vector<256x128xf32>
    %c0_26 = arith.constant 0 : index
    %c0_27 = arith.constant 0 : index
    %19 = vector.load %arg7[%c0_26, %c0_27] : memref<256x128xf32, #tpu.memory_space<vmem>>, vector<256x128xf32>
    tpu.vector_store %arg7[%c0_26, %c0_27], %18 {strides = array<i32>} : memref<256x128xf32, #tpu.memory_space<vmem>>, vector<256x128xf32>,
    %c16 = arith.constant 16 : index
    %c0_28 = arith.constant 0 : index
    %20 = vector.load %arg6[%c16, %c0_28] : memref<288x384xbf16, #tpu.memory_space<vmem>>, vector<256x384xbf16>
    %c1_29 = arith.constant 1 : index
    %c0_30 = arith.constant 0 : index
    %c0_31 = arith.constant 0 : index
    %21 = vector.load %arg2[%c1_29, %c0_30, %c0_31] : memref<3x384x128xbf16, #tpu.memory_space<vmem>>, vector<1x384x128xbf16>
    %22 = vector.shape_cast %21 : vector<1x384x128xbf16> to vector<384x128xbf16>
    %cst_32 = arith.constant dense<0.000000e+00> : vector<256x128xf32>
    %23 = tpu.matmul %20, %22, %cst_32 {dimension_numbers = #tpu.dot_dimension_numbers<[1], [0], [0], [1], [0, 0, 1, 1], [], []>} : vector<256x384xbf16>, vector<384x128xbf16>, vector<256x128xf32> -> vector<256x128xf32>
    %c0_33 = arith.constant 0 : index
    %c0_34 = arith.constant 0 : index
    %24 = vector.load %arg7[%c0_33, %c0_34] : memref<256x128xf32, #tpu.memory_space<vmem>>, vector<256x128xf32>
    %25 = arith.addf %24, %23 : vector<256x128xf32>
    %c0_35 = arith.constant 0 : index
    %c0_36 = arith.constant 0 : index
    %26 = vector.load %arg7[%c0_35, %c0_36] : memref<256x128xf32, #tpu.memory_space<vmem>>, vector<256x128xf32>
    tpu.vector_store %arg7[%c0_35, %c0_36], %25 {strides = array<i32>} : memref<256x128xf32, #tpu.memory_space<vmem>>, vector<256x128xf32>,
    %c32 = arith.constant 32 : index
    %c0_37 = arith.constant 0 : index
    %27 = vector.load %arg6[%c32, %c0_37] : memref<288x384xbf16, #tpu.memory_space<vmem>>, vector<256x384xbf16>
    %c2_38 = arith.constant 2 : index
    %c0_39 = arith.constant 0 : index
    %c0_40 = arith.constant 0 : index
    %28 = vector.load %arg2[%c2_38, %c0_39, %c0_40] : memref<3x384x128xbf16, #tpu.memory_space<vmem>>, vector<1x384x128xbf16>
    %29 = vector.shape_cast %28 : vector<1x384x128xbf16> to vector<384x128xbf16>
    %cst_41 = arith.constant dense<0.000000e+00> : vector<256x128xf32>
    %30 = tpu.matmul %27, %29, %cst_41 {dimension_numbers = #tpu.dot_dimension_numbers<[1], [0], [0], [1], [0, 0, 1, 1], [], []>} : vector<256x384xbf16>, vector<384x128xbf16>, vector<256x128xf32> -> vector<256x128xf32>
    %c0_42 = arith.constant 0 : index
    %c0_43 = arith.constant 0 : index
    %31 = vector.load %arg7[%c0_42, %c0_43] : memref<256x128xf32, #tpu.memory_space<vmem>>, vector<256x128xf32>
    %32 = arith.addf %31, %30 : vector<256x128xf32>
    %c0_44 = arith.constant 0 : index
    %c0_45 = arith.constant 0 : index
    %33 = vector.load %arg7[%c0_44, %c0_45] : memref<256x128xf32, #tpu.memory_space<vmem>>, vector<256x128xf32>
    tpu.vector_store %arg7[%c0_44, %c0_45], %32 {strides = array<i32>} : memref<256x128xf32, #tpu.memory_space<vmem>>, vector<256x128xf32>,
    %c0_46 = arith.constant 0 : index
    %c0_47 = arith.constant 0 : index
    %34 = vector.load %arg7[%c0_46, %c0_47] : memref<256x128xf32, #tpu.memory_space<vmem>>, vector<256x128xf32>
    %cst_48 = arith.constant dense<0.000000e+00> : vector<128xf32>
    %35 = vector.multi_reduction <add>, %34, %cst_48 [0] : vector<256x128xf32> to vector<128xf32>
    %36 = vector.shape_cast %35 : vector<128xf32> to vector<1x128xf32>
    %37 = arith.mulf %34, %34 : vector<256x128xf32>
    %cst_49 = arith.constant dense<0.000000e+00> : vector<128xf32>
    %38 = vector.multi_reduction <add>, %37, %cst_49 [0] : vector<256x128xf32> to vector<128xf32>
    %39 = vector.shape_cast %38 : vector<128xf32> to vector<1x128xf32>
    %40 = tpu.concatenate %36, %39 in 0 : vector<1x128xf32>, vector<1x128xf32> -> vector<2x128xf32>
    %41 = vector.shape_cast %40 : vector<2x128xf32> to vector<1x2x128xf32>
    %c0_50 = arith.constant 0 : index
    %c0_51 = arith.constant 0 : index
    %c0_52 = arith.constant 0 : index
    %42 = vector.load %arg4[%c0_50, %c0_51, %c0_52] : memref<1x2x128xf32, #tpu.memory_space<vmem>>, vector<1x2x128xf32>
    tpu.vector_store %arg4[%c0_50, %c0_51, %c0_52], %41 {strides = array<i32>} : memref<1x2x128xf32, #tpu.memory_space<vmem>>, vector<1x2x128xf32>,
    %43 = vector.shape_cast %34 : vector<256x128xf32> to vector<1x16x16x128xf32>
    %44 = arith.truncf %43 : vector<1x16x16x128xf32> to vector<1x16x16x128xbf16>
    %c0_53 = arith.constant 0 : index
    %c0_54 = arith.constant 0 : index
    %c0_55 = arith.constant 0 : index
    %c0_56 = arith.constant 0 : index
    %45 = vector.load %arg3[%c0_53, %c0_54, %c0_55, %c0_56] : memref<1x16x16x128xbf16, #tpu.memory_space<vmem>>, vector<1x16x16x128xbf16>
    tpu.vector_store %arg3[%c0_53, %c0_54, %c0_55, %c0_56], %44 {strides = array<i32>} : memref<1x16x16x128xbf16, #tpu.memory_space<vmem>>, vector<1x16x16x128xbf16>,
    return
  }
  func.func @transform_0(%arg0: i32) -> (i32, i32, i32, i32) {
    %c0_i32 = arith.constant 0 : i32
    %c0_i32_0 = arith.constant 0 : i32
    %c0_i32_1 = arith.constant 0 : i32
    %c0_i32_2 = arith.constant 0 : i32
    return %arg0, %c0_i32, %c0_i32_0, %c0_i32_1 : i32, i32, i32, i32
  }
  func.func @transform_1(%arg0: i32) -> (i32, i32, i32) {
    %c0_i32 = arith.constant 0 : i32
    %c0_i32_0 = arith.constant 0 : i32
    %c0_i32_1 = arith.constant 0 : i32
    %c0_i32_2 = arith.constant 0 : i32
    return %c0_i32, %c0_i32_0, %c0_i32_1 : i32, i32, i32
  }
  func.func @transform_2(%arg0: i32) -> (i32, i32, i32, i32) {
    %c0_i32 = arith.constant 0 : i32
    %c0_i32_0 = arith.constant 0 : i32
    %c0_i32_1 = arith.constant 0 : i32
    %c0_i32_2 = arith.constant 0 : i32
    return %arg0, %c0_i32, %c0_i32_0, %c0_i32_1 : i32, i32, i32, i32
  }
  func.func @transform_3(%arg0: i32) -> (i32, i32, i32) {
    %c0_i32 = arith.constant 0 : i32
    %c0_i32_0 = arith.constant 0 : i32
    %c0_i32_1 = arith.constant 0 : i32
    return %arg0, %c0_i32, %c0_i32_0 : i32, i32, i32
  }
}

</mosaic_0001>

<llo_original>
// kernel: tpu_custom_call.1
$region0: #{tpu_custom_call.1}
  #allocation0 [shape = 'u32[]', space=smem, size = 0x4, offset = 0x4, fixed_abs, tag = 'smem constant byte address 0x4 - core index']
  #allocation1 [shape = 'u32[144,128]{1,0:T(1,128)}', space=vmem, size = 0x12000, scoped, tag = 'internal scratch']
  #allocation2 [shape = 'bf16[18,24,128]{2,1,0:T(8,128)(2,1)}', space=vmem, size = 0x1b000, scoped, tag = 'scratch operand']
  #allocation3 [shape = 'bf16[288,384]{1,0:T(8,128)(2,1)}', space=vmem, size = 0x36000, scoped, tag = 'scratch operand']
  #allocation4 [shape = 'f32[256,128]{1,0:T(8,128)}', space=vmem, size = 0x20000, scoped, tag = 'scratch operand']
  %s0 = inlined_call_operand.hbm [shape: f32[2,16,16,128], index: 0, kind: input, shape index: {}]
  %s1 = inlined_call_operand.hbm [shape: bf16[3,384,128], index: 1, kind: input, shape index: {}]
  %s2 = inlined_call_operand.hbm [shape: bf16[2,16,16,128], index: 2, kind: output, shape index: {0}]
  %s3 = inlined_call_operand.hbm [shape: f32[2,2,128], index: 3, kind: output, shape index: {1}]
  %4 = xla_tuple %s2, %s3
  %s5 = sld [smem:[#allocation0]]
  $region57: #{tpu_custom_call.1} parent=0
    _
  %s7 = ssub.s32 1, %s5
  %s8 = scalar_select 0, %s7, %s5
  $region1: #{tpu_custom_call.1} parent=0
    #allocation5 [shape = 'u8[262144]{0}', space=vmem, size = 0x40000, scoped, tag = 'input window, operand 0']
    #allocation6 [shape = 's32[2]{0}', space=sflag, size = 0x8, scoped, tag = 'scoped memory for tpu_custom_call.1']
    #allocation7 [shape = 's32[2]{0}', space=sflag, size = 0x8, scoped, tag = 'scoped memory for tpu_custom_call.1']
    #allocation8 [shape = 'u8[294912]{0}', space=vmem, size = 0x48000, scoped, tag = 'input window, operand 1, single buffered']
    #allocation9 [shape = 's32[1]{0}', space=sflag, size = 0x4, scoped, tag = 'scoped memory for tpu_custom_call.1']
    #allocation10 [shape = 'u8[131072]{0}', space=vmem, size = 0x20000, scoped, tag = 'output window, operand 0']
    #allocation11 [shape = 'u8[2048]{0}', space=vmem, size = 0x800, scoped, tag = 'output window, operand 1']
    #allocation12 [shape = 's32[2]{0}', space=sflag, size = 0x8, scoped, tag = 'scoped memory for tpu_custom_call.1']
    %9 = vsyncpa [#allocation6], 0
    %s10 = scalar_lea.sflag [#allocation6], 1
    %11 = vsyncpa %s10, 0
    %12 = vsyncpa [#allocation9], 0
    %13 = vsyncpa [#allocation7], 0
    %s14 = scalar_lea.sflag [#allocation7], 1
    %15 = vsyncpa %s14, 0
    %16 = vsyncpa [#allocation12], 0
    %s17 = scalar_lea.sflag [#allocation12], 1
    %18 = vsyncpa %s17, 0
    loop: start=0, step=1, limit=4
    $region2: #{tpu_custom_call.1} parent=1 // loop_pre_header
      _
    $region3: #{tpu_custom_call.1} parent=1 // loop_header
      %s20 = sphi 0, %s24
      %p21 = scmp.ge.s32.totalorder %s20, 4
      %s30 = sphi 0, %s32
      %s33 = sphi 0, %s30
      %s34 = sphi 0, %s33
      %s50 = sphi 0, %s34
      %s54 = sphi 0, %s54
      %s56 = sphi 0, %s54
      %s57 = sphi 0, %s56
      %s71 = sphi 0, %s57
      %s77 = sphi 0, %s79
      %s80 = sphi 0, %s77
      %s81 = sphi 0, %s80
      %s97 = sphi 0, %s81
      %s103 = sphi 0, %s105
      %s106 = sphi 0, %s103
      %s107 = sphi 0, %s106
      %s123 = sphi 0, %s107
    $region4: #{tpu_custom_call.1} parent=1 // loop_header_branch
      %23 = sbr.rel (%p21) target = $region8
    $region5: #{tpu_custom_call.1} parent=1 // loop_body
      %s25 = ssub.s32 %s20, 1
      %s26 = ssub.s32 %s20, 2
      %s27 = sadd.s32 %s20, 1
      %s28 = ssub.s32 %s20, %s27
      %p29 = scmp.eq.s32.totalorder %s28, 0
      %s31 = sadd.s32 %s30, 1
      %s32 = scalar_select %p29, %s30, %s31
      %p35 = pneg %p29
      %p36 = scmp.eq.s32.totalorder %s20, 1
      %p37 = por %p35, %p36
      %p38 = scmp.ne.s32.totalorder %s30, %s33
      %p39 = scmp.eq.s32.totalorder %s20, 0
      %p40 = por %p38, %p39
      %p41 = scmp.ne.s32.totalorder %s30, %s33
      %p42 = scmp.eq.s32.totalorder %s25, 1
      %p43 = por %p41, %p42
      %p44 = scmp.ne.s32.totalorder %s33, %s34
      %p45 = scmp.eq.s32.totalorder %s25, 0
      %p46 = por %p44, %p45
      %p47 = scmp.ne.s32.totalorder %s33, %s34
      %p48 = scmp.eq.s32.totalorder %s26, 1
      %p49 = por %p47, %p48
      %p51 = scmp.ne.s32.totalorder %s34, %s50
      %p52 = scmp.eq.s32.totalorder %s26, 0
      %p53 = por %p51, %p52
      %s55 = sadd.s32 %s54, 1
      %p58 = scmp.eq.s32.totalorder %s20, 1
      %p59 = scmp.ne.s32.totalorder %s54, %s56
      %p60 = scmp.eq.s32.totalorder %s20, 0
      %p61 = por %p59, %p60
      %p62 = scmp.ne.s32.totalorder %s54, %s56
      %p63 = scmp.eq.s32.totalorder %s25, 1
      %p64 = por %p62, %p63
      %p65 = scmp.ne.s32.totalorder %s56, %s57
      %p66 = scmp.eq.s32.totalorder %s25, 0
      %p67 = por %p65, %p66
      %p68 = scmp.ne.s32.totalorder %s56, %s57
      %p69 = scmp.eq.s32.totalorder %s26, 1
      %p70 = por %p68, %p69
      %p72 = scmp.ne.s32.totalorder %s57, %s71
      %p73 = scmp.eq.s32.totalorder %s26, 0
      %p74 = por %p72, %p73
      %s75 = ssub.s32 %s20, %s27
      %p76 = scmp.eq.s32.totalorder %s75, 0
      %s78 = sadd.s32 %s77, 1
      %s79 = scalar_select %p76, %s77, %s78
      %p82 = pneg %p76
      %p83 = scmp.eq.s32.totalorder %s20, 1
      %p84 = por %p82, %p83
      %p85 = scmp.ne.s32.totalorder %s77, %s80
      %p86 = scmp.eq.s32.totalorder %s20, 0
      %p87 = por %p85, %p86
      %p88 = scmp.ne.s32.totalorder %s77, %s80
      %p89 = scmp.eq.s32.totalorder %s25, 1
      %p90 = por %p88, %p89
      %p91 = scmp.ne.s32.totalorder %s80, %s81
      %p92 = scmp.eq.s32.totalorder %s25, 0
      %p93 = por %p91, %p92
      %p94 = scmp.ne.s32.totalorder %s80, %s81
      %p95 = scmp.eq.s32.totalorder %s26, 1
      %p96 = por %p94, %p95
      %p98 = scmp.ne.s32.totalorder %s81, %s97
      %p99 = scmp.eq.s32.totalorder %s26, 0
      %p100 = por %p98, %p99
      %s101 = ssub.s32 %s20, %s27
      %p102 = scmp.eq.s32.totalorder %s101, 0
      %s104 = sadd.s32 %s103, 1
      %s105 = scalar_select %p102, %s103, %s104
      %p108 = pneg %p102
      %p109 = scmp.eq.s32.totalorder %s20, 1
      %p110 = por %p108, %p109
      %p111 = scmp.ne.s32.totalorder %s103, %s106
      %p112 = scmp.eq.s32.totalorder %s20, 0
      %p113 = por %p111, %p112
      %p114 = scmp.ne.s32.totalorder %s103, %s106
      %p115 = scmp.eq.s32.totalorder %s25, 1
      %p116 = por %p114, %p115
      %p117 = scmp.ne.s32.totalorder %s106, %s107
      %p118 = scmp.eq.s32.totalorder %s25, 0
      %p119 = por %p117, %p118
      %p120 = scmp.ne.s32.totalorder %s106, %s107
      %p121 = scmp.eq.s32.totalorder %s26, 1
      %p122 = por %p120, %p121
      %p124 = scmp.ne.s32.totalorder %s107, %s123
      %p125 = scmp.eq.s32.totalorder %s26, 0
      %p126 = por %p124, %p125
      %p127 = scmp.le.s32.totalorder 1, %s20
      %p128 = scmp.lt.s32.totalorder %s20, 3
      %p129 = pnand %p127, %p128
      %p130 = pneg %p129
      // Predicated region
      $region9: #{tpu_custom_call.1} parent=5 // pred_check
        _
      $region10: #{tpu_custom_call.1} parent=5 // pred_check_branch
        %132 = sbr.rel (%p129) target = $region12
      $region11: #{tpu_custom_call.1} parent=5 // pred_region
        %s133 = ssub.s32 %s20, 1
        // Predicated region
        $region13: #{tpu_custom_call.1} parent=11 // pred_check
          %p134 = pneg %p67
        $region14: #{tpu_custom_call.1} parent=11 // pred_check_branch
          %136 = sbr.rel (%p134) target = $region16
        $region15: #{tpu_custom_call.1} parent=11 // pred_region
          %s138 = ssub.s32 9216, 9216
          %139 = vsyncadd [#allocation9], %s138
          %s140 = sshll.u32 [#allocation8], 4
          %s141 = int_to_ptr.vmem [resolvable:$true] %s140
          %146 = dma.hbm_to_vmem [thread:$0]  %s1, 9216, %s141, [#allocation9], 64, 64, 4
        $region16: #{tpu_custom_call.1} parent=11 // pred_fallthru
          _
      $region12: #{tpu_custom_call.1} parent=5 // pred_fallthru
        _
      %p147 = scmp.lt.s32.totalorder %s20, 2
      // Predicated region
      $region17: #{tpu_custom_call.1} parent=5 // pred_check
        %p148 = pneg %p147
      $region18: #{tpu_custom_call.1} parent=5 // pred_check_branch
        %150 = sbr.rel (%p148) target = $region20
      $region19: #{tpu_custom_call.1} parent=5 // pred_region
        // Predicated region
        $region21: #{tpu_custom_call.1} parent=19 // pred_check
          %p151 = pneg %p40
        $region22: #{tpu_custom_call.1} parent=19 // pred_check_branch
          %153 = sbr.rel (%p151) target = $region24
        $region23: #{tpu_custom_call.1} parent=19 // pred_region
          %s154 = sand.u32 %s30, 1
          %s155 = scalar_lea.sflag [#allocation6], %s154
          %s156 = sand.u32 %s30, 1
          %s157 = smul.addr %s156, 256
          %s158 = scalar_lea.vmem [#allocation5], %s157
          %s160 = ssub.s32 4096, 4096
          %161 = vsyncadd %s155, %s160
          %s162 = smul.addr %s20, 32
          %s163 = smul.addr %s162, 128
          %s164 = scalar_lea.hbm %s0, %s163
          %s165 = sshll.u32 %s158, 4
          %s166 = int_to_ptr.vmem [resolvable:$true] %s165
          %171 = dma.hbm_to_vmem [thread:$0]  %s164, 4096, %s166, %s155, 128, 128, 8
        $region24: #{tpu_custom_call.1} parent=19 // pred_fallthru
          _
      $region20: #{tpu_custom_call.1} parent=5 // pred_fallthru
        _
      %p172 = scmp.le.s32.totalorder 1, %s20
      %p173 = scmp.lt.s32.totalorder %s20, 3
      %p174 = pnand %p172, %p173
      %p175 = pneg %p174
      // Predicated region
      $region25: #{tpu_custom_call.1} parent=5 // pred_check
        _
      $region26: #{tpu_custom_call.1} parent=5 // pred_check_branch
        %177 = sbr.rel (%p174) target = $region28
      $region27: #{tpu_custom_call.1} parent=5 // pred_region
        %s178 = ssub.s32 %s20, 1
        %s179 = sand.u32 %s33, 1
        %s180 = scalar_lea.sflag [#allocation6], %s179
        %s181 = sand.u32 %s33, 1
        %s182 = smul.addr %s181, 256
        %s183 = scalar_lea.vmem [#allocation5], %s182
        // Predicated region
        $region29: #{tpu_custom_call.1} parent=27 // pred_check
          %p184 = pneg %p46
        $region30: #{tpu_custom_call.1} parent=27 // pred_check_branch
          %186 = sbr.rel (%p184) target = $region32
        $region31: #{tpu_custom_call.1} parent=27 // pred_region
          %187 = dma.done %s180, 4096
        $region32: #{tpu_custom_call.1} parent=27 // pred_fallthru
          _
        // Predicated region
        $region33: #{tpu_custom_call.1} parent=27 // pred_check
          %p188 = pneg %p67
        $region34: #{tpu_custom_call.1} parent=27 // pred_check_branch
          %190 = sbr.rel (%p188) target = $region36
        $region35: #{tpu_custom_call.1} parent=27 // pred_region
          %191 = dma.done [#allocation9], 9216
        $region36: #{tpu_custom_call.1} parent=27 // pred_fallthru
          _
        %s192 = sand.u32 %s33, 1
        %s193 = scalar_lea.sflag [#allocation6], %s192
        %s194 = sand.u32 %s33, 1
        %s195 = smul.addr %s194, 256
        %s196 = scalar_lea.vmem [#allocation5], %s195
        %p197 = pneg %p46
        %p198 = pneg %p43
        %p199 = pneg %p67
        %p200 = pneg %p64
        %p201 = pneg %p93
        %p202 = pneg %p90
        %s203 = sand.u32 %s80, 1
        %s204 = scalar_lea.sflag [#allocation7], %s203
        %s205 = sand.u32 %s80, 1
        %s206 = smul.addr %s205, 128
        %s207 = scalar_lea.vmem [#allocation10], %s206
        %p208 = pneg %p119
        %p209 = pneg %p116
        %s210 = sand.u32 %s106, 1
        %s211 = scalar_lea.sflag [#allocation12], %s210
        %s212 = sand.u32 %s106, 1
        %s213 = smul.addr %s212, 2
        %s214 = scalar_lea.vmem [#allocation11], %s213
        %v216 = vld [vmem:[%s183] sm:$0xff]
        %v217 = vld [vmem:[%s183 + $0x8] sm:$0xff]
        %v218 = vld [vmem:[%s183 + $0x10] sm:$0xff]
        %v219 = vld [vmem:[%s183 + $0x18] sm:$0xff]
        %v220 = vld [vmem:[%s183 + $0x20] sm:$0xff]
        %v221 = vld [vmem:[%s183 + $0x28] sm:$0xff]
        %v222 = vld [vmem:[%s183 + $0x30] sm:$0xff]
        %v223 = vld [vmem:[%s183 + $0x38] sm:$0xff]
        %v224 = vld [vmem:[%s183 + $0x40] sm:$0xff]
        %v225 = vld [vmem:[%s183 + $0x48] sm:$0xff]
        %v226 = vld [vmem:[%s183 + $0x50] sm:$0xff]
        %v227 = vld [vmem:[%s183 + $0x58] sm:$0xff]
        %v228 = vld [vmem:[%s183 + $0x60] sm:$0xff]
        %v229 = vld [vmem:[%s183 + $0x68] sm:$0xff]
        %v230 = vld [vmem:[%s183 + $0x70] sm:$0xff]
        %v231 = vld [vmem:[%s183 + $0x78] sm:$0xff]
        %v232 = vld [vmem:[%s183 + $0x80] sm:$0xff]
        %v233 = vld [vmem:[%s183 + $0x88] sm:$0xff]
        %v234 = vld [vmem:[%s183 + $0x90] sm:$0xff]
        %v235 = vld [vmem:[%s183 + $0x98] sm:$0xff]
        %v236 = vld [vmem:[%s183 + $0xa0] sm:$0xff]
        %v237 = vld [vmem:[%s183 + $0xa8] sm:$0xff]
        %v238 = vld [vmem:[%s183 + $0xb0] sm:$0xff]
        %v239 = vld [vmem:[%s183 + $0xb8] sm:$0xff]
        %v240 = vld [vmem:[%s183 + $0xc0] sm:$0xff]
        %v241 = vld [vmem:[%s183 + $0xc8] sm:$0xff]
        %v242 = vld [vmem:[%s183 + $0xd0] sm:$0xff]
        %v243 = vld [vmem:[%s183 + $0xd8] sm:$0xff]
        %v244 = vld [vmem:[%s183 + $0xe0] sm:$0xff]
        %v245 = vld [vmem:[%s183 + $0xe8] sm:$0xff]
        %v246 = vld [vmem:[%s183 + $0xf0] sm:$0xff]
        %v247 = vld [vmem:[%s183 + $0xf8] sm:$0xff]
        %v248 = vpack.c.bf16 %v217, %v216
        %v249 = vpack.c.bf16 %v219, %v218
        %v250 = vpack.c.bf16 %v221, %v220
        %v251 = vpack.c.bf16 %v223, %v222
        %v252 = vpack.c.bf16 %v225, %v224
        %v253 = vpack.c.bf16 %v227, %v226
        %v254 = vpack.c.bf16 %v229, %v228
        %v255 = vpack.c.bf16 %v231, %v230
        %v256 = vpack.c.bf16 %v233, %v232
        %v257 = vpack.c.bf16 %v235, %v234
        %v258 = vpack.c.bf16 %v237, %v236
        %v259 = vpack.c.bf16 %v239, %v238
        %v260 = vpack.c.bf16 %v241, %v240
        %v261 = vpack.c.bf16 %v243, %v242
        %v262 = vpack.c.bf16 %v245, %v244
        %v263 = vpack.c.bf16 %v247, %v246
        %264 = vst [vmem:[#allocation2] sm:$0xf] 0
        %265 = vst [vmem:[#allocation2 + $0x4] sm:$0xf] 0
        %266 = vst [vmem:[#allocation2 + $0x8] sm:$0xf] 0
        %267 = vst [vmem:[#allocation2 + $0xc] sm:$0xf] 0
        %268 = vst [vmem:[#allocation2 + $0x10] sm:$0xf] 0
        %269 = vst [vmem:[#allocation2 + $0x14] sm:$0xf] 0
        %270 = vst [vmem:[#allocation2 + $0x18] sm:$0xf] 0
        %271 = vst [vmem:[#allocation2 + $0x1c] sm:$0xf] 0
        %272 = vst [vmem:[#allocation2 + $0x20] sm:$0xf] 0
        %273 = vst [vmem:[#allocation2 + $0x24] sm:$0xf] 0
        %274 = vst [vmem:[#allocation2 + $0x28] sm:$0xf] 0
        %275 = vst [vmem:[#allocation2 + $0x2c] sm:$0xf] 0
        %276 = vst [vmem:[#allocation2 + $0x30] sm:$0xf] 0
        %277 = vst [vmem:[#allocation2 + $0x34] sm:$0xf] 0
        %278 = vst [vmem:[#allocation2 + $0x38] sm:$0xf] 0
        %279 = vst [vmem:[#allocation2 + $0x3c] sm:$0xf] 0
        %280 = vst [vmem:[#allocation2 + $0x40] sm:$0xf] 0
        %281 = vst [vmem:[#allocation2 + $0x44] sm:$0xf] 0
        %282 = vst [vmem:[#allocation2 + $0x48] sm:$0xf] 0
        %283 = vst [vmem:[#allocation2 + $0x4c] sm:$0xf] 0
        %284 = vst [vmem:[#allocation2 + $0x50] sm:$0xf] 0
        %285 = vst [vmem:[#allocation2 + $0x54] sm:$0xf] 0
        %286 = vst [vmem:[#allocation2 + $0x58] sm:$0xf] 0
        %287 = vst [vmem:[#allocation2 + $0x5c] sm:$0xf] 0
        %288 = vst [vmem:[#allocation2 + $0x60] sm:$0xf] 0
        %289 = vst [vmem:[#allocation2 + $0x64] sm:$0xf] 0
        %290 = vst [vmem:[#allocation2 + $0x68] sm:$0xf] 0
        %291 = vst [vmem:[#allocation2 + $0x6c] sm:$0xf] 0
        %292 = vst [vmem:[#allocation2 + $0x70] sm:$0xf] 0
        %293 = vst [vmem:[#allocation2 + $0x74] sm:$0xf] 0
        %294 = vst [vmem:[#allocation2 + $0x78] sm:$0xf] 0
        %295 = vst [vmem:[#allocation2 + $0x7c] sm:$0xf] 0
        %296 = vst [vmem:[#allocation2 + $0x80] sm:$0xf] 0
        %297 = vst [vmem:[#allocation2 + $0x84] sm:$0xf] 0
        %298 = vst [vmem:[#allocation2 + $0x88] sm:$0xf] 0
        %299 = vst [vmem:[#allocation2 + $0x8c] sm:$0xf] 0
        %300 = vst [vmem:[#allocation2 + $0x90] sm:$0xf] 0
        %301 = vst [vmem:[#allocation2 + $0x94] sm:$0xf] 0
        %302 = vst [vmem:[#allocation2 + $0x98] sm:$0xf] 0
        %303 = vst [vmem:[#allocation2 + $0x9c] sm:$0xf] 0
        %304 = vst [vmem:[#allocation2 + $0xa0] sm:$0xf] 0
        %305 = vst [vmem:[#allocation2 + $0xa4] sm:$0xf] 0
        %306 = vst [vmem:[#allocation2 + $0xa8] sm:$0xf] 0
        %307 = vst [vmem:[#allocation2 + $0xac] sm:$0xf] 0
        %308 = vst [vmem:[#allocation2 + $0xb0] sm:$0xf] 0
        %309 = vst [vmem:[#allocation2 + $0xb4] sm:$0xf] 0
        %310 = vst [vmem:[#allocation2 + $0xb8] sm:$0xf] 0
        %311 = vst [vmem:[#allocation2 + $0xbc] sm:$0xf] 0
        %312 = vst [vmem:[#allocation2 + $0xc0] sm:$0xf] 0
        %313 = vst [vmem:[#allocation2 + $0xc4] sm:$0xf] 0
        %314 = vst [vmem:[#allocation2 + $0xc8] sm:$0xf] 0
        %315 = vst [vmem:[#allocation2 + $0xcc] sm:$0xf] 0
        %316 = vst [vmem:[#allocation2 + $0xd0] sm:$0xf] 0
        %317 = vst [vmem:[#allocation2 + $0xd4] sm:$0xf] 0
        %v334 = vunpack.c.l.b16 %v248
        %v335 = vunpack.c.h.b16 %v248
        %v336 = vunpack.c.l.b16 %v249
        %v337 = vunpack.c.h.b16 %v249
        %v338 = vunpack.c.l.b16 %v250
        %v339 = vunpack.c.h.b16 %v250
        %v340 = vunpack.c.l.b16 %v251
        %v341 = vunpack.c.h.b16 %v251
        %v342 = vunpack.c.l.b16 %v252
        %v343 = vunpack.c.h.b16 %v252
        %v344 = vunpack.c.l.b16 %v253
        %v345 = vunpack.c.h.b16 %v253
        %v346 = vunpack.c.l.b16 %v254
        %v347 = vunpack.c.h.b16 %v254
        %v348 = vunpack.c.l.b16 %v255
        %v349 = vunpack.c.h.b16 %v255
        %v350 = vunpack.c.l.b16 %v256
        %v351 = vunpack.c.h.b16 %v256
        %v352 = vunpack.c.l.b16 %v257
        %v353 = vunpack.c.h.b16 %v257
        %v354 = vunpack.c.l.b16 %v258
        %v355 = vunpack.c.h.b16 %v258
        %v356 = vunpack.c.l.b16 %v259
        %v357 = vunpack.c.h.b16 %v259
        %v358 = vunpack.c.l.b16 %v260
        %v359 = vunpack.c.h.b16 %v260
        %v360 = vunpack.c.l.b16 %v261
        %v361 = vunpack.c.h.b16 %v261
        %v362 = vunpack.c.l.b16 %v262
        %v363 = vunpack.c.h.b16 %v262
        %v364 = vunpack.c.l.b16 %v263
        %v365 = vunpack.c.h.b16 %v263
        %v366 = vpack.c.b16 %v334, %v334
        %v367 = vpack.c.b16 %v335, %v335
        %v368 = vpack.c.b16 %v336, %v336
        %v369 = vpack.c.b16 %v337, %v337
        %v370 = vpack.c.b16 %v338, %v338
        %v371 = vpack.c.b16 %v339, %v339
        %v372 = vpack.c.b16 %v340, %v340
        %v373 = vpack.c.b16 %v341, %v341
        %v374 = vpack.c.b16 %v342, %v342
        %v375 = vpack.c.b16 %v343, %v343
        %v376 = vpack.c.b16 %v344, %v344
        %v377 = vpack.c.b16 %v345, %v345
        %v378 = vpack.c.b16 %v346, %v346
        %v379 = vpack.c.b16 %v347, %v347
        %v380 = vpack.c.b16 %v348, %v348
        %v381 = vpack.c.b16 %v349, %v349
        %v382 = vpack.c.b16 %v350, %v350
        %v383 = vpack.c.b16 %v351, %v351
        %v384 = vpack.c.b16 %v352, %v352
        %v385 = vpack.c.b16 %v353, %v353
        %v386 = vpack.c.b16 %v354, %v354
        %v387 = vpack.c.b16 %v355, %v355
        %v388 = vpack.c.b16 %v356, %v356
        %v389 = vpack.c.b16 %v357, %v357
        %v390 = vpack.c.b16 %v358, %v358
        %v391 = vpack.c.b16 %v359, %v359
        %v392 = vpack.c.b16 %v360, %v360
        %v393 = vpack.c.b16 %v361, %v361
        %v394 = vpack.c.b16 %v362, %v362
        %v395 = vpack.c.b16 %v363, %v363
        %v396 = vpack.c.b16 %v364, %v364
        %v397 = vpack.c.b16 %v365, %v365
        %vm398 = vsmask.f32 256
        %vm399 = vsmask.f32 4368
        %vm400 = vmor %vm398, %vm399
        %v402 = vshrl.u32 %v366, 16
        %v404 = vrot.slane %v402, 7
        %v405 = vshll.u32 %v366, 16
        %v407 = vor.u32 %v404, %v405
        %v408 = vrot.slane %v404, 4
        %v410 = vshrl.u32 %v367, 16
        %v412 = vrot.slane %v410, 7
        %v413 = vshll.u32 %v367, 16
        %v415 = vor.u32 %v412, %v413
        %v416 = vsel %vm400, %v408, %v415
        %v417 = vrot.slane %v412, 4
        %v419 = vshrl.u32 %v368, 16
        %v421 = vrot.slane %v419, 7
        %v422 = vshll.u32 %v368, 16
        %v424 = vor.u32 %v421, %v422
        %v425 = vrot.slane %v421, 4
        %v427 = vshrl.u32 %v369, 16
        %v429 = vrot.slane %v427, 7
        %v430 = vshll.u32 %v369, 16
        %v432 = vor.u32 %v429, %v430
        %v433 = vsel %vm400, %v425, %v432
        %v434 = vrot.slane %v429, 4
        %v436 = vshrl.u32 %v370, 16
        %v438 = vrot.slane %v436, 7
        %v439 = vshll.u32 %v370, 16
        %v441 = vor.u32 %v438, %v439
        %v442 = vrot.slane %v438, 4
        %v444 = vshrl.u32 %v371, 16
        %v446 = vrot.slane %v444, 7
        %v447 = vshll.u32 %v371, 16
        %v449 = vor.u32 %v446, %v447
        %v450 = vsel %vm400, %v442, %v449
        %v451 = vrot.slane %v446, 4
        %v453 = vshrl.u32 %v372, 16
        %v455 = vrot.slane %v453, 7
        %v456 = vshll.u32 %v372, 16
        %v458 = vor.u32 %v455, %v456
        %v459 = vrot.slane %v455, 4
        %v461 = vshrl.u32 %v373, 16
        %v463 = vrot.slane %v461, 7
        %v464 = vshll.u32 %v373, 16
        %v466 = vor.u32 %v463, %v464
        %v467 = vsel %vm400, %v459, %v466
        %v468 = vrot.slane %v463, 4
        %v470 = vshrl.u32 %v374, 16
        %v472 = vrot.slane %v470, 7
        %v473 = vshll.u32 %v374, 16
        %v475 = vor.u32 %v472, %v473
        %v476 = vrot.slane %v472, 4
        %v478 = vshrl.u32 %v375, 16
        %v480 = vrot.slane %v478, 7
        %v481 = vshll.u32 %v375, 16
        %v483 = vor.u32 %v480, %v481
        %v484 = vsel %vm400, %v476, %v483
        %v485 = vrot.slane %v480, 4
        %v487 = vshrl.u32 %v376, 16
        %v489 = vrot.slane %v487, 7
        %v490 = vshll.u32 %v376, 16
        %v492 = vor.u32 %v489, %v490
        %v493 = vrot.slane %v489, 4
        %v495 = vshrl.u32 %v377, 16
        %v497 = vrot.slane %v495, 7
        %v498 = vshll.u32 %v377, 16
        %v500 = vor.u32 %v497, %v498
        %v501 = vsel %vm400, %v493, %v500
        %v502 = vrot.slane %v497, 4
        %v504 = vshrl.u32 %v378, 16
        %v506 = vrot.slane %v504, 7
        %v507 = vshll.u32 %v378, 16
        %v509 = vor.u32 %v506, %v507
        %v510 = vrot.slane %v506, 4
        %v512 = vshrl.u32 %v379, 16
        %v514 = vrot.slane %v512, 7
        %v515 = vshll.u32 %v379, 16
        %v517 = vor.u32 %v514, %v515
        %v518 = vsel %vm400, %v510, %v517
        %v519 = vrot.slane %v514, 4
        %v521 = vshrl.u32 %v380, 16
        %v523 = vrot.slane %v521, 7
        %v524 = vshll.u32 %v380, 16
        %v526 = vor.u32 %v523, %v524
        %v527 = vrot.slane %v523, 4
        %v529 = vshrl.u32 %v381, 16
        %v531 = vrot.slane %v529, 7
        %v532 = vshll.u32 %v381, 16
        %v534 = vor.u32 %v531, %v532
        %v535 = vsel %vm400, %v527, %v534
        %v536 = vrot.slane %v531, 4
        %v538 = vshrl.u32 %v382, 16
        %v540 = vrot.slane %v538, 7
        %v541 = vshll.u32 %v382, 16
        %v543 = vor.u32 %v540, %v541
        %v544 = vrot.slane %v540, 4
        %v546 = vshrl.u32 %v383, 16
        %v548 = vrot.slane %v546, 7
        %v549 = vshll.u32 %v383, 16
        %v551 = vor.u32 %v548, %v549
        %v552 = vsel %vm400, %v544, %v551
        %v553 = vrot.slane %v548, 4
        %v555 = vshrl.u32 %v384, 16
        %v557 = vrot.slane %v555, 7
        %v558 = vshll.u32 %v384, 16
        %v560 = vor.u32 %v557, %v558
        %v561 = vrot.slane %v557, 4
        %v563 = vshrl.u32 %v385, 16
        %v565 = vrot.slane %v563, 7
        %v566 = vshll.u32 %v385, 16
        %v568 = vor.u32 %v565, %v566
        %v569 = vsel %vm400, %v561, %v568
        %v570 = vrot.slane %v565, 4
        %v572 = vshrl.u32 %v386, 16
        %v574 = vrot.slane %v572, 7
        %v575 = vshll.u32 %v386, 16
        %v577 = vor.u32 %v574, %v575
        %v578 = vrot.slane %v574, 4
        %v580 = vshrl.u32 %v387, 16
        %v582 = vrot.slane %v580, 7
        %v583 = vshll.u32 %v387, 16
        %v585 = vor.u32 %v582, %v583
        %v586 = vsel %vm400, %v578, %v585
        %v587 = vrot.slane %v582, 4
        %v589 = vshrl.u32 %v388, 16
        %v591 = vrot.slane %v589, 7
        %v592 = vshll.u32 %v388, 16
        %v594 = vor.u32 %v591, %v592
        %v595 = vrot.slane %v591, 4
        %v597 = vshrl.u32 %v389, 16
        %v599 = vrot.slane %v597, 7
        %v600 = vshll.u32 %v389, 16
        %v602 = vor.u32 %v599, %v600
        %v603 = vsel %vm400, %v595, %v602
        %v604 = vrot.slane %v599, 4
        %v606 = vshrl.u32 %v390, 16
        %v608 = vrot.slane %v606, 7
        %v609 = vshll.u32 %v390, 16
        %v611 = vor.u32 %v608, %v609
        %v612 = vrot.slane %v608, 4
        %v614 = vshrl.u32 %v391, 16
        %v616 = vrot.slane %v614, 7
        %v617 = vshll.u32 %v391, 16
        %v619 = vor.u32 %v616, %v617
        %v620 = vsel %vm400, %v612, %v619
        %v621 = vrot.slane %v616, 4
        %v623 = vshrl.u32 %v392, 16
        %v625 = vrot.slane %v623, 7
        %v626 = vshll.u32 %v392, 16
        %v628 = vor.u32 %v625, %v626
        %v629 = vrot.slane %v625, 4
        %v631 = vshrl.u32 %v393, 16
        %v633 = vrot.slane %v631, 7
        %v634 = vshll.u32 %v393, 16
        %v636 = vor.u32 %v633, %v634
        %v637 = vsel %vm400, %v629, %v636
        %v638 = vrot.slane %v633, 4
        %v640 = vshrl.u32 %v394, 16
        %v642 = vrot.slane %v640, 7
        %v643 = vshll.u32 %v394, 16
        %v645 = vor.u32 %v642, %v643
        %v646 = vrot.slane %v642, 4
        %v648 = vshrl.u32 %v395, 16
        %v650 = vrot.slane %v648, 7
        %v651 = vshll.u32 %v395, 16
        %v653 = vor.u32 %v650, %v651
        %v654 = vsel %vm400, %v646, %v653
        %v655 = vrot.slane %v650, 4
        %v657 = vshrl.u32 %v396, 16
        %v659 = vrot.slane %v657, 7
        %v660 = vshll.u32 %v396, 16
        %v662 = vor.u32 %v659, %v660
        %v663 = vrot.slane %v659, 4
        %v665 = vshrl.u32 %v397, 16
        %v667 = vrot.slane %v665, 7
        %v668 = vshll.u32 %v397, 16
        %v670 = vor.u32 %v667, %v668
        %v671 = vsel %vm400, %v663, %v670
        %v672 = vrot.slane %v667, 4
        %s721 = scalar_lea.vmem [#allocation2], 12
        %vm722 = vcmask 1043456
        %vm723 = vsmask.f32 7938
        %vm724 = vmand %vm722, %vm723
        %v725 = vld [vmem:[%s721] sm:$0xf]
        %v726 = vsel %vm724, %v407, %v725
        %727 = vst [vmem:[%s721] sm:$0xf] %v726
        %728 = vst [vmem:[%s721 + $0x4] sm:$0xf] %v416
        %vm729 = vcmask 1040384
        %vm730 = vmand %vm729, %vm398
        %v731 = vld [vmem:[%s721 + $0x8] sm:$0x1]
        %v732 = vsel %vm730, %v417, %v731
        %733 = vst [vmem:[%s721 + $0x8] sm:$0x1] %v732
        %v734 = vld [vmem:[%s721 + $0xc] sm:$0xf]
        %v735 = vsel %vm724, %v424, %v734
        %736 = vst [vmem:[%s721 + $0xc] sm:$0xf] %v735
        %737 = vst [vmem:[%s721 + $0x10] sm:$0xf] %v433
        %v738 = vld [vmem:[%s721 + $0x14] sm:$0x1]
        %v739 = vsel %vm730, %v434, %v738
        %740 = vst [vmem:[%s721 + $0x14] sm:$0x1] %v739
        %v741 = vld [vmem:[%s721 + $0x18] sm:$0xf]
        %v742 = vsel %vm724, %v441, %v741
        %743 = vst [vmem:[%s721 + $0x18] sm:$0xf] %v742
        %744 = vst [vmem:[%s721 + $0x1c] sm:$0xf] %v450
        %v745 = vld [vmem:[%s721 + $0x20] sm:$0x1]
        %v746 = vsel %vm730, %v451, %v745
        %747 = vst [vmem:[%s721 + $0x20] sm:$0x1] %v746
        %v748 = vld [vmem:[%s721 + $0x24] sm:$0xf]
        %v749 = vsel %vm724, %v458, %v748
        %750 = vst [vmem:[%s721 + $0x24] sm:$0xf] %v749
        %751 = vst [vmem:[%s721 + $0x28] sm:$0xf] %v467
        %v752 = vld [vmem:[%s721 + $0x2c] sm:$0x1]
        %v753 = vsel %vm730, %v468, %v752
        %754 = vst [vmem:[%s721 + $0x2c] sm:$0x1] %v753
        %v755 = vld [vmem:[%s721 + $0x30] sm:$0xf]
        %v756 = vsel %vm724, %v475, %v755
        %757 = vst [vmem:[%s721 + $0x30] sm:$0xf] %v756
        %758 = vst [vmem:[%s721 + $0x34] sm:$0xf] %v484
        %v759 = vld [vmem:[%s721 + $0x38] sm:$0x1]
        %v760 = vsel %vm730, %v485, %v759
        %761 = vst [vmem:[%s721 + $0x38] sm:$0x1] %v760
        %v762 = vld [vmem:[%s721 + $0x3c] sm:$0xf]
        %v763 = vsel %vm724, %v492, %v762
        %764 = vst [vmem:[%s721 + $0x3c] sm:$0xf] %v763
        %765 = vst [vmem:[%s721 + $0x40] sm:$0xf] %v501
        %v766 = vld [vmem:[%s721 + $0x44] sm:$0x1]
        %v767 = vsel %vm730, %v502, %v766
        %768 = vst [vmem:[%s721 + $0x44] sm:$0x1] %v767
        %v769 = vld [vmem:[%s721 + $0x48] sm:$0xf]
        %v770 = vsel %vm724, %v509, %v769
        %771 = vst [vmem:[%s721 + $0x48] sm:$0xf] %v770
        %772 = vst [vmem:[%s721 + $0x4c] sm:$0xf] %v518
        %v773 = vld [vmem:[%s721 + $0x50] sm:$0x1]
        %v774 = vsel %vm730, %v519, %v773
        %775 = vst [vmem:[%s721 + $0x50] sm:$0x1] %v774
        %v776 = vld [vmem:[%s721 + $0x54] sm:$0xf]
        %v777 = vsel %vm724, %v526, %v776
        %778 = vst [vmem:[%s721 + $0x54] sm:$0xf] %v777
        %779 = vst [vmem:[%s721 + $0x58] sm:$0xf] %v535
        %v780 = vld [vmem:[%s721 + $0x5c] sm:$0x1]
        %v781 = vsel %vm730, %v536, %v780
        %782 = vst [vmem:[%s721 + $0x5c] sm:$0x1] %v781
        %v783 = vld [vmem:[%s721 + $0x60] sm:$0xf]
        %v784 = vsel %vm724, %v543, %v783
        %785 = vst [vmem:[%s721 + $0x60] sm:$0xf] %v784
        %786 = vst [vmem:[%s721 + $0x64] sm:$0xf] %v552
        %v787 = vld [vmem:[%s721 + $0x68] sm:$0x1]
        %v788 = vsel %vm730, %v553, %v787
        %789 = vst [vmem:[%s721 + $0x68] sm:$0x1] %v788
        %v790 = vld [vmem:[%s721 + $0x6c] sm:$0xf]
        %v791 = vsel %vm724, %v560, %v790
        %792 = vst [vmem:[%s721 + $0x6c] sm:$0xf] %v791
        %793 = vst [vmem:[%s721 + $0x70] sm:$0xf] %v569
        %v794 = vld [vmem:[%s721 + $0x74] sm:$0x1]
        %v795 = vsel %vm730, %v570, %v794
        %796 = vst [vmem:[%s721 + $0x74] sm:$0x1] %v795
        %v797 = vld [vmem:[%s721 + $0x78] sm:$0xf]
        %v798 = vsel %vm724, %v577, %v797
        %799 = vst [vmem:[%s721 + $0x78] sm:$0xf] %v798
        %800 = vst [vmem:[%s721 + $0x7c] sm:$0xf] %v586
        %v801 = vld [vmem:[%s721 + $0x80] sm:$0x1]
        %v802 = vsel %vm730, %v587, %v801
        %803 = vst [vmem:[%s721 + $0x80] sm:$0x1] %v802
        %v804 = vld [vmem:[%s721 + $0x84] sm:$0xf]
        %v805 = vsel %vm724, %v594, %v804
        %806 = vst [vmem:[%s721 + $0x84] sm:$0xf] %v805
        %807 = vst [vmem:[%s721 + $0x88] sm:$0xf] %v603
        %v808 = vld [vmem:[%s721 + $0x8c] sm:$0x1]
        %v809 = vsel %vm730, %v604, %v808
        %810 = vst [vmem:[%s721 + $0x8c] sm:$0x1] %v809
        %v811 = vld [vmem:[%s721 + $0x90] sm:$0xf]
        %v812 = vsel %vm724, %v611, %v811
        %813 = vst [vmem:[%s721 + $0x90] sm:$0xf] %v812
        %814 = vst [vmem:[%s721 + $0x94] sm:$0xf] %v620
        %v815 = vld [vmem:[%s721 + $0x98] sm:$0x1]
        %v816 = vsel %vm730, %v621, %v815
        %817 = vst [vmem:[%s721 + $0x98] sm:$0x1] %v816
        %v818 = vld [vmem:[%s721 + $0x9c] sm:$0xf]
        %v819 = vsel %vm724, %v628, %v818
        %820 = vst [vmem:[%s721 + $0x9c] sm:$0xf] %v819
        %821 = vst [vmem:[%s721 + $0xa0] sm:$0xf] %v637
        %v822 = vld [vmem:[%s721 + $0xa4] sm:$0x1]
        %v823 = vsel %vm730, %v638, %v822
        %824 = vst [vmem:[%s721 + $0xa4] sm:$0x1] %v823
        %v825 = vld [vmem:[%s721 + $0xa8] sm:$0xf]
        %v826 = vsel %vm724, %v645, %v825
        %827 = vst [vmem:[%s721 + $0xa8] sm:$0xf] %v826
        %828 = vst [vmem:[%s721 + $0xac] sm:$0xf] %v654
        %v829 = vld [vmem:[%s721 + $0xb0] sm:$0x1]
        %v830 = vsel %vm730, %v655, %v829
        %831 = vst [vmem:[%s721 + $0xb0] sm:$0x1] %v830
        %v832 = vld [vmem:[%s721 + $0xb4] sm:$0xf]
        %v833 = vsel %vm724, %v662, %v832
        %834 = vst [vmem:[%s721 + $0xb4] sm:$0xf] %v833
        %835 = vst [vmem:[%s721 + $0xb8] sm:$0xf] %v671
        %v836 = vld [vmem:[%s721 + $0xbc] sm:$0x1]
        %v837 = vsel %vm730, %v672, %v836
        %838 = vst [vmem:[%s721 + $0xbc] sm:$0x1] %v837
        %v839 = vld [vmem:[#allocation2] sm:$0xf]
        %v840 = vld [vmem:[#allocation2 + $0x4] sm:$0xf]
        %v841 = vld [vmem:[#allocation2 + $0xc] sm:$0xf]
        %v842 = vld [vmem:[#allocation2 + $0x10] sm:$0xf]
        %v843 = vld [vmem:[#allocation2 + $0x18] sm:$0xf]
        %v844 = vld [vmem:[#allocation2 + $0x1c] sm:$0xf]
        %v845 = vld [vmem:[#allocation2 + $0x24] sm:$0xf]
        %v846 = vld [vmem:[#allocation2 + $0x28] sm:$0xf]
        %v847 = vld [vmem:[#allocation2 + $0x30] sm:$0xf]
        %v848 = vld [vmem:[#allocation2 + $0x34] sm:$0xf]
        %v849 = vld [vmem:[#allocation2 + $0x3c] sm:$0xf]
        %v850 = vld [vmem:[#allocation2 + $0x40] sm:$0xf]
        %v851 = vld [vmem:[#allocation2 + $0x48] sm:$0xf]
        %v852 = vld [vmem:[#allocation2 + $0x4c] sm:$0xf]
        %v853 = vld [vmem:[#allocation2 + $0x54] sm:$0xf]
        %v854 = vld [vmem:[#allocation2 + $0x58] sm:$0xf]
        %v855 = vld [vmem:[#allocation2 + $0x60] sm:$0xf]
        %v856 = vld [vmem:[#allocation2 + $0x64] sm:$0xf]
        %v857 = vld [vmem:[#allocation2 + $0x6c] sm:$0xf]
        %v858 = vld [vmem:[#allocation2 + $0x70] sm:$0xf]
        %v859 = vld [vmem:[#allocation2 + $0x78] sm:$0xf]
        %v860 = vld [vmem:[#allocation2 + $0x7c] sm:$0xf]
        %v861 = vld [vmem:[#allocation2 + $0x84] sm:$0xf]
        %v862 = vld [vmem:[#allocation2 + $0x88] sm:$0xf]
        %v863 = vld [vmem:[#allocation2 + $0x90] sm:$0xf]
        %v864 = vld [vmem:[#allocation2 + $0x94] sm:$0xf]
        %v865 = vld [vmem:[#allocation2 + $0x9c] sm:$0xf]
        %v866 = vld [vmem:[#allocation2 + $0xa0] sm:$0xf]
        %v867 = vld [vmem:[#allocation2 + $0xa8] sm:$0xf]
        %v868 = vld [vmem:[#allocation2 + $0xac] sm:$0xf]
        %v869 = vld [vmem:[#allocation2 + $0xb4] sm:$0xf]
        %v870 = vld [vmem:[#allocation2 + $0xb8] sm:$0xf]
        %v871 = vld [vmem:[#allocation2 + $0xc0] sm:$0xf]
        %v872 = vld [vmem:[#allocation2 + $0xc4] sm:$0xf]
        %v873 = vld [vmem:[#allocation2 + $0xcc] sm:$0xf]
        %v874 = vld [vmem:[#allocation2 + $0xd0] sm:$0xf]
        %875 = vst [vmem:[#allocation3] sm:$0xf] %v839
        %876 = vst [vmem:[#allocation3 + $0xc] sm:$0xf] %v840
        %877 = vst [vmem:[#allocation3 + $0x18] sm:$0xf] %v841
        %878 = vst [vmem:[#allocation3 + $0x24] sm:$0xf] %v842
        %879 = vst [vmem:[#allocation3 + $0x30] sm:$0xf] %v843
        %880 = vst [vmem:[#allocation3 + $0x3c] sm:$0xf] %v844
        %881 = vst [vmem:[#allocation3 + $0x48] sm:$0xf] %v845
        %882 = vst [vmem:[#allocation3 + $0x54] sm:$0xf] %v846
        %883 = vst [vmem:[#allocation3 + $0x60] sm:$0xf] %v847
        %884 = vst [vmem:[#allocation3 + $0x6c] sm:$0xf] %v848
        %885 = vst [vmem:[#allocation3 + $0x78] sm:$0xf] %v849
        %886 = vst [vmem:[#allocation3 + $0x84] sm:$0xf] %v850
        %887 = vst [vmem:[#allocation3 + $0x90] sm:$0xf] %v851
        %888 = vst [vmem:[#allocation3 + $0x9c] sm:$0xf] %v852
        %889 = vst [vmem:[#allocation3 + $0xa8] sm:$0xf] %v853
        %890 = vst [vmem:[#allocation3 + $0xb4] sm:$0xf] %v854
        %891 = vst [vmem:[#allocation3 + $0xc0] sm:$0xf] %v855
        %892 = vst [vmem:[#allocation3 + $0xcc] sm:$0xf] %v856
        %893 = vst [vmem:[#allocation3 + $0xd8] sm:$0xf] %v857
        %894 = vst [vmem:[#allocation3 + $0xe4] sm:$0xf] %v858
        %895 = vst [vmem:[#allocation3 + $0xf0] sm:$0xf] %v859
        %896 = vst [vmem:[#allocation3 + $0xfc] sm:$0xf] %v860
        %897 = vst [vmem:[#allocation3 + $0x108] sm:$0xf] %v861
        %898 = vst [vmem:[#allocation3 + $0x114] sm:$0xf] %v862
        %899 = vst [vmem:[#allocation3 + $0x120] sm:$0xf] %v863
        %900 = vst [vmem:[#allocation3 + $0x12c] sm:$0xf] %v864
        %901 = vst [vmem:[#allocation3 + $0x138] sm:$0xf] %v865
        %902 = vst [vmem:[#allocation3 + $0x144] sm:$0xf] %v866
        %903 = vst [vmem:[#allocation3 + $0x150] sm:$0xf] %v867
        %904 = vst [vmem:[#allocation3 + $0x15c] sm:$0xf] %v868
        %905 = vst [vmem:[#allocation3 + $0x168] sm:$0xf] %v869
        %906 = vst [vmem:[#allocation3 + $0x174] sm:$0xf] %v870
        %907 = vst [vmem:[#allocation3 + $0x180] sm:$0xf] %v871
        %908 = vst [vmem:[#allocation3 + $0x18c] sm:$0xf] %v872
        %909 = vst [vmem:[#allocation3 + $0x198] sm:$0xf] %v873
        %910 = vst [vmem:[#allocation3 + $0x1a4] sm:$0xf] %v874
        %v911 = vld [vmem:[#allocation2] sm:$0xf]
        %v912 = vld [vmem:[#allocation2 + $0x4] sm:$0xf]
        %v913 = vld [vmem:[#allocation2 + $0x8] sm:$0x1]
        %v914 = vld [vmem:[#allocation2 + $0xc] sm:$0xf]
        %v915 = vld [vmem:[#allocation2 + $0x10] sm:$0xf]
        %v916 = vld [vmem:[#allocation2 + $0x14] sm:$0x1]
        %v917 = vld [vmem:[#allocation2 + $0x18] sm:$0xf]
        %v918 = vld [vmem:[#allocation2 + $0x1c] sm:$0xf]
        %v919 = vld [vmem:[#allocation2 + $0x20] sm:$0x1]
        %v920 = vld [vmem:[#allocation2 + $0x24] sm:$0xf]
        %v921 = vld [vmem:[#allocation2 + $0x28] sm:$0xf]
        %v922 = vld [vmem:[#allocation2 + $0x2c] sm:$0x1]
        %v923 = vld [vmem:[#allocation2 + $0x30] sm:$0xf]
        %v924 = vld [vmem:[#allocation2 + $0x34] sm:$0xf]
        %v925 = vld [vmem:[#allocation2 + $0x38] sm:$0x1]
        %v926 = vld [vmem:[#allocation2 + $0x3c] sm:$0xf]
        %v927 = vld [vmem:[#allocation2 + $0x40] sm:$0xf]
        %v928 = vld [vmem:[#allocation2 + $0x44] sm:$0x1]
        %v929 = vld [vmem:[#allocation2 + $0x48] sm:$0xf]
        %v930 = vld [vmem:[#allocation2 + $0x4c] sm:$0xf]
        %v931 = vld [vmem:[#allocation2 + $0x50] sm:$0x1]
        %v932 = vld [vmem:[#allocation2 + $0x54] sm:$0xf]
        %v933 = vld [vmem:[#allocation2 + $0x58] sm:$0xf]
        %v934 = vld [vmem:[#allocation2 + $0x5c] sm:$0x1]
        %v935 = vld [vmem:[#allocation2 + $0x60] sm:$0xf]
        %v936 = vld [vmem:[#allocation2 + $0x64] sm:$0xf]
        %v937 = vld [vmem:[#allocation2 + $0x68] sm:$0x1]
        %v938 = vld [vmem:[#allocation2 + $0x6c] sm:$0xf]
        %v939 = vld [vmem:[#allocation2 + $0x70] sm:$0xf]
        %v940 = vld [vmem:[#allocation2 + $0x74] sm:$0x1]
        %v941 = vld [vmem:[#allocation2 + $0x78] sm:$0xf]
        %v942 = vld [vmem:[#allocation2 + $0x7c] sm:$0xf]
        %v943 = vld [vmem:[#allocation2 + $0x80] sm:$0x1]
        %v944 = vld [vmem:[#allocation2 + $0x84] sm:$0xf]
        %v945 = vld [vmem:[#allocation2 + $0x88] sm:$0xf]
        %v946 = vld [vmem:[#allocation2 + $0x8c] sm:$0x1]
        %v947 = vld [vmem:[#allocation2 + $0x90] sm:$0xf]
        %v948 = vld [vmem:[#allocation2 + $0x94] sm:$0xf]
        %v949 = vld [vmem:[#allocation2 + $0x98] sm:$0x1]
        %v950 = vld [vmem:[#allocation2 + $0x9c] sm:$0xf]
        %v951 = vld [vmem:[#allocation2 + $0xa0] sm:$0xf]
        %v952 = vld [vmem:[#allocation2 + $0xa4] sm:$0x1]
        %v953 = vld [vmem:[#allocation2 + $0xa8] sm:$0xf]
        %v954 = vld [vmem:[#allocation2 + $0xac] sm:$0xf]
        %v955 = vld [vmem:[#allocation2 + $0xb0] sm:$0x1]
        %v956 = vld [vmem:[#allocation2 + $0xb4] sm:$0xf]
        %v957 = vld [vmem:[#allocation2 + $0xb8] sm:$0xf]
        %v958 = vld [vmem:[#allocation2 + $0xbc] sm:$0x1]
        %v959 = vld [vmem:[#allocation2 + $0xc0] sm:$0xf]
        %v960 = vld [vmem:[#allocation2 + $0xc4] sm:$0xf]
        %v961 = vld [vmem:[#allocation2 + $0xc8] sm:$0x1]
        %v962 = vld [vmem:[#allocation2 + $0xcc] sm:$0xf]
        %v963 = vld [vmem:[#allocation2 + $0xd0] sm:$0xf]
        %v964 = vld [vmem:[#allocation2 + $0xd4] sm:$0x1]
        %vm965 = vsmask.f32 3328
        %vm966 = vsmask.f32 7440
        %vm967 = vmor %vm965, %vm966
        %v969 = vshrl.u32 %v911, 16
        %v971 = vrot.slane %v969, 4
        %v972 = vshll.u32 %v911, 16
        %v974 = vrot.slane %v972, 5
        %v975 = vor.u32 %v971, %v974
        %v976 = vrot.slane %v975, 4
        %v978 = vshll.u32 %v912, 16
        %v980 = vrot.slane %v978, 5
        %v981 = vsel %vm967, %v976, %v980
        %v982 = vshrl.u32 %v912, 16
        %v984 = vrot.slane %v982, 4
        %v985 = vor.u32 %v984, %v980
        %v986 = vrot.slane %v985, 4
        %v988 = vshll.u32 %v913, 16
        %v990 = vrot.slane %v988, 5
        %v991 = vsel %vm967, %v986, %v990
        %v993 = vshrl.u32 %v914, 16
        %v995 = vrot.slane %v993, 4
        %v996 = vshll.u32 %v914, 16
        %v998 = vrot.slane %v996, 5
        %v999 = vor.u32 %v995, %v998
        %v1000 = vrot.slane %v999, 4
        %v1002 = vshll.u32 %v915, 16
        %v1004 = vrot.slane %v1002, 5
        %v1005 = vsel %vm967, %v1000, %v1004
        %v1006 = vshrl.u32 %v915, 16
        %v1008 = vrot.slane %v1006, 4
        %v1009 = vor.u32 %v1008, %v1004
        %v1010 = vrot.slane %v1009, 4
        %v1012 = vshll.u32 %v916, 16
        %v1014 = vrot.slane %v1012, 5
        %v1015 = vsel %vm967, %v1010, %v1014
        %v1017 = vshrl.u32 %v917, 16
        %v1019 = vrot.slane %v1017, 4
        %v1020 = vshll.u32 %v917, 16
        %v1022 = vrot.slane %v1020, 5
        %v1023 = vor.u32 %v1019, %v1022
        %v1024 = vrot.slane %v1023, 4
        %v1026 = vshll.u32 %v918, 16
        %v1028 = vrot.slane %v1026, 5
        %v1029 = vsel %vm967, %v1024, %v1028
        %v1030 = vshrl.u32 %v918, 16
        %v1032 = vrot.slane %v1030, 4
        %v1033 = vor.u32 %v1032, %v1028
        %v1034 = vrot.slane %v1033, 4
        %v1036 = vshll.u32 %v919, 16
        %v1038 = vrot.slane %v1036, 5
        %v1039 = vsel %vm967, %v1034, %v1038
        %v1041 = vshrl.u32 %v920, 16
        %v1043 = vrot.slane %v1041, 4
        %v1044 = vshll.u32 %v920, 16
        %v1046 = vrot.slane %v1044, 5
        %v1047 = vor.u32 %v1043, %v1046
        %v1048 = vrot.slane %v1047, 4
        %v1050 = vshll.u32 %v921, 16
        %v1052 = vrot.slane %v1050, 5
        %v1053 = vsel %vm967, %v1048, %v1052
        %v1054 = vshrl.u32 %v921, 16
        %v1056 = vrot.slane %v1054, 4
        %v1057 = vor.u32 %v1056, %v1052
        %v1058 = vrot.slane %v1057, 4
        %v1060 = vshll.u32 %v922, 16
        %v1062 = vrot.slane %v1060, 5
        %v1063 = vsel %vm967, %v1058, %v1062
        %v1065 = vshrl.u32 %v923, 16
        %v1067 = vrot.slane %v1065, 4
        %v1068 = vshll.u32 %v923, 16
        %v1070 = vrot.slane %v1068, 5
        %v1071 = vor.u32 %v1067, %v1070
        %v1072 = vrot.slane %v1071, 4
        %v1074 = vshll.u32 %v924, 16
        %v1076 = vrot.slane %v1074, 5
        %v1077 = vsel %vm967, %v1072, %v1076
        %v1078 = vshrl.u32 %v924, 16
        %v1080 = vrot.slane %v1078, 4
        %v1081 = vor.u32 %v1080, %v1076
        %v1082 = vrot.slane %v1081, 4
        %v1084 = vshll.u32 %v925, 16
        %v1086 = vrot.slane %v1084, 5
        %v1087 = vsel %vm967, %v1082, %v1086
        %v1089 = vshrl.u32 %v926, 16
        %v1091 = vrot.slane %v1089, 4
        %v1092 = vshll.u32 %v926, 16
        %v1094 = vrot.slane %v1092, 5
        %v1095 = vor.u32 %v1091, %v1094
        %v1096 = vrot.slane %v1095, 4
        %v1098 = vshll.u32 %v927, 16
        %v1100 = vrot.slane %v1098, 5
        %v1101 = vsel %vm967, %v1096, %v1100
        %v1102 = vshrl.u32 %v927, 16
        %v1104 = vrot.slane %v1102, 4
        %v1105 = vor.u32 %v1104, %v1100
        %v1106 = vrot.slane %v1105, 4
        %v1108 = vshll.u32 %v928, 16
        %v1110 = vrot.slane %v1108, 5
        %v1111 = vsel %vm967, %v1106, %v1110
        %v1113 = vshrl.u32 %v929, 16
        %v1115 = vrot.slane %v1113, 4
        %v1116 = vshll.u32 %v929, 16
        %v1118 = vrot.slane %v1116, 5
        %v1119 = vor.u32 %v1115, %v1118
        %v1120 = vrot.slane %v1119, 4
        %v1122 = vshll.u32 %v930, 16
        %v1124 = vrot.slane %v1122, 5
        %v1125 = vsel %vm967, %v1120, %v1124
        %v1126 = vshrl.u32 %v930, 16
        %v1128 = vrot.slane %v1126, 4
        %v1129 = vor.u32 %v1128, %v1124
        %v1130 = vrot.slane %v1129, 4
        %v1132 = vshll.u32 %v931, 16
        %v1134 = vrot.slane %v1132, 5
        %v1135 = vsel %vm967, %v1130, %v1134
        %v1137 = vshrl.u32 %v932, 16
        %v1139 = vrot.slane %v1137, 4
        %v1140 = vshll.u32 %v932, 16
        %v1142 = vrot.slane %v1140, 5
        %v1143 = vor.u32 %v1139, %v1142
        %v1144 = vrot.slane %v1143, 4
        %v1146 = vshll.u32 %v933, 16
        %v1148 = vrot.slane %v1146, 5
        %v1149 = vsel %vm967, %v1144, %v1148
        %v1150 = vshrl.u32 %v933, 16
        %v1152 = vrot.slane %v1150, 4
        %v1153 = vor.u32 %v1152, %v1148
        %v1154 = vrot.slane %v1153, 4
        %v1156 = vshll.u32 %v934, 16
        %v1158 = vrot.slane %v1156, 5
        %v1159 = vsel %vm967, %v1154, %v1158
        %v1161 = vshrl.u32 %v935, 16
        %v1163 = vrot.slane %v1161, 4
        %v1164 = vshll.u32 %v935, 16
        %v1166 = vrot.slane %v1164, 5
        %v1167 = vor.u32 %v1163, %v1166
        %v1168 = vrot.slane %v1167, 4
        %v1170 = vshll.u32 %v936, 16
        %v1172 = vrot.slane %v1170, 5
        %v1173 = vsel %vm967, %v1168, %v1172
        %v1174 = vshrl.u32 %v936, 16
        %v1176 = vrot.slane %v1174, 4
        %v1177 = vor.u32 %v1176, %v1172
        %v1178 = vrot.slane %v1177, 4
        %v1180 = vshll.u32 %v937, 16
        %v1182 = vrot.slane %v1180, 5
        %v1183 = vsel %vm967, %v1178, %v1182
        %v1185 = vshrl.u32 %v938, 16
        %v1187 = vrot.slane %v1185, 4
        %v1188 = vshll.u32 %v938, 16
        %v1190 = vrot.slane %v1188, 5
        %v1191 = vor.u32 %v1187, %v1190
        %v1192 = vrot.slane %v1191, 4
        %v1194 = vshll.u32 %v939, 16
        %v1196 = vrot.slane %v1194, 5
        %v1197 = vsel %vm967, %v1192, %v1196
        %v1198 = vshrl.u32 %v939, 16
        %v1200 = vrot.slane %v1198, 4
        %v1201 = vor.u32 %v1200, %v1196
        %v1202 = vrot.slane %v1201, 4
        %v1204 = vshll.u32 %v940, 16
        %v1206 = vrot.slane %v1204, 5
        %v1207 = vsel %vm967, %v1202, %v1206
        %v1209 = vshrl.u32 %v941, 16
        %v1211 = vrot.slane %v1209, 4
        %v1212 = vshll.u32 %v941, 16
        %v1214 = vrot.slane %v1212, 5
        %v1215 = vor.u32 %v1211, %v1214
        %v1216 = vrot.slane %v1215, 4
        %v1218 = vshll.u32 %v942, 16
        %v1220 = vrot.slane %v1218, 5
        %v1221 = vsel %vm967, %v1216, %v1220
        %v1222 = vshrl.u32 %v942, 16
        %v1224 = vrot.slane %v1222, 4
        %v1225 = vor.u32 %v1224, %v1220
        %v1226 = vrot.slane %v1225, 4
        %v1228 = vshll.u32 %v943, 16
        %v1230 = vrot.slane %v1228, 5
        %v1231 = vsel %vm967, %v1226, %v1230
        %v1233 = vshrl.u32 %v944, 16
        %v1235 = vrot.slane %v1233, 4
        %v1236 = vshll.u32 %v944, 16
        %v1238 = vrot.slane %v1236, 5
        %v1239 = vor.u32 %v1235, %v1238
        %v1240 = vrot.slane %v1239, 4
        %v1242 = vshll.u32 %v945, 16
        %v1244 = vrot.slane %v1242, 5
        %v1245 = vsel %vm967, %v1240, %v1244
        %v1246 = vshrl.u32 %v945, 16
        %v1248 = vrot.slane %v1246, 4
        %v1249 = vor.u32 %v1248, %v1244
        %v1250 = vrot.slane %v1249, 4
        %v1252 = vshll.u32 %v946, 16
        %v1254 = vrot.slane %v1252, 5
        %v1255 = vsel %vm967, %v1250, %v1254
        %v1257 = vshrl.u32 %v947, 16
        %v1259 = vrot.slane %v1257, 4
        %v1260 = vshll.u32 %v947, 16
        %v1262 = vrot.slane %v1260, 5
        %v1263 = vor.u32 %v1259, %v1262
        %v1264 = vrot.slane %v1263, 4
        %v1266 = vshll.u32 %v948, 16
        %v1268 = vrot.slane %v1266, 5
        %v1269 = vsel %vm967, %v1264, %v1268
        %v1270 = vshrl.u32 %v948, 16
        %v1272 = vrot.slane %v1270, 4
        %v1273 = vor.u32 %v1272, %v1268
        %v1274 = vrot.slane %v1273, 4
        %v1276 = vshll.u32 %v949, 16
        %v1278 = vrot.slane %v1276, 5
        %v1279 = vsel %vm967, %v1274, %v1278
        %v1281 = vshrl.u32 %v950, 16
        %v1283 = vrot.slane %v1281, 4
        %v1284 = vshll.u32 %v950, 16
        %v1286 = vrot.slane %v1284, 5
        %v1287 = vor.u32 %v1283, %v1286
        %v1288 = vrot.slane %v1287, 4
        %v1290 = vshll.u32 %v951, 16
        %v1292 = vrot.slane %v1290, 5
        %v1293 = vsel %vm967, %v1288, %v1292
        %v1294 = vshrl.u32 %v951, 16
        %v1296 = vrot.slane %v1294, 4
        %v1297 = vor.u32 %v1296, %v1292
        %v1298 = vrot.slane %v1297, 4
        %v1300 = vshll.u32 %v952, 16
        %v1302 = vrot.slane %v1300, 5
        %v1303 = vsel %vm967, %v1298, %v1302
        %v1305 = vshrl.u32 %v953, 16
        %v1307 = vrot.slane %v1305, 4
        %v1308 = vshll.u32 %v953, 16
        %v1310 = vrot.slane %v1308, 5
        %v1311 = vor.u32 %v1307, %v1310
        %v1312 = vrot.slane %v1311, 4
        %v1314 = vshll.u32 %v954, 16
        %v1316 = vrot.slane %v1314, 5
        %v1317 = vsel %vm967, %v1312, %v1316
        %v1318 = vshrl.u32 %v954, 16
        %v1320 = vrot.slane %v1318, 4
        %v1321 = vor.u32 %v1320, %v1316
        %v1322 = vrot.slane %v1321, 4
        %v1324 = vshll.u32 %v955, 16
        %v1326 = vrot.slane %v1324, 5
        %v1327 = vsel %vm967, %v1322, %v1326
        %v1329 = vshrl.u32 %v956, 16
        %v1331 = vrot.slane %v1329, 4
        %v1332 = vshll.u32 %v956, 16
        %v1334 = vrot.slane %v1332, 5
        %v1335 = vor.u32 %v1331, %v1334
        %v1336 = vrot.slane %v1335, 4
        %v1338 = vshll.u32 %v957, 16
        %v1340 = vrot.slane %v1338, 5
        %v1341 = vsel %vm967, %v1336, %v1340
        %v1342 = vshrl.u32 %v957, 16
        %v1344 = vrot.slane %v1342, 4
        %v1345 = vor.u32 %v1344, %v1340
        %v1346 = vrot.slane %v1345, 4
        %v1348 = vshll.u32 %v958, 16
        %v1350 = vrot.slane %v1348, 5
        %v1351 = vsel %vm967, %v1346, %v1350
        %v1353 = vshrl.u32 %v959, 16
        %v1355 = vrot.slane %v1353, 4
        %v1356 = vshll.u32 %v959, 16
        %v1358 = vrot.slane %v1356, 5
        %v1359 = vor.u32 %v1355, %v1358
        %v1360 = vrot.slane %v1359, 4
        %v1362 = vshll.u32 %v960, 16
        %v1364 = vrot.slane %v1362, 5
        %v1365 = vsel %vm967, %v1360, %v1364
        %v1366 = vshrl.u32 %v960, 16
        %v1368 = vrot.slane %v1366, 4
        %v1369 = vor.u32 %v1368, %v1364
        %v1370 = vrot.slane %v1369, 4
        %v1372 = vshll.u32 %v961, 16
        %v1374 = vrot.slane %v1372, 5
        %v1375 = vsel %vm967, %v1370, %v1374
        %v1377 = vshrl.u32 %v962, 16
        %v1379 = vrot.slane %v1377, 4
        %v1380 = vshll.u32 %v962, 16
        %v1382 = vrot.slane %v1380, 5
        %v1383 = vor.u32 %v1379, %v1382
        %v1384 = vrot.slane %v1383, 4
        %v1386 = vshll.u32 %v963, 16
        %v1388 = vrot.slane %v1386, 5
        %v1389 = vsel %vm967, %v1384, %v1388
        %v1390 = vshrl.u32 %v963, 16
        %v1392 = vrot.slane %v1390, 4
        %v1393 = vor.u32 %v1392, %v1388
        %v1394 = vrot.slane %v1393, 4
        %v1396 = vshll.u32 %v964, 16
        %v1398 = vrot.slane %v1396, 5
        %v1399 = vsel %vm967, %v1394, %v1398
        %1436 = vst [vmem:[#allocation3 + $0x4] sm:$0xf] %v981
        %1437 = vst [vmem:[#allocation3 + $0x10] sm:$0xf] %v991
        %1438 = vst [vmem:[#allocation3 + $0x1c] sm:$0xf] %v1005
        %1439 = vst [vmem:[#allocation3 + $0x28] sm:$0xf] %v1015
        %1440 = vst [vmem:[#allocation3 + $0x34] sm:$0xf] %v1029
        %1441 = vst [vmem:[#allocation3 + $0x40] sm:$0xf] %v1039
        %1442 = vst [vmem:[#allocation3 + $0x4c] sm:$0xf] %v1053
        %1443 = vst [vmem:[#allocation3 + $0x58] sm:$0xf] %v1063
        %1444 = vst [vmem:[#allocation3 + $0x64] sm:$0xf] %v1077
        %1445 = vst [vmem:[#allocation3 + $0x70] sm:$0xf] %v1087
        %1446 = vst [vmem:[#allocation3 + $0x7c] sm:$0xf] %v1101
        %1447 = vst [vmem:[#allocation3 + $0x88] sm:$0xf] %v1111
        %1448 = vst [vmem:[#allocation3 + $0x94] sm:$0xf] %v1125
        %1449 = vst [vmem:[#allocation3 + $0xa0] sm:$0xf] %v1135
        %1450 = vst [vmem:[#allocation3 + $0xac] sm:$0xf] %v1149
        %1451 = vst [vmem:[#allocation3 + $0xb8] sm:$0xf] %v1159
        %1452 = vst [vmem:[#allocation3 + $0xc4] sm:$0xf] %v1173
        %1453 = vst [vmem:[#allocation3 + $0xd0] sm:$0xf] %v1183
        %1454 = vst [vmem:[#allocation3 + $0xdc] sm:$0xf] %v1197
        %1455 = vst [vmem:[#allocation3 + $0xe8] sm:$0xf] %v1207
        %1456 = vst [vmem:[#allocation3 + $0xf4] sm:$0xf] %v1221
        %1457 = vst [vmem:[#allocation3 + $0x100] sm:$0xf] %v1231
        %1458 = vst [vmem:[#allocation3 + $0x10c] sm:$0xf] %v1245
        %1459 = vst [vmem:[#allocation3 + $0x118] sm:$0xf] %v1255
        %1460 = vst [vmem:[#allocation3 + $0x124] sm:$0xf] %v1269
        %1461 = vst [vmem:[#allocation3 + $0x130] sm:$0xf] %v1279
        %1462 = vst [vmem:[#allocation3 + $0x13c] sm:$0xf] %v1293
        %1463 = vst [vmem:[#allocation3 + $0x148] sm:$0xf] %v1303
        %1464 = vst [vmem:[#allocation3 + $0x154] sm:$0xf] %v1317
        %1465 = vst [vmem:[#allocation3 + $0x160] sm:$0xf] %v1327
        %1466 = vst [vmem:[#allocation3 + $0x16c] sm:$0xf] %v1341
        %1467 = vst [vmem:[#allocation3 + $0x178] sm:$0xf] %v1351
        %1468 = vst [vmem:[#allocation3 + $0x184] sm:$0xf] %v1365
        %1469 = vst [vmem:[#allocation3 + $0x190] sm:$0xf] %v1375
        %1470 = vst [vmem:[#allocation3 + $0x19c] sm:$0xf] %v1389
        %1471 = vst [vmem:[#allocation3 + $0x1a8] sm:$0xf] %v1399
        %v1472 = vld [vmem:[#allocation2] sm:$0xe]
        %v1473 = vld [vmem:[#allocation2 + $0x4] sm:$0xf]
        %v1474 = vld [vmem:[#allocation2 + $0x8] sm:$0x1]
        %v1475 = vld [vmem:[#allocation2 + $0xc] sm:$0xe]
        %v1476 = vld [vmem:[#allocation2 + $0x10] sm:$0xf]
        %v1477 = vld [vmem:[#allocation2 + $0x14] sm:$0x1]
        %v1478 = vld [vmem:[#allocation2 + $0x18] sm:$0xe]
        %v1479 = vld [vmem:[#allocation2 + $0x1c] sm:$0xf]
        %v1480 = vld [vmem:[#allocation2 + $0x20] sm:$0x1]
        %v1481 = vld [vmem:[#allocation2 + $0x24] sm:$0xe]
        %v1482 = vld [vmem:[#allocation2 + $0x28] sm:$0xf]
        %v1483 = vld [vmem:[#allocation2 + $0x2c] sm:$0x1]
        %v1484 = vld [vmem:[#allocation2 + $0x30] sm:$0xe]
        %v1485 = vld [vmem:[#allocation2 + $0x34] sm:$0xf]
        %v1486 = vld [vmem:[#allocation2 + $0x38] sm:$0x1]
        %v1487 = vld [vmem:[#allocation2 + $0x3c] sm:$0xe]
        %v1488 = vld [vmem:[#allocation2 + $0x40] sm:$0xf]
        %v1489 = vld [vmem:[#allocation2 + $0x44] sm:$0x1]
        %v1490 = vld [vmem:[#allocation2 + $0x48] sm:$0xe]
        %v1491 = vld [vmem:[#allocation2 + $0x4c] sm:$0xf]
        %v1492 = vld [vmem:[#allocation2 + $0x50] sm:$0x1]
        %v1493 = vld [vmem:[#allocation2 + $0x54] sm:$0xe]
        %v1494 = vld [vmem:[#allocation2 + $0x58] sm:$0xf]
        %v1495 = vld [vmem:[#allocation2 + $0x5c] sm:$0x1]
        %v1496 = vld [vmem:[#allocation2 + $0x60] sm:$0xe]
        %v1497 = vld [vmem:[#allocation2 + $0x64] sm:$0xf]
        %v1498 = vld [vmem:[#allocation2 + $0x68] sm:$0x1]
        %v1499 = vld [vmem:[#allocation2 + $0x6c] sm:$0xe]
        %v1500 = vld [vmem:[#allocation2 + $0x70] sm:$0xf]
        %v1501 = vld [vmem:[#allocation2 + $0x74] sm:$0x1]
        %v1502 = vld [vmem:[#allocation2 + $0x78] sm:$0xe]
        %v1503 = vld [vmem:[#allocation2 + $0x7c] sm:$0xf]
        %v1504 = vld [vmem:[#allocation2 + $0x80] sm:$0x1]
        %v1505 = vld [vmem:[#allocation2 + $0x84] sm:$0xe]
        %v1506 = vld [vmem:[#allocation2 + $0x88] sm:$0xf]
        %v1507 = vld [vmem:[#allocation2 + $0x8c] sm:$0x1]
        %v1508 = vld [vmem:[#allocation2 + $0x90] sm:$0xe]
        %v1509 = vld [vmem:[#allocation2 + $0x94] sm:$0xf]
        %v1510 = vld [vmem:[#allocation2 + $0x98] sm:$0x1]
        %v1511 = vld [vmem:[#allocation2 + $0x9c] sm:$0xe]
        %v1512 = vld [vmem:[#allocation2 + $0xa0] sm:$0xf]
        %v1513 = vld [vmem:[#allocation2 + $0xa4] sm:$0x1]
        %v1514 = vld [vmem:[#allocation2 + $0xa8] sm:$0xe]
        %v1515 = vld [vmem:[#allocation2 + $0xac] sm:$0xf]
        %v1516 = vld [vmem:[#allocation2 + $0xb0] sm:$0x1]
        %v1517 = vld [vmem:[#allocation2 + $0xb4] sm:$0xe]
        %v1518 = vld [vmem:[#allocation2 + $0xb8] sm:$0xf]
        %v1519 = vld [vmem:[#allocation2 + $0xbc] sm:$0x1]
        %v1520 = vld [vmem:[#allocation2 + $0xc0] sm:$0xe]
        %v1521 = vld [vmem:[#allocation2 + $0xc4] sm:$0xf]
        %v1522 = vld [vmem:[#allocation2 + $0xc8] sm:$0x1]
        %v1523 = vld [vmem:[#allocation2 + $0xcc] sm:$0xe]
        %v1524 = vld [vmem:[#allocation2 + $0xd0] sm:$0xf]
        %v1525 = vld [vmem:[#allocation2 + $0xd4] sm:$0x1]
        %vm1580 = vcmask 1042432
        %vm1581 = vcmask 1046532
        %vm1582 = vmor %vm1580, %vm1581
        %v1583 = vrot.slane %v1472, 5
        %v1584 = vrot.slane %v1583, 4
        %v1585 = vrot.slane %v1473, 5
        %v1586 = vsel %vm1582, %v1584, %v1585
        %v1587 = vrot.slane %v1585, 4
        %v1588 = vrot.slane %v1474, 5
        %v1589 = vsel %vm1582, %v1587, %v1588
        %v1590 = vrot.slane %v1475, 5
        %v1591 = vrot.slane %v1590, 4
        %v1592 = vrot.slane %v1476, 5
        %v1593 = vsel %vm1582, %v1591, %v1592
        %v1594 = vrot.slane %v1592, 4
        %v1595 = vrot.slane %v1477, 5
        %v1596 = vsel %vm1582, %v1594, %v1595
        %v1597 = vrot.slane %v1478, 5
        %v1598 = vrot.slane %v1597, 4
        %v1599 = vrot.slane %v1479, 5
        %v1600 = vsel %vm1582, %v1598, %v1599
        %v1601 = vrot.slane %v1599, 4
        %v1602 = vrot.slane %v1480, 5
        %v1603 = vsel %vm1582, %v1601, %v1602
        %v1604 = vrot.slane %v1481, 5
        %v1605 = vrot.slane %v1604, 4
        %v1606 = vrot.slane %v1482, 5
        %v1607 = vsel %vm1582, %v1605, %v1606
        %v1608 = vrot.slane %v1606, 4
        %v1609 = vrot.slane %v1483, 5
        %v1610 = vsel %vm1582, %v1608, %v1609
        %v1611 = vrot.slane %v1484, 5
        %v1612 = vrot.slane %v1611, 4
        %v1613 = vrot.slane %v1485, 5
        %v1614 = vsel %vm1582, %v1612, %v1613
        %v1615 = vrot.slane %v1613, 4
        %v1616 = vrot.slane %v1486, 5
        %v1617 = vsel %vm1582, %v1615, %v1616
        %v1618 = vrot.slane %v1487, 5
        %v1619 = vrot.slane %v1618, 4
        %v1620 = vrot.slane %v1488, 5
        %v1621 = vsel %vm1582, %v1619, %v1620
        %v1622 = vrot.slane %v1620, 4
        %v1623 = vrot.slane %v1489, 5
        %v1624 = vsel %vm1582, %v1622, %v1623
        %v1625 = vrot.slane %v1490, 5
        %v1626 = vrot.slane %v1625, 4
        %v1627 = vrot.slane %v1491, 5
        %v1628 = vsel %vm1582, %v1626, %v1627
        %v1629 = vrot.slane %v1627, 4
        %v1630 = vrot.slane %v1492, 5
        %v1631 = vsel %vm1582, %v1629, %v1630
        %v1632 = vrot.slane %v1493, 5
        %v1633 = vrot.slane %v1632, 4
        %v1634 = vrot.slane %v1494, 5
        %v1635 = vsel %vm1582, %v1633, %v1634
        %v1636 = vrot.slane %v1634, 4
        %v1637 = vrot.slane %v1495, 5
        %v1638 = vsel %vm1582, %v1636, %v1637
        %v1639 = vrot.slane %v1496, 5
        %v1640 = vrot.slane %v1639, 4
        %v1641 = vrot.slane %v1497, 5
        %v1642 = vsel %vm1582, %v1640, %v1641
        %v1643 = vrot.slane %v1641, 4
        %v1644 = vrot.slane %v1498, 5
        %v1645 = vsel %vm1582, %v1643, %v1644
        %v1646 = vrot.slane %v1499, 5
        %v1647 = vrot.slane %v1646, 4
        %v1648 = vrot.slane %v1500, 5
        %v1649 = vsel %vm1582, %v1647, %v1648
        %v1650 = vrot.slane %v1648, 4
        %v1651 = vrot.slane %v1501, 5
        %v1652 = vsel %vm1582, %v1650, %v1651
        %v1653 = vrot.slane %v1502, 5
        %v1654 = vrot.slane %v1653, 4
        %v1655 = vrot.slane %v1503, 5
        %v1656 = vsel %vm1582, %v1654, %v1655
        %v1657 = vrot.slane %v1655, 4
        %v1658 = vrot.slane %v1504, 5
        %v1659 = vsel %vm1582, %v1657, %v1658
        %v1660 = vrot.slane %v1505, 5
        %v1661 = vrot.slane %v1660, 4
        %v1662 = vrot.slane %v1506, 5
        %v1663 = vsel %vm1582, %v1661, %v1662
        %v1664 = vrot.slane %v1662, 4
        %v1665 = vrot.slane %v1507, 5
        %v1666 = vsel %vm1582, %v1664, %v1665
        %v1667 = vrot.slane %v1508, 5
        %v1668 = vrot.slane %v1667, 4
        %v1669 = vrot.slane %v1509, 5
        %v1670 = vsel %vm1582, %v1668, %v1669
        %v1671 = vrot.slane %v1669, 4
        %v1672 = vrot.slane %v1510, 5
        %v1673 = vsel %vm1582, %v1671, %v1672
        %v1674 = vrot.slane %v1511, 5
        %v1675 = vrot.slane %v1674, 4
        %v1676 = vrot.slane %v1512, 5
        %v1677 = vsel %vm1582, %v1675, %v1676
        %v1678 = vrot.slane %v1676, 4
        %v1679 = vrot.slane %v1513, 5
        %v1680 = vsel %vm1582, %v1678, %v1679
        %v1681 = vrot.slane %v1514, 5
        %v1682 = vrot.slane %v1681, 4
        %v1683 = vrot.slane %v1515, 5
        %v1684 = vsel %vm1582, %v1682, %v1683
        %v1685 = vrot.slane %v1683, 4
        %v1686 = vrot.slane %v1516, 5
        %v1687 = vsel %vm1582, %v1685, %v1686
        %v1688 = vrot.slane %v1517, 5
        %v1689 = vrot.slane %v1688, 4
        %v1690 = vrot.slane %v1518, 5
        %v1691 = vsel %vm1582, %v1689, %v1690
        %v1692 = vrot.slane %v1690, 4
        %v1693 = vrot.slane %v1519, 5
        %v1694 = vsel %vm1582, %v1692, %v1693
        %v1695 = vrot.slane %v1520, 5
        %v1696 = vrot.slane %v1695, 4
        %v1697 = vrot.slane %v1521, 5
        %v1698 = vsel %vm1582, %v1696, %v1697
        %v1699 = vrot.slane %v1697, 4
        %v1700 = vrot.slane %v1522, 5
        %v1701 = vsel %vm1582, %v1699, %v1700
        %v1702 = vrot.slane %v1523, 5
        %v1703 = vrot.slane %v1702, 4
        %v1704 = vrot.slane %v1524, 5
        %v1705 = vsel %vm1582, %v1703, %v1704
        %v1706 = vrot.slane %v1704, 4
        %v1707 = vrot.slane %v1525, 5
        %v1708 = vsel %vm1582, %v1706, %v1707
        %1745 = vst [vmem:[#allocation3 + $0x8] sm:$0xf] %v1586
        %1746 = vst [vmem:[#allocation3 + $0x14] sm:$0xf] %v1589
        %1747 = vst [vmem:[#allocation3 + $0x20] sm:$0xf] %v1593
        %1748 = vst [vmem:[#allocation3 + $0x2c] sm:$0xf] %v1596
        %1749 = vst [vmem:[#allocation3 + $0x38] sm:$0xf] %v1600
        %1750 = vst [vmem:[#allocation3 + $0x44] sm:$0xf] %v1603
        %1751 = vst [vmem:[#allocation3 + $0x50] sm:$0xf] %v1607
        %1752 = vst [vmem:[#allocation3 + $0x5c] sm:$0xf] %v1610
        %1753 = vst [vmem:[#allocation3 + $0x68] sm:$0xf] %v1614
        %1754 = vst [vmem:[#allocation3 + $0x74] sm:$0xf] %v1617
        %1755 = vst [vmem:[#allocation3 + $0x80] sm:$0xf] %v1621
        %1756 = vst [vmem:[#allocation3 + $0x8c] sm:$0xf] %v1624
        %1757 = vst [vmem:[#allocation3 + $0x98] sm:$0xf] %v1628
        %1758 = vst [vmem:[#allocation3 + $0xa4] sm:$0xf] %v1631
        %1759 = vst [vmem:[#allocation3 + $0xb0] sm:$0xf] %v1635
        %1760 = vst [vmem:[#allocation3 + $0xbc] sm:$0xf] %v1638
        %1761 = vst [vmem:[#allocation3 + $0xc8] sm:$0xf] %v1642
        %1762 = vst [vmem:[#allocation3 + $0xd4] sm:$0xf] %v1645
        %1763 = vst [vmem:[#allocation3 + $0xe0] sm:$0xf] %v1649
        %1764 = vst [vmem:[#allocation3 + $0xec] sm:$0xf] %v1652
        %1765 = vst [vmem:[#allocation3 + $0xf8] sm:$0xf] %v1656
        %1766 = vst [vmem:[#allocation3 + $0x104] sm:$0xf] %v1659
        %1767 = vst [vmem:[#allocation3 + $0x110] sm:$0xf] %v1663
        %1768 = vst [vmem:[#allocation3 + $0x11c] sm:$0xf] %v1666
        %1769 = vst [vmem:[#allocation3 + $0x128] sm:$0xf] %v1670
        %1770 = vst [vmem:[#allocation3 + $0x134] sm:$0xf] %v1673
        %1771 = vst [vmem:[#allocation3 + $0x140] sm:$0xf] %v1677
        %1772 = vst [vmem:[#allocation3 + $0x14c] sm:$0xf] %v1680
        %1773 = vst [vmem:[#allocation3 + $0x158] sm:$0xf] %v1684
        %1774 = vst [vmem:[#allocation3 + $0x164] sm:$0xf] %v1687
        %1775 = vst [vmem:[#allocation3 + $0x170] sm:$0xf] %v1691
        %1776 = vst [vmem:[#allocation3 + $0x17c] sm:$0xf] %v1694
        %1777 = vst [vmem:[#allocation3 + $0x188] sm:$0xf] %v1698
        %1778 = vst [vmem:[#allocation3 + $0x194] sm:$0xf] %v1701
        %1779 = vst [vmem:[#allocation3 + $0x1a0] sm:$0xf] %v1705
        %1780 = vst [vmem:[#allocation3 + $0x1ac] sm:$0xf] %v1708
        %v1781 = vld [vmem:[#allocation3] sm:$0xff]
        %v1782 = vld [vmem:[#allocation3 + $0x8] sm:$0xf]
        %v1783 = vld [vmem:[#allocation3 + $0xc] sm:$0xff]
        %v1784 = vld [vmem:[#allocation3 + $0x14] sm:$0xf]
        %v1785 = vld [vmem:[#allocation3 + $0x18] sm:$0xff]
        %v1786 = vld [vmem:[#allocation3 + $0x20] sm:$0xf]
        %v1787 = vld [vmem:[#allocation3 + $0x24] sm:$0xff]
        %v1788 = vld [vmem:[#allocation3 + $0x2c] sm:$0xf]
        %v1789 = vld [vmem:[#allocation3 + $0x30] sm:$0xff]
        %v1790 = vld [vmem:[#allocation3 + $0x38] sm:$0xf]
        %v1791 = vld [vmem:[#allocation3 + $0x3c] sm:$0xff]
        %v1792 = vld [vmem:[#allocation3 + $0x44] sm:$0xf]
        %v1793 = vld [vmem:[#allocation3 + $0x48] sm:$0xff]
        %v1794 = vld [vmem:[#allocation3 + $0x50] sm:$0xf]
        %v1795 = vld [vmem:[#allocation3 + $0x54] sm:$0xff]
        %v1796 = vld [vmem:[#allocation3 + $0x5c] sm:$0xf]
        %v1797 = vld [vmem:[#allocation3 + $0x60] sm:$0xff]
        %v1798 = vld [vmem:[#allocation3 + $0x68] sm:$0xf]
        %v1799 = vld [vmem:[#allocation3 + $0x6c] sm:$0xff]
        %v1800 = vld [vmem:[#allocation3 + $0x74] sm:$0xf]
        %v1801 = vld [vmem:[#allocation3 + $0x78] sm:$0xff]
        %v1802 = vld [vmem:[#allocation3 + $0x80] sm:$0xf]
        %v1803 = vld [vmem:[#allocation3 + $0x84] sm:$0xff]
        %v1804 = vld [vmem:[#allocation3 + $0x8c] sm:$0xf]
        %v1805 = vld [vmem:[#allocation3 + $0x90] sm:$0xff]
        %v1806 = vld [vmem:[#allocation3 + $0x98] sm:$0xf]
        %v1807 = vld [vmem:[#allocation3 + $0x9c] sm:$0xff]
        %v1808 = vld [vmem:[#allocation3 + $0xa4] sm:$0xf]
        %v1809 = vld [vmem:[#allocation3 + $0xa8] sm:$0xff]
        %v1810 = vld [vmem:[#allocation3 + $0xb0] sm:$0xf]
        %v1811 = vld [vmem:[#allocation3 + $0xb4] sm:$0xff]
        %v1812 = vld [vmem:[#allocation3 + $0xbc] sm:$0xf]
        %v1813 = vld [vmem:[#allocation3 + $0xc0] sm:$0xff]
        %v1814 = vld [vmem:[#allocation3 + $0xc8] sm:$0xf]
        %v1815 = vld [vmem:[#allocation3 + $0xcc] sm:$0xff]
        %v1816 = vld [vmem:[#allocation3 + $0xd4] sm:$0xf]
        %v1817 = vld [vmem:[#allocation3 + $0xd8] sm:$0xff]
        %v1818 = vld [vmem:[#allocation3 + $0xe0] sm:$0xf]
        %v1819 = vld [vmem:[#allocation3 + $0xe4] sm:$0xff]
        %v1820 = vld [vmem:[#allocation3 + $0xec] sm:$0xf]
        %v1821 = vld [vmem:[#allocation3 + $0xf0] sm:$0xff]
        %v1822 = vld [vmem:[#allocation3 + $0xf8] sm:$0xf]
        %v1823 = vld [vmem:[#allocation3 + $0xfc] sm:$0xff]
        %v1824 = vld [vmem:[#allocation3 + $0x104] sm:$0xf]
        %v1825 = vld [vmem:[#allocation3 + $0x108] sm:$0xff]
        %v1826 = vld [vmem:[#allocation3 + $0x110] sm:$0xf]
        %v1827 = vld [vmem:[#allocation3 + $0x114] sm:$0xff]
        %v1828 = vld [vmem:[#allocation3 + $0x11c] sm:$0xf]
        %v1829 = vld [vmem:[#allocation3 + $0x120] sm:$0xff]
        %v1830 = vld [vmem:[#allocation3 + $0x128] sm:$0xf]
        %v1831 = vld [vmem:[#allocation3 + $0x12c] sm:$0xff]
        %v1832 = vld [vmem:[#allocation3 + $0x134] sm:$0xf]
        %v1833 = vld [vmem:[#allocation3 + $0x138] sm:$0xff]
        %v1834 = vld [vmem:[#allocation3 + $0x140] sm:$0xf]
        %v1835 = vld [vmem:[#allocation3 + $0x144] sm:$0xff]
        %v1836 = vld [vmem:[#allocation3 + $0x14c] sm:$0xf]
        %v1837 = vld [vmem:[#allocation3 + $0x150] sm:$0xff]
        %v1838 = vld [vmem:[#allocation3 + $0x158] sm:$0xf]
        %v1839 = vld [vmem:[#allocation3 + $0x15c] sm:$0xff]
        %v1840 = vld [vmem:[#allocation3 + $0x164] sm:$0xf]
        %v1841 = vld [vmem:[#allocation3 + $0x168] sm:$0xff]
        %v1842 = vld [vmem:[#allocation3 + $0x170] sm:$0xf]
        %v1843 = vld [vmem:[#allocation3 + $0x174] sm:$0xff]
        %v1844 = vld [vmem:[#allocation3 + $0x17c] sm:$0xf]
        %v1845 = vld [vmem:[#allocation8] sm:$0xf]
        %v1846 = vld [vmem:[#allocation8 + $0x4] sm:$0xf]
        %v1847 = vld [vmem:[#allocation8 + $0x8] sm:$0xf]
        %v1848 = vld [vmem:[#allocation8 + $0xc] sm:$0xf]
        %v1849 = vld [vmem:[#allocation8 + $0x10] sm:$0xf]
        %v1850 = vld [vmem:[#allocation8 + $0x14] sm:$0xf]
        %v1851 = vld [vmem:[#allocation8 + $0x18] sm:$0xf]
        %v1852 = vld [vmem:[#allocation8 + $0x1c] sm:$0xf]
        %v1853 = vld [vmem:[#allocation8 + $0x20] sm:$0xf]
        %v1854 = vld [vmem:[#allocation8 + $0x24] sm:$0xf]
        %v1855 = vld [vmem:[#allocation8 + $0x28] sm:$0xf]
        %v1856 = vld [vmem:[#allocation8 + $0x2c] sm:$0xf]
        %v1857 = vld [vmem:[#allocation8 + $0x30] sm:$0xf]
        %v1858 = vld [vmem:[#allocation8 + $0x34] sm:$0xf]
        %v1859 = vld [vmem:[#allocation8 + $0x38] sm:$0xf]
        %v1860 = vld [vmem:[#allocation8 + $0x3c] sm:$0xf]
        %v1861 = vld [vmem:[#allocation8 + $0x40] sm:$0xf]
        %v1862 = vld [vmem:[#allocation8 + $0x44] sm:$0xf]
        %v1863 = vld [vmem:[#allocation8 + $0x48] sm:$0xf]
        %v1864 = vld [vmem:[#allocation8 + $0x4c] sm:$0xf]
        %v1865 = vld [vmem:[#allocation8 + $0x50] sm:$0xf]
        %v1866 = vld [vmem:[#allocation8 + $0x54] sm:$0xf]
        %v1867 = vld [vmem:[#allocation8 + $0x58] sm:$0xf]
        %v1868 = vld [vmem:[#allocation8 + $0x5c] sm:$0xf]
        %v1869 = vld [vmem:[#allocation8 + $0x60] sm:$0xf]
        %v1870 = vld [vmem:[#allocation8 + $0x64] sm:$0xf]
        %v1871 = vld [vmem:[#allocation8 + $0x68] sm:$0xf]
        %v1872 = vld [vmem:[#allocation8 + $0x6c] sm:$0xf]
        %v1873 = vld [vmem:[#allocation8 + $0x70] sm:$0xf]
        %v1874 = vld [vmem:[#allocation8 + $0x74] sm:$0xf]
        %v1875 = vld [vmem:[#allocation8 + $0x78] sm:$0xf]
        %v1876 = vld [vmem:[#allocation8 + $0x7c] sm:$0xf]
        %v1877 = vld [vmem:[#allocation8 + $0x80] sm:$0xf]
        %v1878 = vld [vmem:[#allocation8 + $0x84] sm:$0xf]
        %v1879 = vld [vmem:[#allocation8 + $0x88] sm:$0xf]
        %v1880 = vld [vmem:[#allocation8 + $0x8c] sm:$0xf]
        %v1881 = vld [vmem:[#allocation8 + $0x90] sm:$0xf]
        %v1882 = vld [vmem:[#allocation8 + $0x94] sm:$0xf]
        %v1883 = vld [vmem:[#allocation8 + $0x98] sm:$0xf]
        %v1884 = vld [vmem:[#allocation8 + $0x9c] sm:$0xf]
        %v1885 = vld [vmem:[#allocation8 + $0xa0] sm:$0xf]
        %v1886 = vld [vmem:[#allocation8 + $0xa4] sm:$0xf]
        %v1887 = vld [vmem:[#allocation8 + $0xa8] sm:$0xf]
        %v1888 = vld [vmem:[#allocation8 + $0xac] sm:$0xf]
        %v1889 = vld [vmem:[#allocation8 + $0xb0] sm:$0xf]
        %v1890 = vld [vmem:[#allocation8 + $0xb4] sm:$0xf]
        %v1891 = vld [vmem:[#allocation8 + $0xb8] sm:$0xf]
        %v1892 = vld [vmem:[#allocation8 + $0xbc] sm:$0xf]
        %v1957 = vunpack.c.l.b16 %v1781
        %v1958 = vunpack.c.h.b16 %v1781
        %v1959 = vunpack.c.l.b16 %v1782
        %v1960 = vunpack.c.l.b16 %v1783
        %v1961 = vunpack.c.h.b16 %v1783
        %v1962 = vunpack.c.l.b16 %v1784
        %v1963 = vunpack.c.l.b16 %v1785
        %v1964 = vunpack.c.h.b16 %v1785
        %v1965 = vunpack.c.l.b16 %v1786
        %v1966 = vunpack.c.l.b16 %v1787
        %v1967 = vunpack.c.h.b16 %v1787
        %v1968 = vunpack.c.l.b16 %v1788
        %v1969 = vunpack.c.l.b16 %v1789
        %v1970 = vunpack.c.h.b16 %v1789
        %v1971 = vunpack.c.l.b16 %v1790
        %v1972 = vunpack.c.l.b16 %v1791
        %v1973 = vunpack.c.h.b16 %v1791
        %v1974 = vunpack.c.l.b16 %v1792
        %v1975 = vunpack.c.l.b16 %v1793
        %v1976 = vunpack.c.h.b16 %v1793
        %v1977 = vunpack.c.l.b16 %v1794
        %v1978 = vunpack.c.l.b16 %v1795
        %v1979 = vunpack.c.h.b16 %v1795
        %v1980 = vunpack.c.l.b16 %v1796
        %v1981 = vunpack.c.l.b16 %v1797
        %v1982 = vunpack.c.h.b16 %v1797
        %v1983 = vunpack.c.l.b16 %v1798
        %v1984 = vunpack.c.l.b16 %v1799
        %v1985 = vunpack.c.h.b16 %v1799
        %v1986 = vunpack.c.l.b16 %v1800
        %v1987 = vunpack.c.l.b16 %v1801
        %v1988 = vunpack.c.h.b16 %v1801
        %v1989 = vunpack.c.l.b16 %v1802
        %v1990 = vunpack.c.l.b16 %v1803
        %v1991 = vunpack.c.h.b16 %v1803
        %v1992 = vunpack.c.l.b16 %v1804
        %v1993 = vunpack.c.l.b16 %v1805
        %v1994 = vunpack.c.h.b16 %v1805
        %v1995 = vunpack.c.l.b16 %v1806
        %v1996 = vunpack.c.l.b16 %v1807
        %v1997 = vunpack.c.h.b16 %v1807
        %v1998 = vunpack.c.l.b16 %v1808
        %v1999 = vunpack.c.l.b16 %v1809
        %v2000 = vunpack.c.h.b16 %v1809
        %v2001 = vunpack.c.l.b16 %v1810
        %v2002 = vunpack.c.l.b16 %v1811
        %v2003 = vunpack.c.h.b16 %v1811
        %v2004 = vunpack.c.l.b16 %v1812
        %v2005 = vunpack.c.l.b16 %v1813
        %v2006 = vunpack.c.h.b16 %v1813
        %v2007 = vunpack.c.l.b16 %v1814
        %v2008 = vunpack.c.l.b16 %v1815
        %v2009 = vunpack.c.h.b16 %v1815
        %v2010 = vunpack.c.l.b16 %v1816
        %v2011 = vunpack.c.l.b16 %v1817
        %v2012 = vunpack.c.h.b16 %v1817
        %v2013 = vunpack.c.l.b16 %v1818
        %v2014 = vunpack.c.l.b16 %v1819
        %v2015 = vunpack.c.h.b16 %v1819
        %v2016 = vunpack.c.l.b16 %v1820
        %v2017 = vunpack.c.l.b16 %v1821
        %v2018 = vunpack.c.h.b16 %v1821
        %v2019 = vunpack.c.l.b16 %v1822
        %v2020 = vunpack.c.l.b16 %v1823
        %v2021 = vunpack.c.h.b16 %v1823
        %v2022 = vunpack.c.l.b16 %v1824
        %v2023 = vunpack.c.l.b16 %v1825
        %v2024 = vunpack.c.h.b16 %v1825
        %v2025 = vunpack.c.l.b16 %v1826
        %v2026 = vunpack.c.l.b16 %v1827
        %v2027 = vunpack.c.h.b16 %v1827
        %v2028 = vunpack.c.l.b16 %v1828
        %v2029 = vunpack.c.l.b16 %v1829
        %v2030 = vunpack.c.h.b16 %v1829
        %v2031 = vunpack.c.l.b16 %v1830
        %v2032 = vunpack.c.l.b16 %v1831
        %v2033 = vunpack.c.h.b16 %v1831
        %v2034 = vunpack.c.l.b16 %v1832
        %v2035 = vunpack.c.l.b16 %v1833
        %v2036 = vunpack.c.h.b16 %v1833
        %v2037 = vunpack.c.l.b16 %v1834
        %v2038 = vunpack.c.l.b16 %v1835
        %v2039 = vunpack.c.h.b16 %v1835
        %v2040 = vunpack.c.l.b16 %v1836
        %v2041 = vunpack.c.l.b16 %v1837
        %v2042 = vunpack.c.h.b16 %v1837
        %v2043 = vunpack.c.l.b16 %v1838
        %v2044 = vunpack.c.l.b16 %v1839
        %v2045 = vunpack.c.h.b16 %v1839
        %v2046 = vunpack.c.l.b16 %v1840
        %v2047 = vunpack.c.l.b16 %v1841
        %v2048 = vunpack.c.h.b16 %v1841
        %v2049 = vunpack.c.l.b16 %v1842
        %v2050 = vunpack.c.l.b16 %v1843
        %v2051 = vunpack.c.h.b16 %v1843
        %v2052 = vunpack.c.l.b16 %v1844
        %v2053 = vpack.c.b16 %v1960, %v1957
        %v2054 = vpack.c.b16 %v1961, %v1958
        %v2055 = vpack.c.b16 %v1962, %v1959
        %v2056 = vpack.c.b16 %v1966, %v1963
        %v2057 = vpack.c.b16 %v1967, %v1964
        %v2058 = vpack.c.b16 %v1968, %v1965
        %v2059 = vpack.c.b16 %v1972, %v1969
        %v2060 = vpack.c.b16 %v1973, %v1970
        %v2061 = vpack.c.b16 %v1974, %v1971
        %v2062 = vpack.c.b16 %v1978, %v1975
        %v2063 = vpack.c.b16 %v1979, %v1976
        %v2064 = vpack.c.b16 %v1980, %v1977
        %v2065 = vpack.c.b16 %v1984, %v1981
        %v2066 = vpack.c.b16 %v1985, %v1982
        %v2067 = vpack.c.b16 %v1986, %v1983
        %v2068 = vpack.c.b16 %v1990, %v1987
        %v2069 = vpack.c.b16 %v1991, %v1988
        %v2070 = vpack.c.b16 %v1992, %v1989
        %v2071 = vpack.c.b16 %v1996, %v1993
        %v2072 = vpack.c.b16 %v1997, %v1994
        %v2073 = vpack.c.b16 %v1998, %v1995
        %v2074 = vpack.c.b16 %v2002, %v1999
        %v2075 = vpack.c.b16 %v2003, %v2000
        %v2076 = vpack.c.b16 %v2004, %v2001
        %v2077 = vpack.c.b16 %v2008, %v2005
        %v2078 = vpack.c.b16 %v2009, %v2006
        %v2079 = vpack.c.b16 %v2010, %v2007
        %v2080 = vpack.c.b16 %v2014, %v2011
        %v2081 = vpack.c.b16 %v2015, %v2012
        %v2082 = vpack.c.b16 %v2016, %v2013
        %v2083 = vpack.c.b16 %v2020, %v2017
        %v2084 = vpack.c.b16 %v2021, %v2018
        %v2085 = vpack.c.b16 %v2022, %v2019
        %v2086 = vpack.c.b16 %v2026, %v2023
        %v2087 = vpack.c.b16 %v2027, %v2024
        %v2088 = vpack.c.b16 %v2028, %v2025
        %v2089 = vpack.c.b16 %v2032, %v2029
        %v2090 = vpack.c.b16 %v2033, %v2030
        %v2091 = vpack.c.b16 %v2034, %v2031
        %v2092 = vpack.c.b16 %v2038, %v2035
        %v2093 = vpack.c.b16 %v2039, %v2036
        %v2094 = vpack.c.b16 %v2040, %v2037
        %v2095 = vpack.c.b16 %v2044, %v2041
        %v2096 = vpack.c.b16 %v2045, %v2042
        %v2097 = vpack.c.b16 %v2046, %v2043
        %v2098 = vpack.c.b16 %v2050, %v2047
        %v2099 = vpack.c.b16 %v2051, %v2048
        %v2100 = vpack.c.b16 %v2052, %v2049
        %v2197 = vunpack.c.l.b16 %v1845
        %v2198 = vunpack.c.l.b16 %v1846
        %v2199 = vunpack.c.l.b16 %v1847
        %v2200 = vunpack.c.l.b16 %v1848
        %v2201 = vunpack.c.l.b16 %v1849
        %v2202 = vunpack.c.l.b16 %v1850
        %v2203 = vunpack.c.l.b16 %v1851
        %v2204 = vunpack.c.l.b16 %v1852
        %v2205 = vunpack.c.l.b16 %v1853
        %v2206 = vunpack.c.l.b16 %v1854
        %v2207 = vunpack.c.l.b16 %v1855
        %v2208 = vunpack.c.l.b16 %v1856
        %v2209 = vunpack.c.l.b16 %v1857
        %v2210 = vunpack.c.l.b16 %v1858
        %v2211 = vunpack.c.l.b16 %v1859
        %v2212 = vunpack.c.l.b16 %v1860
        %v2213 = vunpack.c.l.b16 %v1861
        %v2214 = vunpack.c.l.b16 %v1862
        %v2215 = vunpack.c.l.b16 %v1863
        %v2216 = vunpack.c.l.b16 %v1864
        %v2217 = vunpack.c.l.b16 %v1865
        %v2218 = vunpack.c.l.b16 %v1866
        %v2219 = vunpack.c.l.b16 %v1867
        %v2220 = vunpack.c.l.b16 %v1868
        %v2221 = vunpack.c.l.b16 %v1869
        %v2222 = vunpack.c.l.b16 %v1870
        %v2223 = vunpack.c.l.b16 %v1871
        %v2224 = vunpack.c.l.b16 %v1872
        %v2225 = vunpack.c.l.b16 %v1873
        %v2226 = vunpack.c.l.b16 %v1874
        %v2227 = vunpack.c.l.b16 %v1875
        %v2228 = vunpack.c.l.b16 %v1876
        %v2229 = vunpack.c.l.b16 %v1877
        %v2230 = vunpack.c.l.b16 %v1878
        %v2231 = vunpack.c.l.b16 %v1879
        %v2232 = vunpack.c.l.b16 %v1880
        %v2233 = vunpack.c.l.b16 %v1881
        %v2234 = vunpack.c.l.b16 %v1882
        %v2235 = vunpack.c.l.b16 %v1883
        %v2236 = vunpack.c.l.b16 %v1884
        %v2237 = vunpack.c.l.b16 %v1885
        %v2238 = vunpack.c.l.b16 %v1886
        %v2239 = vunpack.c.l.b16 %v1887
        %v2240 = vunpack.c.l.b16 %v1888
        %v2241 = vunpack.c.l.b16 %v1889
        %v2242 = vunpack.c.l.b16 %v1890
        %v2243 = vunpack.c.l.b16 %v1891
        %v2244 = vunpack.c.l.b16 %v1892
        %v2245 = vpack.c.b16 %v2198, %v2197
        %v2246 = vpack.c.b16 %v2200, %v2199
        %v2247 = vpack.c.b16 %v2202, %v2201
        %v2248 = vpack.c.b16 %v2204, %v2203
        %v2249 = vpack.c.b16 %v2206, %v2205
        %v2250 = vpack.c.b16 %v2208, %v2207
        %v2251 = vpack.c.b16 %v2210, %v2209
        %v2252 = vpack.c.b16 %v2212, %v2211
        %v2253 = vpack.c.b16 %v2214, %v2213
        %v2254 = vpack.c.b16 %v2216, %v2215
        %v2255 = vpack.c.b16 %v2218, %v2217
        %v2256 = vpack.c.b16 %v2220, %v2219
        %v2257 = vpack.c.b16 %v2222, %v2221
        %v2258 = vpack.c.b16 %v2224, %v2223
        %v2259 = vpack.c.b16 %v2226, %v2225
        %v2260 = vpack.c.b16 %v2228, %v2227
        %v2261 = vpack.c.b16 %v2230, %v2229
        %v2262 = vpack.c.b16 %v2232, %v2231
        %v2263 = vpack.c.b16 %v2234, %v2233
        %v2264 = vpack.c.b16 %v2236, %v2235
        %v2265 = vpack.c.b16 %v2238, %v2237
        %v2266 = vpack.c.b16 %v2240, %v2239
        %v2267 = vpack.c.b16 %v2242, %v2241
        %v2268 = vpack.c.b16 %v2244, %v2243
        %2293 = vmatprep.subr.bf16.mxu0 0
        %2294 = vmatpush1.bf16.msra.mxu0 %v2252
        %2295 = vmatprep.subr.bf16.mxu0 0
        %2296 = vmatpush1.bf16.msra.mxu0 %v2251
        %2297 = vmatprep.subr.bf16.mxu0 0
        %2298 = vmatpush1.bf16.msra.mxu0 %v2250
        %2299 = vmatprep.subr.bf16.mxu0 0
        %2300 = vmatpush1.bf16.msra.mxu0 %v2249
        %2301 = vmatprep.subr.bf16.mxu0 0
        %2302 = vmatpush1.bf16.msra.mxu0 %v2248
        %2303 = vmatprep.subr.bf16.mxu0 0
        %2304 = vmatpush1.bf16.msra.mxu0 %v2247
        %2305 = vmatprep.subr.bf16.mxu0 0
        %2306 = vmatpush1.bf16.msra.mxu0 %v2246
        %2307 = vmatprep.subr.bf16.mxu0 0
        %2308 = vmatpush1.bf16.msra.mxu0 %v2245
        %2309 = vmatprep.subr.bf16.mxu0 0
        %2310 = vmatpush2.bf16.msra.mxu0 %v2260
        %2311 = vmatprep.subr.bf16.mxu0 0
        %2312 = vmatpush2.bf16.msra.mxu0 %v2259
        %2313 = vmatprep.subr.bf16.mxu0 0
        %2314 = vmatpush2.bf16.msra.mxu0 %v2258
        %2315 = vmatprep.subr.bf16.mxu0 0
        %2316 = vmatpush2.bf16.msra.mxu0 %v2257
        %2317 = vmatprep.subr.bf16.mxu0 0
        %2318 = vmatpush2.bf16.msra.mxu0 %v2256
        %2319 = vmatprep.subr.bf16.mxu0 0
        %2320 = vmatpush2.bf16.msra.mxu0 %v2255
        %2321 = vmatprep.subr.bf16.mxu0 0
        %2322 = vmatpush2.bf16.msra.mxu0 %v2254
        %2323 = vmatprep.subr.bf16.mxu0 0
        %2324 = vmatpush2.bf16.msra.mxu0 %v2253
        %2325 = vmatprep.mubr.bf16.mxu0 %v2054
        %2326 = vmatmul.mubr.bf16.gmra.mxu0 %v2053
        %v2327 = vpop.f32.mrf.mxu0
        %v2328 = vadd.f32 0.0, %v2327
        %v2329 = vpop.f32.mrf.mxu0
        %v2330 = vpop.f32.mrf.mxu0
        %v2331 = vadd.f32 0.0, %v2330
        %v2332 = vpop.f32.mrf.mxu0
        %2333 = vmatprep.mubr.bf16.mxu0 %v2057
        %2334 = vmatmul.mubr.bf16.gmra.mxu0 %v2056
        %v2335 = vpop.f32.mrf.mxu0
        %v2336 = vadd.f32 0.0, %v2335
        %v2337 = vpop.f32.mrf.mxu0
        %v2338 = vpop.f32.mrf.mxu0
        %v2339 = vadd.f32 0.0, %v2338
        %v2340 = vpop.f32.mrf.mxu0
        %2341 = vmatprep.mubr.bf16.mxu0 %v2060
        %2342 = vmatmul.mubr.bf16.gmra.mxu0 %v2059
        %v2343 = vpop.f32.mrf.mxu0
        %v2344 = vadd.f32 0.0, %v2343
        %v2345 = vpop.f32.mrf.mxu0
        %v2346 = vpop.f32.mrf.mxu0
        %v2347 = vadd.f32 0.0, %v2346
        %v2348 = vpop.f32.mrf.mxu0
        %2349 = vmatprep.mubr.bf16.mxu0 %v2063
        %2350 = vmatmul.mubr.bf16.gmra.mxu0 %v2062
        %v2351 = vpop.f32.mrf.mxu0
        %v2352 = vadd.f32 0.0, %v2351
        %v2353 = vpop.f32.mrf.mxu0
        %v2354 = vpop.f32.mrf.mxu0
        %v2355 = vadd.f32 0.0, %v2354
        %v2356 = vpop.f32.mrf.mxu0
        %2357 = vmatprep.mubr.bf16.mxu0 %v2066
        %2358 = vmatmul.mubr.bf16.gmra.mxu0 %v2065
        %v2359 = vpop.f32.mrf.mxu0
        %v2360 = vadd.f32 0.0, %v2359
        %v2361 = vpop.f32.mrf.mxu0
        %v2362 = vpop.f32.mrf.mxu0
        %v2363 = vadd.f32 0.0, %v2362
        %v2364 = vpop.f32.mrf.mxu0
        %2365 = vmatprep.mubr.bf16.mxu0 %v2069
        %2366 = vmatmul.mubr.bf16.gmra.mxu0 %v2068
        %v2367 = vpop.f32.mrf.mxu0
        %v2368 = vadd.f32 0.0, %v2367
        %v2369 = vpop.f32.mrf.mxu0
        %v2370 = vpop.f32.mrf.mxu0
        %v2371 = vadd.f32 0.0, %v2370
        %v2372 = vpop.f32.mrf.mxu0
        %2373 = vmatprep.mubr.bf16.mxu0 %v2072
        %2374 = vmatmul.mubr.bf16.gmra.mxu0 %v2071
        %v2375 = vpop.f32.mrf.mxu0
        %v2376 = vadd.f32 0.0, %v2375
        %v2377 = vpop.f32.mrf.mxu0
        %v2378 = vpop.f32.mrf.mxu0
        %v2379 = vadd.f32 0.0, %v2378
        %v2380 = vpop.f32.mrf.mxu0
        %2381 = vmatprep.mubr.bf16.mxu0 %v2075
        %2382 = vmatmul.mubr.bf16.gmra.mxu0 %v2074
        %v2383 = vpop.f32.mrf.mxu0
        %v2384 = vadd.f32 0.0, %v2383
        %v2385 = vpop.f32.mrf.mxu0
        %v2386 = vpop.f32.mrf.mxu0
        %v2387 = vadd.f32 0.0, %v2386
        %v2388 = vpop.f32.mrf.mxu0
        %2389 = vmatprep.mubr.bf16.mxu0 %v2078
        %2390 = vmatmul.mubr.bf16.gmra.mxu0 %v2077
        %v2391 = vpop.f32.mrf.mxu0
        %v2392 = vadd.f32 0.0, %v2391
        %v2393 = vpop.f32.mrf.mxu0
        %v2394 = vpop.f32.mrf.mxu0
        %v2395 = vadd.f32 0.0, %v2394
        %v2396 = vpop.f32.mrf.mxu0
        %2397 = vmatprep.mubr.bf16.mxu0 %v2081
        %2398 = vmatmul.mubr.bf16.gmra.mxu0 %v2080
        %v2399 = vpop.f32.mrf.mxu0
        %v2400 = vadd.f32 0.0, %v2399
        %v2401 = vpop.f32.mrf.mxu0
        %v2402 = vpop.f32.mrf.mxu0
        %v2403 = vadd.f32 0.0, %v2402
        %v2404 = vpop.f32.mrf.mxu0
        %2405 = vmatprep.mubr.bf16.mxu0 %v2084
        %2406 = vmatmul.mubr.bf16.gmra.mxu0 %v2083
        %v2407 = vpop.f32.mrf.mxu0
        %v2408 = vadd.f32 0.0, %v2407
        %v2409 = vpop.f32.mrf.mxu0
        %v2410 = vpop.f32.mrf.mxu0
        %v2411 = vadd.f32 0.0, %v2410
        %v2412 = vpop.f32.mrf.mxu0
        %2413 = vmatprep.mubr.bf16.mxu0 %v2087
        %2414 = vmatmul.mubr.bf16.gmra.mxu0 %v2086
        %v2415 = vpop.f32.mrf.mxu0
        %v2416 = vadd.f32 0.0, %v2415
        %v2417 = vpop.f32.mrf.mxu0
        %v2418 = vpop.f32.mrf.mxu0
        %v2419 = vadd.f32 0.0, %v2418
        %v2420 = vpop.f32.mrf.mxu0
        %2421 = vmatprep.mubr.bf16.mxu0 %v2090
        %2422 = vmatmul.mubr.bf16.gmra.mxu0 %v2089
        %v2423 = vpop.f32.mrf.mxu0
        %v2424 = vadd.f32 0.0, %v2423
        %v2425 = vpop.f32.mrf.mxu0
        %v2426 = vpop.f32.mrf.mxu0
        %v2427 = vadd.f32 0.0, %v2426
        %v2428 = vpop.f32.mrf.mxu0
        %2429 = vmatprep.mubr.bf16.mxu0 %v2093
        %2430 = vmatmul.mubr.bf16.gmra.mxu0 %v2092
        %v2431 = vpop.f32.mrf.mxu0
        %v2432 = vadd.f32 0.0, %v2431
        %v2433 = vpop.f32.mrf.mxu0
        %v2434 = vpop.f32.mrf.mxu0
        %v2435 = vadd.f32 0.0, %v2434
        %v2436 = vpop.f32.mrf.mxu0
        %2437 = vmatprep.mubr.bf16.mxu0 %v2096
        %2438 = vmatmul.mubr.bf16.gmra.mxu0 %v2095
        %v2439 = vpop.f32.mrf.mxu0
        %v2440 = vadd.f32 0.0, %v2439
        %v2441 = vpop.f32.mrf.mxu0
        %v2442 = vpop.f32.mrf.mxu0
        %v2443 = vadd.f32 0.0, %v2442
        %v2444 = vpop.f32.mrf.mxu0
        %2445 = vmatprep.mubr.bf16.mxu0 %v2099
        %2446 = vmatmul.mubr.bf16.gmra.mxu0 %v2098
        %v2447 = vpop.f32.mrf.mxu0
        %v2448 = vadd.f32 0.0, %v2447
        %v2449 = vpop.f32.mrf.mxu0
        %v2450 = vpop.f32.mrf.mxu0
        %v2451 = vadd.f32 0.0, %v2450
        %v2452 = vpop.f32.mrf.mxu0
        %2453 = vdwg.mxu0
        %2454 = vmatprep.subr.bf16.mxu0 0
        %2455 = vmatpush1.bf16.msra.mxu0 %v2268
        %2456 = vmatprep.subr.bf16.mxu0 0
        %2457 = vmatpush1.bf16.msra.mxu0 %v2267
        %2458 = vmatprep.subr.bf16.mxu0 0
        %2459 = vmatpush1.bf16.msra.mxu0 %v2266
        %2460 = vmatprep.subr.bf16.mxu0 0
        %2461 = vmatpush1.bf16.msra.mxu0 %v2265
        %2462 = vmatprep.subr.bf16.mxu0 0
        %2463 = vmatpush1.bf16.msra.mxu0 %v2264
        %2464 = vmatprep.subr.bf16.mxu0 0
        %2465 = vmatpush1.bf16.msra.mxu0 %v2263
        %2466 = vmatprep.subr.bf16.mxu0 0
        %2467 = vmatpush1.bf16.msra.mxu0 %v2262
        %2468 = vmatprep.subr.bf16.mxu0 0
        %2469 = vmatpush1.bf16.msra.mxu0 %v2261
        %2470 = vmatprep.subr.bf16.mxu0 0
        %2471 = vmatpush2.bf16.msra.mxu0 0
        %2472 = vmatprep.subr.bf16.mxu0 0
        %2473 = vmatpush2.bf16.msra.mxu0 0
        %2474 = vmatprep.subr.bf16.mxu0 0
        %2475 = vmatpush2.bf16.msra.mxu0 0
        %2476 = vmatprep.subr.bf16.mxu0 0
        %2477 = vmatpush2.bf16.msra.mxu0 0
        %2478 = vmatprep.subr.bf16.mxu0 0
        %2479 = vmatpush2.bf16.msra.mxu0 0
        %2480 = vmatprep.subr.bf16.mxu0 0
        %2481 = vmatpush2.bf16.msra.mxu0 0
        %2482 = vmatprep.subr.bf16.mxu0 0
        %2483 = vmatpush2.bf16.msra.mxu0 0
        %2484 = vmatprep.subr.bf16.mxu0 0
        %2485 = vmatpush2.bf16.msra.mxu0 0
        %2486 = vmatprep.mubr.bf16.mxu0 0
        %2487 = vmatmul.mubr.bf16.gmra.mxu0 %v2055
        %v2488 = vpop.f32.mrf.mxu0
        %v2489 = vadd.f32 %v2328, %v2488
        %v2490 = vpop.f32.mrf.mxu0
        %v2491 = vpop.f32.mrf.mxu0
        %v2492 = vadd.f32 %v2331, %v2491
        %v2493 = vpop.f32.mrf.mxu0
        %2494 = vmatprep.mubr.bf16.mxu0 0
        %2495 = vmatmul.mubr.bf16.gmra.mxu0 %v2058
        %v2496 = vpop.f32.mrf.mxu0
        %v2497 = vadd.f32 %v2336, %v2496
        %v2498 = vpop.f32.mrf.mxu0
        %v2499 = vpop.f32.mrf.mxu0
        %v2500 = vadd.f32 %v2339, %v2499
        %v2501 = vpop.f32.mrf.mxu0
        %2502 = vmatprep.mubr.bf16.mxu0 0
        %2503 = vmatmul.mubr.bf16.gmra.mxu0 %v2061
        %v2504 = vpop.f32.mrf.mxu0
        %v2505 = vadd.f32 %v2344, %v2504
        %v2506 = vpop.f32.mrf.mxu0
        %v2507 = vpop.f32.mrf.mxu0
        %v2508 = vadd.f32 %v2347, %v2507
        %v2509 = vpop.f32.mrf.mxu0
        %2510 = vmatprep.mubr.bf16.mxu0 0
        %2511 = vmatmul.mubr.bf16.gmra.mxu0 %v2064
        %v2512 = vpop.f32.mrf.mxu0
        %v2513 = vadd.f32 %v2352, %v2512
        %v2514 = vpop.f32.mrf.mxu0
        %v2515 = vpop.f32.mrf.mxu0
        %v2516 = vadd.f32 %v2355, %v2515
        %v2517 = vpop.f32.mrf.mxu0
        %2518 = vmatprep.mubr.bf16.mxu0 0
        %2519 = vmatmul.mubr.bf16.gmra.mxu0 %v2067
        %v2520 = vpop.f32.mrf.mxu0
        %v2521 = vadd.f32 %v2360, %v2520
        %v2522 = vpop.f32.mrf.mxu0
        %v2523 = vpop.f32.mrf.mxu0
        %v2524 = vadd.f32 %v2363, %v2523
        %v2525 = vpop.f32.mrf.mxu0
        %2526 = vmatprep.mubr.bf16.mxu0 0
        %2527 = vmatmul.mubr.bf16.gmra.mxu0 %v2070
        %v2528 = vpop.f32.mrf.mxu0
        %v2529 = vadd.f32 %v2368, %v2528
        %v2530 = vpop.f32.mrf.mxu0
        %v2531 = vpop.f32.mrf.mxu0
        %v2532 = vadd.f32 %v2371, %v2531
        %v2533 = vpop.f32.mrf.mxu0
        %2534 = vmatprep.mubr.bf16.mxu0 0
        %2535 = vmatmul.mubr.bf16.gmra.mxu0 %v2073
        %v2536 = vpop.f32.mrf.mxu0
        %v2537 = vadd.f32 %v2376, %v2536
        %v2538 = vpop.f32.mrf.mxu0
        %v2539 = vpop.f32.mrf.mxu0
        %v2540 = vadd.f32 %v2379, %v2539
        %v2541 = vpop.f32.mrf.mxu0
        %2542 = vmatprep.mubr.bf16.mxu0 0
        %2543 = vmatmul.mubr.bf16.gmra.mxu0 %v2076
        %v2544 = vpop.f32.mrf.mxu0
        %v2545 = vadd.f32 %v2384, %v2544
        %v2546 = vpop.f32.mrf.mxu0
        %v2547 = vpop.f32.mrf.mxu0
        %v2548 = vadd.f32 %v2387, %v2547
        %v2549 = vpop.f32.mrf.mxu0
        %2550 = vmatprep.mubr.bf16.mxu0 0
        %2551 = vmatmul.mubr.bf16.gmra.mxu0 %v2079
        %v2552 = vpop.f32.mrf.mxu0
        %v2553 = vadd.f32 %v2392, %v2552
        %v2554 = vpop.f32.mrf.mxu0
        %v2555 = vpop.f32.mrf.mxu0
        %v2556 = vadd.f32 %v2395, %v2555
        %v2557 = vpop.f32.mrf.mxu0
        %2558 = vmatprep.mubr.bf16.mxu0 0
        %2559 = vmatmul.mubr.bf16.gmra.mxu0 %v2082
        %v2560 = vpop.f32.mrf.mxu0
        %v2561 = vadd.f32 %v2400, %v2560
        %v2562 = vpop.f32.mrf.mxu0
        %v2563 = vpop.f32.mrf.mxu0
        %v2564 = vadd.f32 %v2403, %v2563
        %v2565 = vpop.f32.mrf.mxu0
        %2566 = vmatprep.mubr.bf16.mxu0 0
        %2567 = vmatmul.mubr.bf16.gmra.mxu0 %v2085
        %v2568 = vpop.f32.mrf.mxu0
        %v2569 = vadd.f32 %v2408, %v2568
        %v2570 = vpop.f32.mrf.mxu0
        %v2571 = vpop.f32.mrf.mxu0
        %v2572 = vadd.f32 %v2411, %v2571
        %v2573 = vpop.f32.mrf.mxu0
        %2574 = vmatprep.mubr.bf16.mxu0 0
        %2575 = vmatmul.mubr.bf16.gmra.mxu0 %v2088
        %v2576 = vpop.f32.mrf.mxu0
        %v2577 = vadd.f32 %v2416, %v2576
        %v2578 = vpop.f32.mrf.mxu0
        %v2579 = vpop.f32.mrf.mxu0
        %v2580 = vadd.f32 %v2419, %v2579
        %v2581 = vpop.f32.mrf.mxu0
        %2582 = vmatprep.mubr.bf16.mxu0 0
        %2583 = vmatmul.mubr.bf16.gmra.mxu0 %v2091
        %v2584 = vpop.f32.mrf.mxu0
        %v2585 = vadd.f32 %v2424, %v2584
        %v2586 = vpop.f32.mrf.mxu0
        %v2587 = vpop.f32.mrf.mxu0
        %v2588 = vadd.f32 %v2427, %v2587
        %v2589 = vpop.f32.mrf.mxu0
        %2590 = vmatprep.mubr.bf16.mxu0 0
        %2591 = vmatmul.mubr.bf16.gmra.mxu0 %v2094
        %v2592 = vpop.f32.mrf.mxu0
        %v2593 = vadd.f32 %v2432, %v2592
        %v2594 = vpop.f32.mrf.mxu0
        %v2595 = vpop.f32.mrf.mxu0
        %v2596 = vadd.f32 %v2435, %v2595
        %v2597 = vpop.f32.mrf.mxu0
        %2598 = vmatprep.mubr.bf16.mxu0 0
        %2599 = vmatmul.mubr.bf16.gmra.mxu0 %v2097
        %v2600 = vpop.f32.mrf.mxu0
        %v2601 = vadd.f32 %v2440, %v2600
        %v2602 = vpop.f32.mrf.mxu0
        %v2603 = vpop.f32.mrf.mxu0
        %v2604 = vadd.f32 %v2443, %v2603
        %v2605 = vpop.f32.mrf.mxu0
        %2606 = vmatprep.mubr.bf16.mxu0 0
        %2607 = vmatmul.mubr.bf16.gmra.mxu0 %v2100
        %v2608 = vpop.f32.mrf.mxu0
        %v2609 = vadd.f32 %v2448, %v2608
        %v2610 = vpop.f32.mrf.mxu0
        %v2611 = vpop.f32.mrf.mxu0
        %v2612 = vadd.f32 %v2451, %v2611
        %v2613 = vpop.f32.mrf.mxu0
        %2614 = vdwg.mxu0
        %2615 = vst [vmem:[#allocation4] sm:$0xff] %v2489
        %2616 = vst [vmem:[#allocation4 + $0x8] sm:$0xff] %v2492
        %2617 = vst [vmem:[#allocation4 + $0x10] sm:$0xff] %v2497
        %2618 = vst [vmem:[#allocation4 + $0x18] sm:$0xff] %v2500
        %2619 = vst [vmem:[#allocation4 + $0x20] sm:$0xff] %v2505
        %2620 = vst [vmem:[#allocation4 + $0x28] sm:$0xff] %v2508
        %2621 = vst [vmem:[#allocation4 + $0x30] sm:$0xff] %v2513
        %2622 = vst [vmem:[#allocation4 + $0x38] sm:$0xff] %v2516
        %2623 = vst [vmem:[#allocation4 + $0x40] sm:$0xff] %v2521
        %2624 = vst [vmem:[#allocation4 + $0x48] sm:$0xff] %v2524
        %2625 = vst [vmem:[#allocation4 + $0x50] sm:$0xff] %v2529
        %2626 = vst [vmem:[#allocation4 + $0x58] sm:$0xff] %v2532
        %2627 = vst [vmem:[#allocation4 + $0x60] sm:$0xff] %v2537
        %2628 = vst [vmem:[#allocation4 + $0x68] sm:$0xff] %v2540
        %2629 = vst [vmem:[#allocation4 + $0x70] sm:$0xff] %v2545
        %2630 = vst [vmem:[#allocation4 + $0x78] sm:$0xff] %v2548
        %2631 = vst [vmem:[#allocation4 + $0x80] sm:$0xff] %v2553
        %2632 = vst [vmem:[#allocation4 + $0x88] sm:$0xff] %v2556
        %2633 = vst [vmem:[#allocation4 + $0x90] sm:$0xff] %v2561
        %2634 = vst [vmem:[#allocation4 + $0x98] sm:$0xff] %v2564
        %2635 = vst [vmem:[#allocation4 + $0xa0] sm:$0xff] %v2569
        %2636 = vst [vmem:[#allocation4 + $0xa8] sm:$0xff] %v2572
        %2637 = vst [vmem:[#allocation4 + $0xb0] sm:$0xff] %v2577
        %2638 = vst [vmem:[#allocation4 + $0xb8] sm:$0xff] %v2580
        %2639 = vst [vmem:[#allocation4 + $0xc0] sm:$0xff] %v2585
        %2640 = vst [vmem:[#allocation4 + $0xc8] sm:$0xff] %v2588
        %2641 = vst [vmem:[#allocation4 + $0xd0] sm:$0xff] %v2593
        %2642 = vst [vmem:[#allocation4 + $0xd8] sm:$0xff] %v2596
        %2643 = vst [vmem:[#allocation4 + $0xe0] sm:$0xff] %v2601
        %2644 = vst [vmem:[#allocation4 + $0xe8] sm:$0xff] %v2604
        %2645 = vst [vmem:[#allocation4 + $0xf0] sm:$0xff] %v2609
        %2646 = vst [vmem:[#allocation4 + $0xf8] sm:$0xff] %v2612
        %v2647 = vld [vmem:[#allocation3 + $0x18] sm:$0xff]
        %v2648 = vld [vmem:[#allocation3 + $0x20] sm:$0xf]
        %v2649 = vld [vmem:[#allocation3 + $0x24] sm:$0xff]
        %v2650 = vld [vmem:[#allocation3 + $0x2c] sm:$0xf]
        %v2651 = vld [vmem:[#allocation3 + $0x30] sm:$0xff]
        %v2652 = vld [vmem:[#allocation3 + $0x38] sm:$0xf]
        %v2653 = vld [vmem:[#allocation3 + $0x3c] sm:$0xff]
        %v2654 = vld [vmem:[#allocation3 + $0x44] sm:$0xf]
        %v2655 = vld [vmem:[#allocation3 + $0x48] sm:$0xff]
        %v2656 = vld [vmem:[#allocation3 + $0x50] sm:$0xf]
        %v2657 = vld [vmem:[#allocation3 + $0x54] sm:$0xff]
        %v2658 = vld [vmem:[#allocation3 + $0x5c] sm:$0xf]
        %v2659 = vld [vmem:[#allocation3 + $0x60] sm:$0xff]
        %v2660 = vld [vmem:[#allocation3 + $0x68] sm:$0xf]
        %v2661 = vld [vmem:[#allocation3 + $0x6c] sm:$0xff]
        %v2662 = vld [vmem:[#allocation3 + $0x74] sm:$0xf]
        %v2663 = vld [vmem:[#allocation3 + $0x78] sm:$0xff]
        %v2664 = vld [vmem:[#allocation3 + $0x80] sm:$0xf]
        %v2665 = vld [vmem:[#allocation3 + $0x84] sm:$0xff]
        %v2666 = vld [vmem:[#allocation3 + $0x8c] sm:$0xf]
        %v2667 = vld [vmem:[#allocation3 + $0x90] sm:$0xff]
        %v2668 = vld [vmem:[#allocation3 + $0x98] sm:$0xf]
        %v2669 = vld [vmem:[#allocation3 + $0x9c] sm:$0xff]
        %v2670 = vld [vmem:[#allocation3 + $0xa4] sm:$0xf]
        %v2671 = vld [vmem:[#allocation3 + $0xa8] sm:$0xff]
        %v2672 = vld [vmem:[#allocation3 + $0xb0] sm:$0xf]
        %v2673 = vld [vmem:[#allocation3 + $0xb4] sm:$0xff]
        %v2674 = vld [vmem:[#allocation3 + $0xbc] sm:$0xf]
        %v2675 = vld [vmem:[#allocation3 + $0xc0] sm:$0xff]
        %v2676 = vld [vmem:[#allocation3 + $0xc8] sm:$0xf]
        %v2677 = vld [vmem:[#allocation3 + $0xcc] sm:$0xff]
        %v2678 = vld [vmem:[#allocation3 + $0xd4] sm:$0xf]
        %v2679 = vld [vmem:[#allocation3 + $0xd8] sm:$0xff]
        %v2680 = vld [vmem:[#allocation3 + $0xe0] sm:$0xf]
        %v2681 = vld [vmem:[#allocation3 + $0xe4] sm:$0xff]
        %v2682 = vld [vmem:[#allocation3 + $0xec] sm:$0xf]
        %v2683 = vld [vmem:[#allocation3 + $0xf0] sm:$0xff]
        %v2684 = vld [vmem:[#allocation3 + $0xf8] sm:$0xf]
        %v2685 = vld [vmem:[#allocation3 + $0xfc] sm:$0xff]
        %v2686 = vld [vmem:[#allocation3 + $0x104] sm:$0xf]
        %v2687 = vld [vmem:[#allocation3 + $0x108] sm:$0xff]
        %v2688 = vld [vmem:[#allocation3 + $0x110] sm:$0xf]
        %v2689 = vld [vmem:[#allocation3 + $0x114] sm:$0xff]
        %v2690 = vld [vmem:[#allocation3 + $0x11c] sm:$0xf]
        %v2691 = vld [vmem:[#allocation3 + $0x120] sm:$0xff]
        %v2692 = vld [vmem:[#allocation3 + $0x128] sm:$0xf]
        %v2693 = vld [vmem:[#allocation3 + $0x12c] sm:$0xff]
        %v2694 = vld [vmem:[#allocation3 + $0x134] sm:$0xf]
        %v2695 = vld [vmem:[#allocation3 + $0x138] sm:$0xff]
        %v2696 = vld [vmem:[#allocation3 + $0x140] sm:$0xf]
        %v2697 = vld [vmem:[#allocation3 + $0x144] sm:$0xff]
        %v2698 = vld [vmem:[#allocation3 + $0x14c] sm:$0xf]
        %v2699 = vld [vmem:[#allocation3 + $0x150] sm:$0xff]
        %v2700 = vld [vmem:[#allocation3 + $0x158] sm:$0xf]
        %v2701 = vld [vmem:[#allocation3 + $0x15c] sm:$0xff]
        %v2702 = vld [vmem:[#allocation3 + $0x164] sm:$0xf]
        %v2703 = vld [vmem:[#allocation3 + $0x168] sm:$0xff]
        %v2704 = vld [vmem:[#allocation3 + $0x170] sm:$0xf]
        %v2705 = vld [vmem:[#allocation3 + $0x174] sm:$0xff]
        %v2706 = vld [vmem:[#allocation3 + $0x17c] sm:$0xf]
        %v2707 = vld [vmem:[#allocation3 + $0x180] sm:$0xff]
        %v2708 = vld [vmem:[#allocation3 + $0x188] sm:$0xf]
        %v2709 = vld [vmem:[#allocation3 + $0x18c] sm:$0xff]
        %v2710 = vld [vmem:[#allocation3 + $0x194] sm:$0xf]
        %s2711 = scalar_lea.vmem [#allocation8], 192
        %v2712 = vld [vmem:[%s2711] sm:$0xf]
        %v2713 = vld [vmem:[%s2711 + $0x4] sm:$0xf]
        %v2714 = vld [vmem:[%s2711 + $0x8] sm:$0xf]
        %v2715 = vld [vmem:[%s2711 + $0xc] sm:$0xf]
        %v2716 = vld [vmem:[%s2711 + $0x10] sm:$0xf]
        %v2717 = vld [vmem:[%s2711 + $0x14] sm:$0xf]
        %v2718 = vld [vmem:[%s2711 + $0x18] sm:$0xf]
        %v2719 = vld [vmem:[%s2711 + $0x1c] sm:$0xf]
        %v2720 = vld [vmem:[%s2711 + $0x20] sm:$0xf]
        %v2721 = vld [vmem:[%s2711 + $0x24] sm:$0xf]
        %v2722 = vld [vmem:[%s2711 + $0x28] sm:$0xf]
        %v2723 = vld [vmem:[%s2711 + $0x2c] sm:$0xf]
        %v2724 = vld [vmem:[%s2711 + $0x30] sm:$0xf]
        %v2725 = vld [vmem:[%s2711 + $0x34] sm:$0xf]
        %v2726 = vld [vmem:[%s2711 + $0x38] sm:$0xf]
        %v2727 = vld [vmem:[%s2711 + $0x3c] sm:$0xf]
        %v2728 = vld [vmem:[%s2711 + $0x40] sm:$0xf]
        %v2729 = vld [vmem:[%s2711 + $0x44] sm:$0xf]
        %v2730 = vld [vmem:[%s2711 + $0x48] sm:$0xf]
        %v2731 = vld [vmem:[%s2711 + $0x4c] sm:$0xf]
        %v2732 = vld [vmem:[%s2711 + $0x50] sm:$0xf]
        %v2733 = vld [vmem:[%s2711 + $0x54] sm:$0xf]
        %v2734 = vld [vmem:[%s2711 + $0x58] sm:$0xf]
        %v2735 = vld [vmem:[%s2711 + $0x5c] sm:$0xf]
        %v2736 = vld [vmem:[%s2711 + $0x60] sm:$0xf]
        %v2737 = vld [vmem:[%s2711 + $0x64] sm:$0xf]
        %v2738 = vld [vmem:[%s2711 + $0x68] sm:$0xf]
        %v2739 = vld [vmem:[%s2711 + $0x6c] sm:$0xf]
        %v2740 = vld [vmem:[%s2711 + $0x70] sm:$0xf]
        %v2741 = vld [vmem:[%s2711 + $0x74] sm:$0xf]
        %v2742 = vld [vmem:[%s2711 + $0x78] sm:$0xf]
        %v2743 = vld [vmem:[%s2711 + $0x7c] sm:$0xf]
        %v2744 = vld [vmem:[%s2711 + $0x80] sm:$0xf]
        %v2745 = vld [vmem:[%s2711 + $0x84] sm:$0xf]
        %v2746 = vld [vmem:[%s2711 + $0x88] sm:$0xf]
        %v2747 = vld [vmem:[%s2711 + $0x8c] sm:$0xf]
        %v2748 = vld [vmem:[%s2711 + $0x90] sm:$0xf]
        %v2749 = vld [vmem:[%s2711 + $0x94] sm:$0xf]
        %v2750 = vld [vmem:[%s2711 + $0x98] sm:$0xf]
        %v2751 = vld [vmem:[%s2711 + $0x9c] sm:$0xf]
        %v2752 = vld [vmem:[%s2711 + $0xa0] sm:$0xf]
        %v2753 = vld [vmem:[%s2711 + $0xa4] sm:$0xf]
        %v2754 = vld [vmem:[%s2711 + $0xa8] sm:$0xf]
        %v2755 = vld [vmem:[%s2711 + $0xac] sm:$0xf]
        %v2756 = vld [vmem:[%s2711 + $0xb0] sm:$0xf]
        %v2757 = vld [vmem:[%s2711 + $0xb4] sm:$0xf]
        %v2758 = vld [vmem:[%s2711 + $0xb8] sm:$0xf]
        %v2759 = vld [vmem:[%s2711 + $0xbc] sm:$0xf]
        %v2824 = vunpack.c.l.b16 %v2647
        %v2825 = vunpack.c.h.b16 %v2647
        %v2826 = vunpack.c.l.b16 %v2648
        %v2827 = vunpack.c.l.b16 %v2649
        %v2828 = vunpack.c.h.b16 %v2649
        %v2829 = vunpack.c.l.b16 %v2650
        %v2830 = vunpack.c.l.b16 %v2651
        %v2831 = vunpack.c.h.b16 %v2651
        %v2832 = vunpack.c.l.b16 %v2652
        %v2833 = vunpack.c.l.b16 %v2653
        %v2834 = vunpack.c.h.b16 %v2653
        %v2835 = vunpack.c.l.b16 %v2654
        %v2836 = vunpack.c.l.b16 %v2655
        %v2837 = vunpack.c.h.b16 %v2655
        %v2838 = vunpack.c.l.b16 %v2656
        %v2839 = vunpack.c.l.b16 %v2657
        %v2840 = vunpack.c.h.b16 %v2657
        %v2841 = vunpack.c.l.b16 %v2658
        %v2842 = vunpack.c.l.b16 %v2659
        %v2843 = vunpack.c.h.b16 %v2659
        %v2844 = vunpack.c.l.b16 %v2660
        %v2845 = vunpack.c.l.b16 %v2661
        %v2846 = vunpack.c.h.b16 %v2661
        %v2847 = vunpack.c.l.b16 %v2662
        %v2848 = vunpack.c.l.b16 %v2663
        %v2849 = vunpack.c.h.b16 %v2663
        %v2850 = vunpack.c.l.b16 %v2664
        %v2851 = vunpack.c.l.b16 %v2665
        %v2852 = vunpack.c.h.b16 %v2665
        %v2853 = vunpack.c.l.b16 %v2666
        %v2854 = vunpack.c.l.b16 %v2667
        %v2855 = vunpack.c.h.b16 %v2667
        %v2856 = vunpack.c.l.b16 %v2668
        %v2857 = vunpack.c.l.b16 %v2669
        %v2858 = vunpack.c.h.b16 %v2669
        %v2859 = vunpack.c.l.b16 %v2670
        %v2860 = vunpack.c.l.b16 %v2671
        %v2861 = vunpack.c.h.b16 %v2671
        %v2862 = vunpack.c.l.b16 %v2672
        %v2863 = vunpack.c.l.b16 %v2673
        %v2864 = vunpack.c.h.b16 %v2673
        %v2865 = vunpack.c.l.b16 %v2674
        %v2866 = vunpack.c.l.b16 %v2675
        %v2867 = vunpack.c.h.b16 %v2675
        %v2868 = vunpack.c.l.b16 %v2676
        %v2869 = vunpack.c.l.b16 %v2677
        %v2870 = vunpack.c.h.b16 %v2677
        %v2871 = vunpack.c.l.b16 %v2678
        %v2872 = vunpack.c.l.b16 %v2679
        %v2873 = vunpack.c.h.b16 %v2679
        %v2874 = vunpack.c.l.b16 %v2680
        %v2875 = vunpack.c.l.b16 %v2681
        %v2876 = vunpack.c.h.b16 %v2681
        %v2877 = vunpack.c.l.b16 %v2682
        %v2878 = vunpack.c.l.b16 %v2683
        %v2879 = vunpack.c.h.b16 %v2683
        %v2880 = vunpack.c.l.b16 %v2684
        %v2881 = vunpack.c.l.b16 %v2685
        %v2882 = vunpack.c.h.b16 %v2685
        %v2883 = vunpack.c.l.b16 %v2686
        %v2884 = vunpack.c.l.b16 %v2687
        %v2885 = vunpack.c.h.b16 %v2687
        %v2886 = vunpack.c.l.b16 %v2688
        %v2887 = vunpack.c.l.b16 %v2689
        %v2888 = vunpack.c.h.b16 %v2689
        %v2889 = vunpack.c.l.b16 %v2690
        %v2890 = vunpack.c.l.b16 %v2691
        %v2891 = vunpack.c.h.b16 %v2691
        %v2892 = vunpack.c.l.b16 %v2692
        %v2893 = vunpack.c.l.b16 %v2693
        %v2894 = vunpack.c.h.b16 %v2693
        %v2895 = vunpack.c.l.b16 %v2694
        %v2896 = vunpack.c.l.b16 %v2695
        %v2897 = vunpack.c.h.b16 %v2695
        %v2898 = vunpack.c.l.b16 %v2696
        %v2899 = vunpack.c.l.b16 %v2697
        %v2900 = vunpack.c.h.b16 %v2697
        %v2901 = vunpack.c.l.b16 %v2698
        %v2902 = vunpack.c.l.b16 %v2699
        %v2903 = vunpack.c.h.b16 %v2699
        %v2904 = vunpack.c.l.b16 %v2700
        %v2905 = vunpack.c.l.b16 %v2701
        %v2906 = vunpack.c.h.b16 %v2701
        %v2907 = vunpack.c.l.b16 %v2702
        %v2908 = vunpack.c.l.b16 %v2703
        %v2909 = vunpack.c.h.b16 %v2703
        %v2910 = vunpack.c.l.b16 %v2704
        %v2911 = vunpack.c.l.b16 %v2705
        %v2912 = vunpack.c.h.b16 %v2705
        %v2913 = vunpack.c.l.b16 %v2706
        %v2914 = vunpack.c.l.b16 %v2707
        %v2915 = vunpack.c.h.b16 %v2707
        %v2916 = vunpack.c.l.b16 %v2708
        %v2917 = vunpack.c.l.b16 %v2709
        %v2918 = vunpack.c.h.b16 %v2709
        %v2919 = vunpack.c.l.b16 %v2710
        %v2920 = vpack.c.b16 %v2827, %v2824
        %v2921 = vpack.c.b16 %v2828, %v2825
        %v2922 = vpack.c.b16 %v2829, %v2826
        %v2923 = vpack.c.b16 %v2833, %v2830
        %v2924 = vpack.c.b16 %v2834, %v2831
        %v2925 = vpack.c.b16 %v2835, %v2832
        %v2926 = vpack.c.b16 %v2839, %v2836
        %v2927 = vpack.c.b16 %v2840, %v2837
        %v2928 = vpack.c.b16 %v2841, %v2838
        %v2929 = vpack.c.b16 %v2845, %v2842
        %v2930 = vpack.c.b16 %v2846, %v2843
        %v2931 = vpack.c.b16 %v2847, %v2844
        %v2932 = vpack.c.b16 %v2851, %v2848
        %v2933 = vpack.c.b16 %v2852, %v2849
        %v2934 = vpack.c.b16 %v2853, %v2850
        %v2935 = vpack.c.b16 %v2857, %v2854
        %v2936 = vpack.c.b16 %v2858, %v2855
        %v2937 = vpack.c.b16 %v2859, %v2856
        %v2938 = vpack.c.b16 %v2863, %v2860
        %v2939 = vpack.c.b16 %v2864, %v2861
        %v2940 = vpack.c.b16 %v2865, %v2862
        %v2941 = vpack.c.b16 %v2869, %v2866
        %v2942 = vpack.c.b16 %v2870, %v2867
        %v2943 = vpack.c.b16 %v2871, %v2868
        %v2944 = vpack.c.b16 %v2875, %v2872
        %v2945 = vpack.c.b16 %v2876, %v2873
        %v2946 = vpack.c.b16 %v2877, %v2874
        %v2947 = vpack.c.b16 %v2881, %v2878
        %v2948 = vpack.c.b16 %v2882, %v2879
        %v2949 = vpack.c.b16 %v2883, %v2880
        %v2950 = vpack.c.b16 %v2887, %v2884
        %v2951 = vpack.c.b16 %v2888, %v2885
        %v2952 = vpack.c.b16 %v2889, %v2886
        %v2953 = vpack.c.b16 %v2893, %v2890
        %v2954 = vpack.c.b16 %v2894, %v2891
        %v2955 = vpack.c.b16 %v2895, %v2892
        %v2956 = vpack.c.b16 %v2899, %v2896
        %v2957 = vpack.c.b16 %v2900, %v2897
        %v2958 = vpack.c.b16 %v2901, %v2898
        %v2959 = vpack.c.b16 %v2905, %v2902
        %v2960 = vpack.c.b16 %v2906, %v2903
        %v2961 = vpack.c.b16 %v2907, %v2904
        %v2962 = vpack.c.b16 %v2911, %v2908
        %v2963 = vpack.c.b16 %v2912, %v2909
        %v2964 = vpack.c.b16 %v2913, %v2910
        %v2965 = vpack.c.b16 %v2917, %v2914
        %v2966 = vpack.c.b16 %v2918, %v2915
        %v2967 = vpack.c.b16 %v2919, %v2916
        %v3064 = vunpack.c.l.b16 %v2712
        %v3065 = vunpack.c.l.b16 %v2713
        %v3066 = vunpack.c.l.b16 %v2714
        %v3067 = vunpack.c.l.b16 %v2715
        %v3068 = vunpack.c.l.b16 %v2716
        %v3069 = vunpack.c.l.b16 %v2717
        %v3070 = vunpack.c.l.b16 %v2718
        %v3071 = vunpack.c.l.b16 %v2719
        %v3072 = vunpack.c.l.b16 %v2720
        %v3073 = vunpack.c.l.b16 %v2721
        %v3074 = vunpack.c.l.b16 %v2722
        %v3075 = vunpack.c.l.b16 %v2723
        %v3076 = vunpack.c.l.b16 %v2724
        %v3077 = vunpack.c.l.b16 %v2725
        %v3078 = vunpack.c.l.b16 %v2726
        %v3079 = vunpack.c.l.b16 %v2727
        %v3080 = vunpack.c.l.b16 %v2728
        %v3081 = vunpack.c.l.b16 %v2729
        %v3082 = vunpack.c.l.b16 %v2730
        %v3083 = vunpack.c.l.b16 %v2731
        %v3084 = vunpack.c.l.b16 %v2732
        %v3085 = vunpack.c.l.b16 %v2733
        %v3086 = vunpack.c.l.b16 %v2734
        %v3087 = vunpack.c.l.b16 %v2735
        %v3088 = vunpack.c.l.b16 %v2736
        %v3089 = vunpack.c.l.b16 %v2737
        %v3090 = vunpack.c.l.b16 %v2738
        %v3091 = vunpack.c.l.b16 %v2739
        %v3092 = vunpack.c.l.b16 %v2740
        %v3093 = vunpack.c.l.b16 %v2741
        %v3094 = vunpack.c.l.b16 %v2742
        %v3095 = vunpack.c.l.b16 %v2743
        %v3096 = vunpack.c.l.b16 %v2744
        %v3097 = vunpack.c.l.b16 %v2745
        %v3098 = vunpack.c.l.b16 %v2746
        %v3099 = vunpack.c.l.b16 %v2747
        %v3100 = vunpack.c.l.b16 %v2748
        %v3101 = vunpack.c.l.b16 %v2749
        %v3102 = vunpack.c.l.b16 %v2750
        %v3103 = vunpack.c.l.b16 %v2751
        %v3104 = vunpack.c.l.b16 %v2752
        %v3105 = vunpack.c.l.b16 %v2753
        %v3106 = vunpack.c.l.b16 %v2754
        %v3107 = vunpack.c.l.b16 %v2755
        %v3108 = vunpack.c.l.b16 %v2756
        %v3109 = vunpack.c.l.b16 %v2757
        %v3110 = vunpack.c.l.b16 %v2758
        %v3111 = vunpack.c.l.b16 %v2759
        %v3112 = vpack.c.b16 %v3065, %v3064
        %v3113 = vpack.c.b16 %v3067, %v3066
        %v3114 = vpack.c.b16 %v3069, %v3068
        %v3115 = vpack.c.b16 %v3071, %v3070
        %v3116 = vpack.c.b16 %v3073, %v3072
        %v3117 = vpack.c.b16 %v3075, %v3074
        %v3118 = vpack.c.b16 %v3077, %v3076
        %v3119 = vpack.c.b16 %v3079, %v3078
        %v3120 = vpack.c.b16 %v3081, %v3080
        %v3121 = vpack.c.b16 %v3083, %v3082
        %v3122 = vpack.c.b16 %v3085, %v3084
        %v3123 = vpack.c.b16 %v3087, %v3086
        %v3124 = vpack.c.b16 %v3089, %v3088
        %v3125 = vpack.c.b16 %v3091, %v3090
        %v3126 = vpack.c.b16 %v3093, %v3092
        %v3127 = vpack.c.b16 %v3095, %v3094
        %v3128 = vpack.c.b16 %v3097, %v3096
        %v3129 = vpack.c.b16 %v3099, %v3098
        %v3130 = vpack.c.b16 %v3101, %v3100
        %v3131 = vpack.c.b16 %v3103, %v3102
        %v3132 = vpack.c.b16 %v3105, %v3104
        %v3133 = vpack.c.b16 %v3107, %v3106
        %v3134 = vpack.c.b16 %v3109, %v3108
        %v3135 = vpack.c.b16 %v3111, %v3110
        %3160 = vmatprep.subr.bf16.mxu0 0
        %3161 = vmatpush1.bf16.msra.mxu0 %v3119
        %3162 = vmatprep.subr.bf16.mxu0 0
        %3163 = vmatpush1.bf16.msra.mxu0 %v3118
        %3164 = vmatprep.subr.bf16.mxu0 0
        %3165 = vmatpush1.bf16.msra.mxu0 %v3117
        %3166 = vmatprep.subr.bf16.mxu0 0
        %3167 = vmatpush1.bf16.msra.mxu0 %v3116
        %3168 = vmatprep.subr.bf16.mxu0 0
        %3169 = vmatpush1.bf16.msra.mxu0 %v3115
        %3170 = vmatprep.subr.bf16.mxu0 0
        %3171 = vmatpush1.bf16.msra.mxu0 %v3114
        %3172 = vmatprep.subr.bf16.mxu0 0
        %3173 = vmatpush1.bf16.msra.mxu0 %v3113
        %3174 = vmatprep.subr.bf16.mxu0 0
        %3175 = vmatpush1.bf16.msra.mxu0 %v3112
        %3176 = vmatprep.subr.bf16.mxu0 0
        %3177 = vmatpush2.bf16.msra.mxu0 %v3127
        %3178 = vmatprep.subr.bf16.mxu0 0
        %3179 = vmatpush2.bf16.msra.mxu0 %v3126
        %3180 = vmatprep.subr.bf16.mxu0 0
        %3181 = vmatpush2.bf16.msra.mxu0 %v3125
        %3182 = vmatprep.subr.bf16.mxu0 0
        %3183 = vmatpush2.bf16.msra.mxu0 %v3124
        %3184 = vmatprep.subr.bf16.mxu0 0
        %3185 = vmatpush2.bf16.msra.mxu0 %v3123
        %3186 = vmatprep.subr.bf16.mxu0 0
        %3187 = vmatpush2.bf16.msra.mxu0 %v3122
        %3188 = vmatprep.subr.bf16.mxu0 0
        %3189 = vmatpush2.bf16.msra.mxu0 %v3121
        %3190 = vmatprep.subr.bf16.mxu0 0
        %3191 = vmatpush2.bf16.msra.mxu0 %v3120
        %3192 = vmatprep.mubr.bf16.mxu0 %v2921
        %3193 = vmatmul.mubr.bf16.gmra.mxu0 %v2920
        %v3194 = vpop.f32.mrf.mxu0
        %v3195 = vadd.f32 0.0, %v3194
        %v3196 = vpop.f32.mrf.mxu0
        %v3197 = vpop.f32.mrf.mxu0
        %v3198 = vadd.f32 0.0, %v3197
        %v3199 = vpop.f32.mrf.mxu0
        %3200 = vmatprep.mubr.bf16.mxu0 %v2924
        %3201 = vmatmul.mubr.bf16.gmra.mxu0 %v2923
        %v3202 = vpop.f32.mrf.mxu0
        %v3203 = vadd.f32 0.0, %v3202
        %v3204 = vpop.f32.mrf.mxu0
        %v3205 = vpop.f32.mrf.mxu0
        %v3206 = vadd.f32 0.0, %v3205
        %v3207 = vpop.f32.mrf.mxu0
        %3208 = vmatprep.mubr.bf16.mxu0 %v2927
        %3209 = vmatmul.mubr.bf16.gmra.mxu0 %v2926
        %v3210 = vpop.f32.mrf.mxu0
        %v3211 = vadd.f32 0.0, %v3210
        %v3212 = vpop.f32.mrf.mxu0
        %v3213 = vpop.f32.mrf.mxu0
        %v3214 = vadd.f32 0.0, %v3213
        %v3215 = vpop.f32.mrf.mxu0
        %3216 = vmatprep.mubr.bf16.mxu0 %v2930
        %3217 = vmatmul.mubr.bf16.gmra.mxu0 %v2929
        %v3218 = vpop.f32.mrf.mxu0
        %v3219 = vadd.f32 0.0, %v3218
        %v3220 = vpop.f32.mrf.mxu0
        %v3221 = vpop.f32.mrf.mxu0
        %v3222 = vadd.f32 0.0, %v3221
        %v3223 = vpop.f32.mrf.mxu0
        %3224 = vmatprep.mubr.bf16.mxu0 %v2933
        %3225 = vmatmul.mubr.bf16.gmra.mxu0 %v2932
        %v3226 = vpop.f32.mrf.mxu0
        %v3227 = vadd.f32 0.0, %v3226
        %v3228 = vpop.f32.mrf.mxu0
        %v3229 = vpop.f32.mrf.mxu0
        %v3230 = vadd.f32 0.0, %v3229
        %v3231 = vpop.f32.mrf.mxu0
        %3232 = vmatprep.mubr.bf16.mxu0 %v2936
        %3233 = vmatmul.mubr.bf16.gmra.mxu0 %v2935
        %v3234 = vpop.f32.mrf.mxu0
        %v3235 = vadd.f32 0.0, %v3234
        %v3236 = vpop.f32.mrf.mxu0
        %v3237 = vpop.f32.mrf.mxu0
        %v3238 = vadd.f32 0.0, %v3237
        %v3239 = vpop.f32.mrf.mxu0
        %3240 = vmatprep.mubr.bf16.mxu0 %v2939
        %3241 = vmatmul.mubr.bf16.gmra.mxu0 %v2938
        %v3242 = vpop.f32.mrf.mxu0
        %v3243 = vadd.f32 0.0, %v3242
        %v3244 = vpop.f32.mrf.mxu0
        %v3245 = vpop.f32.mrf.mxu0
        %v3246 = vadd.f32 0.0, %v3245
        %v3247 = vpop.f32.mrf.mxu0
        %3248 = vmatprep.mubr.bf16.mxu0 %v2942
        %3249 = vmatmul.mubr.bf16.gmra.mxu0 %v2941
        %v3250 = vpop.f32.mrf.mxu0
        %v3251 = vadd.f32 0.0, %v3250
        %v3252 = vpop.f32.mrf.mxu0
        %v3253 = vpop.f32.mrf.mxu0
        %v3254 = vadd.f32 0.0, %v3253
        %v3255 = vpop.f32.mrf.mxu0
        %3256 = vmatprep.mubr.bf16.mxu0 %v2945
        %3257 = vmatmul.mubr.bf16.gmra.mxu0 %v2944
        %v3258 = vpop.f32.mrf.mxu0
        %v3259 = vadd.f32 0.0, %v3258
        %v3260 = vpop.f32.mrf.mxu0
        %v3261 = vpop.f32.mrf.mxu0
        %v3262 = vadd.f32 0.0, %v3261
        %v3263 = vpop.f32.mrf.mxu0
        %3264 = vmatprep.mubr.bf16.mxu0 %v2948
        %3265 = vmatmul.mubr.bf16.gmra.mxu0 %v2947
        %v3266 = vpop.f32.mrf.mxu0
        %v3267 = vadd.f32 0.0, %v3266
        %v3268 = vpop.f32.mrf.mxu0
        %v3269 = vpop.f32.mrf.mxu0
        %v3270 = vadd.f32 0.0, %v3269
        %v3271 = vpop.f32.mrf.mxu0
        %3272 = vmatprep.mubr.bf16.mxu0 %v2951
        %3273 = vmatmul.mubr.bf16.gmra.mxu0 %v2950
        %v3274 = vpop.f32.mrf.mxu0
        %v3275 = vadd.f32 0.0, %v3274
        %v3276 = vpop.f32.mrf.mxu0
        %v3277 = vpop.f32.mrf.mxu0
        %v3278 = vadd.f32 0.0, %v3277
        %v3279 = vpop.f32.mrf.mxu0
        %3280 = vmatprep.mubr.bf16.mxu0 %v2954
        %3281 = vmatmul.mubr.bf16.gmra.mxu0 %v2953
        %v3282 = vpop.f32.mrf.mxu0
        %v3283 = vadd.f32 0.0, %v3282
        %v3284 = vpop.f32.mrf.mxu0
        %v3285 = vpop.f32.mrf.mxu0
        %v3286 = vadd.f32 0.0, %v3285
        %v3287 = vpop.f32.mrf.mxu0
        %3288 = vmatprep.mubr.bf16.mxu0 %v2957
        %3289 = vmatmul.mubr.bf16.gmra.mxu0 %v2956
        %v3290 = vpop.f32.mrf.mxu0
        %v3291 = vadd.f32 0.0, %v3290
        %v3292 = vpop.f32.mrf.mxu0
        %v3293 = vpop.f32.mrf.mxu0
        %v3294 = vadd.f32 0.0, %v3293
        %v3295 = vpop.f32.mrf.mxu0
        %3296 = vmatprep.mubr.bf16.mxu0 %v2960
        %3297 = vmatmul.mubr.bf16.gmra.mxu0 %v2959
        %v3298 = vpop.f32.mrf.mxu0
        %v3299 = vadd.f32 0.0, %v3298
        %v3300 = vpop.f32.mrf.mxu0
        %v3301 = vpop.f32.mrf.mxu0
        %v3302 = vadd.f32 0.0, %v3301
        %v3303 = vpop.f32.mrf.mxu0
        %3304 = vmatprep.mubr.bf16.mxu0 %v2963
        %3305 = vmatmul.mubr.bf16.gmra.mxu0 %v2962
        %v3306 = vpop.f32.mrf.mxu0
        %v3307 = vadd.f32 0.0, %v3306
        %v3308 = vpop.f32.mrf.mxu0
        %v3309 = vpop.f32.mrf.mxu0
        %v3310 = vadd.f32 0.0, %v3309
        %v3311 = vpop.f32.mrf.mxu0
        %3312 = vmatprep.mubr.bf16.mxu0 %v2966
        %3313 = vmatmul.mubr.bf16.gmra.mxu0 %v2965
        %v3314 = vpop.f32.mrf.mxu0
        %v3315 = vadd.f32 0.0, %v3314
        %v3316 = vpop.f32.mrf.mxu0
        %v3317 = vpop.f32.mrf.mxu0
        %v3318 = vadd.f32 0.0, %v3317
        %v3319 = vpop.f32.mrf.mxu0
        %3320 = vdwg.mxu0
        %3321 = vmatprep.subr.bf16.mxu0 0
        %3322 = vmatpush1.bf16.msra.mxu0 %v3135
        %3323 = vmatprep.subr.bf16.mxu0 0
        %3324 = vmatpush1.bf16.msra.mxu0 %v3134
        %3325 = vmatprep.subr.bf16.mxu0 0
        %3326 = vmatpush1.bf16.msra.mxu0 %v3133
        %3327 = vmatprep.subr.bf16.mxu0 0
        %3328 = vmatpush1.bf16.msra.mxu0 %v3132
        %3329 = vmatprep.subr.bf16.mxu0 0
        %3330 = vmatpush1.bf16.msra.mxu0 %v3131
        %3331 = vmatprep.subr.bf16.mxu0 0
        %3332 = vmatpush1.bf16.msra.mxu0 %v3130
        %3333 = vmatprep.subr.bf16.mxu0 0
        %3334 = vmatpush1.bf16.msra.mxu0 %v3129
        %3335 = vmatprep.subr.bf16.mxu0 0
        %3336 = vmatpush1.bf16.msra.mxu0 %v3128
        %3337 = vmatprep.subr.bf16.mxu0 0
        %3338 = vmatpush2.bf16.msra.mxu0 0
        %3339 = vmatprep.subr.bf16.mxu0 0
        %3340 = vmatpush2.bf16.msra.mxu0 0
        %3341 = vmatprep.subr.bf16.mxu0 0
        %3342 = vmatpush2.bf16.msra.mxu0 0
        %3343 = vmatprep.subr.bf16.mxu0 0
        %3344 = vmatpush2.bf16.msra.mxu0 0
        %3345 = vmatprep.subr.bf16.mxu0 0
        %3346 = vmatpush2.bf16.msra.mxu0 0
        %3347 = vmatprep.subr.bf16.mxu0 0
        %3348 = vmatpush2.bf16.msra.mxu0 0
        %3349 = vmatprep.subr.bf16.mxu0 0
        %3350 = vmatpush2.bf16.msra.mxu0 0
        %3351 = vmatprep.subr.bf16.mxu0 0
        %3352 = vmatpush2.bf16.msra.mxu0 0
        %3353 = vmatprep.mubr.bf16.mxu0 0
        %3354 = vmatmul.mubr.bf16.gmra.mxu0 %v2922
        %v3355 = vpop.f32.mrf.mxu0
        %v3356 = vadd.f32 %v3195, %v3355
        %v3357 = vpop.f32.mrf.mxu0
        %v3358 = vpop.f32.mrf.mxu0
        %v3359 = vadd.f32 %v3198, %v3358
        %v3360 = vpop.f32.mrf.mxu0
        %3361 = vmatprep.mubr.bf16.mxu0 0
        %3362 = vmatmul.mubr.bf16.gmra.mxu0 %v2925
        %v3363 = vpop.f32.mrf.mxu0
        %v3364 = vadd.f32 %v3203, %v3363
        %v3365 = vpop.f32.mrf.mxu0
        %v3366 = vpop.f32.mrf.mxu0
        %v3367 = vadd.f32 %v3206, %v3366
        %v3368 = vpop.f32.mrf.mxu0
        %3369 = vmatprep.mubr.bf16.mxu0 0
        %3370 = vmatmul.mubr.bf16.gmra.mxu0 %v2928
        %v3371 = vpop.f32.mrf.mxu0
        %v3372 = vadd.f32 %v3211, %v3371
        %v3373 = vpop.f32.mrf.mxu0
        %v3374 = vpop.f32.mrf.mxu0
        %v3375 = vadd.f32 %v3214, %v3374
        %v3376 = vpop.f32.mrf.mxu0
        %3377 = vmatprep.mubr.bf16.mxu0 0
        %3378 = vmatmul.mubr.bf16.gmra.mxu0 %v2931
        %v3379 = vpop.f32.mrf.mxu0
        %v3380 = vadd.f32 %v3219, %v3379
        %v3381 = vpop.f32.mrf.mxu0
        %v3382 = vpop.f32.mrf.mxu0
        %v3383 = vadd.f32 %v3222, %v3382
        %v3384 = vpop.f32.mrf.mxu0
        %3385 = vmatprep.mubr.bf16.mxu0 0
        %3386 = vmatmul.mubr.bf16.gmra.mxu0 %v2934
        %v3387 = vpop.f32.mrf.mxu0
        %v3388 = vadd.f32 %v3227, %v3387
        %v3389 = vpop.f32.mrf.mxu0
        %v3390 = vpop.f32.mrf.mxu0
        %v3391 = vadd.f32 %v3230, %v3390
        %v3392 = vpop.f32.mrf.mxu0
        %3393 = vmatprep.mubr.bf16.mxu0 0
        %3394 = vmatmul.mubr.bf16.gmra.mxu0 %v2937
        %v3395 = vpop.f32.mrf.mxu0
        %v3396 = vadd.f32 %v3235, %v3395
        %v3397 = vpop.f32.mrf.mxu0
        %v3398 = vpop.f32.mrf.mxu0
        %v3399 = vadd.f32 %v3238, %v3398
        %v3400 = vpop.f32.mrf.mxu0
        %3401 = vmatprep.mubr.bf16.mxu0 0
        %3402 = vmatmul.mubr.bf16.gmra.mxu0 %v2940
        %v3403 = vpop.f32.mrf.mxu0
        %v3404 = vadd.f32 %v3243, %v3403
        %v3405 = vpop.f32.mrf.mxu0
        %v3406 = vpop.f32.mrf.mxu0
        %v3407 = vadd.f32 %v3246, %v3406
        %v3408 = vpop.f32.mrf.mxu0
        %3409 = vmatprep.mubr.bf16.mxu0 0
        %3410 = vmatmul.mubr.bf16.gmra.mxu0 %v2943
        %v3411 = vpop.f32.mrf.mxu0
        %v3412 = vadd.f32 %v3251, %v3411
        %v3413 = vpop.f32.mrf.mxu0
        %v3414 = vpop.f32.mrf.mxu0
        %v3415 = vadd.f32 %v3254, %v3414
        %v3416 = vpop.f32.mrf.mxu0
        %3417 = vmatprep.mubr.bf16.mxu0 0
        %3418 = vmatmul.mubr.bf16.gmra.mxu0 %v2946
        %v3419 = vpop.f32.mrf.mxu0
        %v3420 = vadd.f32 %v3259, %v3419
        %v3421 = vpop.f32.mrf.mxu0
        %v3422 = vpop.f32.mrf.mxu0
        %v3423 = vadd.f32 %v3262, %v3422
        %v3424 = vpop.f32.mrf.mxu0
        %3425 = vmatprep.mubr.bf16.mxu0 0
        %3426 = vmatmul.mubr.bf16.gmra.mxu0 %v2949
        %v3427 = vpop.f32.mrf.mxu0
        %v3428 = vadd.f32 %v3267, %v3427
        %v3429 = vpop.f32.mrf.mxu0
        %v3430 = vpop.f32.mrf.mxu0
        %v3431 = vadd.f32 %v3270, %v3430
        %v3432 = vpop.f32.mrf.mxu0
        %3433 = vmatprep.mubr.bf16.mxu0 0
        %3434 = vmatmul.mubr.bf16.gmra.mxu0 %v2952
        %v3435 = vpop.f32.mrf.mxu0
        %v3436 = vadd.f32 %v3275, %v3435
        %v3437 = vpop.f32.mrf.mxu0
        %v3438 = vpop.f32.mrf.mxu0
        %v3439 = vadd.f32 %v3278, %v3438
        %v3440 = vpop.f32.mrf.mxu0
        %3441 = vmatprep.mubr.bf16.mxu0 0
        %3442 = vmatmul.mubr.bf16.gmra.mxu0 %v2955
        %v3443 = vpop.f32.mrf.mxu0
        %v3444 = vadd.f32 %v3283, %v3443
        %v3445 = vpop.f32.mrf.mxu0
        %v3446 = vpop.f32.mrf.mxu0
        %v3447 = vadd.f32 %v3286, %v3446
        %v3448 = vpop.f32.mrf.mxu0
        %3449 = vmatprep.mubr.bf16.mxu0 0
        %3450 = vmatmul.mubr.bf16.gmra.mxu0 %v2958
        %v3451 = vpop.f32.mrf.mxu0
        %v3452 = vadd.f32 %v3291, %v3451
        %v3453 = vpop.f32.mrf.mxu0
        %v3454 = vpop.f32.mrf.mxu0
        %v3455 = vadd.f32 %v3294, %v3454
        %v3456 = vpop.f32.mrf.mxu0
        %3457 = vmatprep.mubr.bf16.mxu0 0
        %3458 = vmatmul.mubr.bf16.gmra.mxu0 %v2961
        %v3459 = vpop.f32.mrf.mxu0
        %v3460 = vadd.f32 %v3299, %v3459
        %v3461 = vpop.f32.mrf.mxu0
        %v3462 = vpop.f32.mrf.mxu0
        %v3463 = vadd.f32 %v3302, %v3462
        %v3464 = vpop.f32.mrf.mxu0
        %3465 = vmatprep.mubr.bf16.mxu0 0
        %3466 = vmatmul.mubr.bf16.gmra.mxu0 %v2964
        %v3467 = vpop.f32.mrf.mxu0
        %v3468 = vadd.f32 %v3307, %v3467
        %v3469 = vpop.f32.mrf.mxu0
        %v3470 = vpop.f32.mrf.mxu0
        %v3471 = vadd.f32 %v3310, %v3470
        %v3472 = vpop.f32.mrf.mxu0
        %3473 = vmatprep.mubr.bf16.mxu0 0
        %3474 = vmatmul.mubr.bf16.gmra.mxu0 %v2967
        %v3475 = vpop.f32.mrf.mxu0
        %v3476 = vadd.f32 %v3315, %v3475
        %v3477 = vpop.f32.mrf.mxu0
        %v3478 = vpop.f32.mrf.mxu0
        %v3479 = vadd.f32 %v3318, %v3478
        %v3480 = vpop.f32.mrf.mxu0
        %3481 = vdwg.mxu0
        %v3482 = vld [vmem:[#allocation4] sm:$0xff]
        %v3483 = vld [vmem:[#allocation4 + $0x8] sm:$0xff]
        %v3484 = vld [vmem:[#allocation4 + $0x10] sm:$0xff]
        %v3485 = vld [vmem:[#allocation4 + $0x18] sm:$0xff]
        %v3486 = vld [vmem:[#allocation4 + $0x20] sm:$0xff]
        %v3487 = vld [vmem:[#allocation4 + $0x28] sm:$0xff]
        %v3488 = vld [vmem:[#allocation4 + $0x30] sm:$0xff]
        %v3489 = vld [vmem:[#allocation4 + $0x38] sm:$0xff]
        %v3490 = vld [vmem:[#allocation4 + $0x40] sm:$0xff]
        %v3491 = vld [vmem:[#allocation4 + $0x48] sm:$0xff]
        %v3492 = vld [vmem:[#allocation4 + $0x50] sm:$0xff]
        %v3493 = vld [vmem:[#allocation4 + $0x58] sm:$0xff]
        %v3494 = vld [vmem:[#allocation4 + $0x60] sm:$0xff]
        %v3495 = vld [vmem:[#allocation4 + $0x68] sm:$0xff]
        %v3496 = vld [vmem:[#allocation4 + $0x70] sm:$0xff]
        %v3497 = vld [vmem:[#allocation4 + $0x78] sm:$0xff]
        %v3498 = vld [vmem:[#allocation4 + $0x80] sm:$0xff]
        %v3499 = vld [vmem:[#allocation4 + $0x88] sm:$0xff]
        %v3500 = vld [vmem:[#allocation4 + $0x90] sm:$0xff]
        %v3501 = vld [vmem:[#allocation4 + $0x98] sm:$0xff]
        %v3502 = vld [vmem:[#allocation4 + $0xa0] sm:$0xff]
        %v3503 = vld [vmem:[#allocation4 + $0xa8] sm:$0xff]
        %v3504 = vld [vmem:[#allocation4 + $0xb0] sm:$0xff]
        %v3505 = vld [vmem:[#allocation4 + $0xb8] sm:$0xff]
        %v3506 = vld [vmem:[#allocation4 + $0xc0] sm:$0xff]
        %v3507 = vld [vmem:[#allocation4 + $0xc8] sm:$0xff]
        %v3508 = vld [vmem:[#allocation4 + $0xd0] sm:$0xff]
        %v3509 = vld [vmem:[#allocation4 + $0xd8] sm:$0xff]
        %v3510 = vld [vmem:[#allocation4 + $0xe0] sm:$0xff]
        %v3511 = vld [vmem:[#allocation4 + $0xe8] sm:$0xff]
        %v3512 = vld [vmem:[#allocation4 + $0xf0] sm:$0xff]
        %v3513 = vld [vmem:[#allocation4 + $0xf8] sm:$0xff]
        %v3514 = vadd.f32 %v3482, %v3356
        %v3515 = vadd.f32 %v3483, %v3359
        %v3516 = vadd.f32 %v3484, %v3364
        %v3517 = vadd.f32 %v3485, %v3367
        %v3518 = vadd.f32 %v3486, %v3372
        %v3519 = vadd.f32 %v3487, %v3375
        %v3520 = vadd.f32 %v3488, %v3380
        %v3521 = vadd.f32 %v3489, %v3383
        %v3522 = vadd.f32 %v3490, %v3388
        %v3523 = vadd.f32 %v3491, %v3391
        %v3524 = vadd.f32 %v3492, %v3396
        %v3525 = vadd.f32 %v3493, %v3399
        %v3526 = vadd.f32 %v3494, %v3404
        %v3527 = vadd.f32 %v3495, %v3407
        %v3528 = vadd.f32 %v3496, %v3412
        %v3529 = vadd.f32 %v3497, %v3415
        %v3530 = vadd.f32 %v3498, %v3420
        %v3531 = vadd.f32 %v3499, %v3423
        %v3532 = vadd.f32 %v3500, %v3428
        %v3533 = vadd.f32 %v3501, %v3431
        %v3534 = vadd.f32 %v3502, %v3436
        %v3535 = vadd.f32 %v3503, %v3439
        %v3536 = vadd.f32 %v3504, %v3444
        %v3537 = vadd.f32 %v3505, %v3447
        %v3538 = vadd.f32 %v3506, %v3452
        %v3539 = vadd.f32 %v3507, %v3455
        %v3540 = vadd.f32 %v3508, %v3460
        %v3541 = vadd.f32 %v3509, %v3463
        %v3542 = vadd.f32 %v3510, %v3468
        %v3543 = vadd.f32 %v3511, %v3471
        %v3544 = vadd.f32 %v3512, %v3476
        %v3545 = vadd.f32 %v3513, %v3479
        %3546 = vst [vmem:[#allocation4] sm:$0xff] %v3514
        %3547 = vst [vmem:[#allocation4 + $0x8] sm:$0xff] %v3515
        %3548 = vst [vmem:[#allocation4 + $0x10] sm:$0xff] %v3516
        %3549 = vst [vmem:[#allocation4 + $0x18] sm:$0xff] %v3517
        %3550 = vst [vmem:[#allocation4 + $0x20] sm:$0xff] %v3518
        %3551 = vst [vmem:[#allocation4 + $0x28] sm:$0xff] %v3519
        %3552 = vst [vmem:[#allocation4 + $0x30] sm:$0xff] %v3520
        %3553 = vst [vmem:[#allocation4 + $0x38] sm:$0xff] %v3521
        %3554 = vst [vmem:[#allocation4 + $0x40] sm:$0xff] %v3522
        %3555 = vst [vmem:[#allocation4 + $0x48] sm:$0xff] %v3523
        %3556 = vst [vmem:[#allocation4 + $0x50] sm:$0xff] %v3524
        %3557 = vst [vmem:[#allocation4 + $0x58] sm:$0xff] %v3525
        %3558 = vst [vmem:[#allocation4 + $0x60] sm:$0xff] %v3526
        %3559 = vst [vmem:[#allocation4 + $0x68] sm:$0xff] %v3527
        %3560 = vst [vmem:[#allocation4 + $0x70] sm:$0xff] %v3528
        %3561 = vst [vmem:[#allocation4 + $0x78] sm:$0xff] %v3529
        %3562 = vst [vmem:[#allocation4 + $0x80] sm:$0xff] %v3530
        %3563 = vst [vmem:[#allocation4 + $0x88] sm:$0xff] %v3531
        %3564 = vst [vmem:[#allocation4 + $0x90] sm:$0xff] %v3532
        %3565 = vst [vmem:[#allocation4 + $0x98] sm:$0xff] %v3533
        %3566 = vst [vmem:[#allocation4 + $0xa0] sm:$0xff] %v3534
        %3567 = vst [vmem:[#allocation4 + $0xa8] sm:$0xff] %v3535
        %3568 = vst [vmem:[#allocation4 + $0xb0] sm:$0xff] %v3536
        %3569 = vst [vmem:[#allocation4 + $0xb8] sm:$0xff] %v3537
        %3570 = vst [vmem:[#allocation4 + $0xc0] sm:$0xff] %v3538
        %3571 = vst [vmem:[#allocation4 + $0xc8] sm:$0xff] %v3539
        %3572 = vst [vmem:[#allocation4 + $0xd0] sm:$0xff] %v3540
        %3573 = vst [vmem:[#allocation4 + $0xd8] sm:$0xff] %v3541
        %3574 = vst [vmem:[#allocation4 + $0xe0] sm:$0xff] %v3542
        %3575 = vst [vmem:[#allocation4 + $0xe8] sm:$0xff] %v3543
        %3576 = vst [vmem:[#allocation4 + $0xf0] sm:$0xff] %v3544
        %3577 = vst [vmem:[#allocation4 + $0xf8] sm:$0xff] %v3545
        %v3578 = vld [vmem:[#allocation3 + $0x30] sm:$0xff]
        %v3579 = vld [vmem:[#allocation3 + $0x38] sm:$0xf]
        %v3580 = vld [vmem:[#allocation3 + $0x3c] sm:$0xff]
        %v3581 = vld [vmem:[#allocation3 + $0x44] sm:$0xf]
        %v3582 = vld [vmem:[#allocation3 + $0x48] sm:$0xff]
        %v3583 = vld [vmem:[#allocation3 + $0x50] sm:$0xf]
        %v3584 = vld [vmem:[#allocation3 + $0x54] sm:$0xff]
        %v3585 = vld [vmem:[#allocation3 + $0x5c] sm:$0xf]
        %v3586 = vld [vmem:[#allocation3 + $0x60] sm:$0xff]
        %v3587 = vld [vmem:[#allocation3 + $0x68] sm:$0xf]
        %v3588 = vld [vmem:[#allocation3 + $0x6c] sm:$0xff]
        %v3589 = vld [vmem:[#allocation3 + $0x74] sm:$0xf]
        %v3590 = vld [vmem:[#allocation3 + $0x78] sm:$0xff]
        %v3591 = vld [vmem:[#allocation3 + $0x80] sm:$0xf]
        %v3592 = vld [vmem:[#allocation3 + $0x84] sm:$0xff]
        %v3593 = vld [vmem:[#allocation3 + $0x8c] sm:$0xf]
        %v3594 = vld [vmem:[#allocation3 + $0x90] sm:$0xff]
        %v3595 = vld [vmem:[#allocation3 + $0x98] sm:$0xf]
        %v3596 = vld [vmem:[#allocation3 + $0x9c] sm:$0xff]
        %v3597 = vld [vmem:[#allocation3 + $0xa4] sm:$0xf]
        %v3598 = vld [vmem:[#allocation3 + $0xa8] sm:$0xff]
        %v3599 = vld [vmem:[#allocation3 + $0xb0] sm:$0xf]
        %v3600 = vld [vmem:[#allocation3 + $0xb4] sm:$0xff]
        %v3601 = vld [vmem:[#allocation3 + $0xbc] sm:$0xf]
        %v3602 = vld [vmem:[#allocation3 + $0xc0] sm:$0xff]
        %v3603 = vld [vmem:[#allocation3 + $0xc8] sm:$0xf]
        %v3604 = vld [vmem:[#allocation3 + $0xcc] sm:$0xff]
        %v3605 = vld [vmem:[#allocation3 + $0xd4] sm:$0xf]
        %v3606 = vld [vmem:[#allocation3 + $0xd8] sm:$0xff]
        %v3607 = vld [vmem:[#allocation3 + $0xe0] sm:$0xf]
        %v3608 = vld [vmem:[#allocation3 + $0xe4] sm:$0xff]
        %v3609 = vld [vmem:[#allocation3 + $0xec] sm:$0xf]
        %v3610 = vld [vmem:[#allocation3 + $0xf0] sm:$0xff]
        %v3611 = vld [vmem:[#allocation3 + $0xf8] sm:$0xf]
        %v3612 = vld [vmem:[#allocation3 + $0xfc] sm:$0xff]
        %v3613 = vld [vmem:[#allocation3 + $0x104] sm:$0xf]
        %v3614 = vld [vmem:[#allocation3 + $0x108] sm:$0xff]
        %v3615 = vld [vmem:[#allocation3 + $0x110] sm:$0xf]
        %v3616 = vld [vmem:[#allocation3 + $0x114] sm:$0xff]
        %v3617 = vld [vmem:[#allocation3 + $0x11c] sm:$0xf]
        %v3618 = vld [vmem:[#allocation3 + $0x120] sm:$0xff]
        %v3619 = vld [vmem:[#allocation3 + $0x128] sm:$0xf]
        %v3620 = vld [vmem:[#allocation3 + $0x12c] sm:$0xff]
        %v3621 = vld [vmem:[#allocation3 + $0x134] sm:$0xf]
        %v3622 = vld [vmem:[#allocation3 + $0x138] sm:$0xff]
        %v3623 = vld [vmem:[#allocation3 + $0x140] sm:$0xf]
        %v3624 = vld [vmem:[#allocation3 + $0x144] sm:$0xff]
        %v3625 = vld [vmem:[#allocation3 + $0x14c] sm:$0xf]
        %v3626 = vld [vmem:[#allocation3 + $0x150] sm:$0xff]
        %v3627 = vld [vmem:[#allocation3 + $0x158] sm:$0xf]
        %v3628 = vld [vmem:[#allocation3 + $0x15c] sm:$0xff]
        %v3629 = vld [vmem:[#allocation3 + $0x164] sm:$0xf]
        %v3630 = vld [vmem:[#allocation3 + $0x168] sm:$0xff]
        %v3631 = vld [vmem:[#allocation3 + $0x170] sm:$0xf]
        %v3632 = vld [vmem:[#allocation3 + $0x174] sm:$0xff]
        %v3633 = vld [vmem:[#allocation3 + $0x17c] sm:$0xf]
        %v3634 = vld [vmem:[#allocation3 + $0x180] sm:$0xff]
        %v3635 = vld [vmem:[#allocation3 + $0x188] sm:$0xf]
        %v3636 = vld [vmem:[#allocation3 + $0x18c] sm:$0xff]
        %v3637 = vld [vmem:[#allocation3 + $0x194] sm:$0xf]
        %v3638 = vld [vmem:[#allocation3 + $0x198] sm:$0xff]
        %v3639 = vld [vmem:[#allocation3 + $0x1a0] sm:$0xf]
        %v3640 = vld [vmem:[#allocation3 + $0x1a4] sm:$0xff]
        %v3641 = vld [vmem:[#allocation3 + $0x1ac] sm:$0xf]
        %s3642 = scalar_lea.vmem [#allocation8], 384
        %v3643 = vld [vmem:[%s3642] sm:$0xf]
        %v3644 = vld [vmem:[%s3642 + $0x4] sm:$0xf]
        %v3645 = vld [vmem:[%s3642 + $0x8] sm:$0xf]
        %v3646 = vld [vmem:[%s3642 + $0xc] sm:$0xf]
        %v3647 = vld [vmem:[%s3642 + $0x10] sm:$0xf]
        %v3648 = vld [vmem:[%s3642 + $0x14] sm:$0xf]
        %v3649 = vld [vmem:[%s3642 + $0x18] sm:$0xf]
        %v3650 = vld [vmem:[%s3642 + $0x1c] sm:$0xf]
        %v3651 = vld [vmem:[%s3642 + $0x20] sm:$0xf]
        %v3652 = vld [vmem:[%s3642 + $0x24] sm:$0xf]
        %v3653 = vld [vmem:[%s3642 + $0x28] sm:$0xf]
        %v3654 = vld [vmem:[%s3642 + $0x2c] sm:$0xf]
        %v3655 = vld [vmem:[%s3642 + $0x30] sm:$0xf]
        %v3656 = vld [vmem:[%s3642 + $0x34] sm:$0xf]
        %v3657 = vld [vmem:[%s3642 + $0x38] sm:$0xf]
        %v3658 = vld [vmem:[%s3642 + $0x3c] sm:$0xf]
        %v3659 = vld [vmem:[%s3642 + $0x40] sm:$0xf]
        %v3660 = vld [vmem:[%s3642 + $0x44] sm:$0xf]
        %v3661 = vld [vmem:[%s3642 + $0x48] sm:$0xf]
        %v3662 = vld [vmem:[%s3642 + $0x4c] sm:$0xf]
        %v3663 = vld [vmem:[%s3642 + $0x50] sm:$0xf]
        %v3664 = vld [vmem:[%s3642 + $0x54] sm:$0xf]
        %v3665 = vld [vmem:[%s3642 + $0x58] sm:$0xf]
        %v3666 = vld [vmem:[%s3642 + $0x5c] sm:$0xf]
        %v3667 = vld [vmem:[%s3642 + $0x60] sm:$0xf]
        %v3668 = vld [vmem:[%s3642 + $0x64] sm:$0xf]
        %v3669 = vld [vmem:[%s3642 + $0x68] sm:$0xf]
        %v3670 = vld [vmem:[%s3642 + $0x6c] sm:$0xf]
        %v3671 = vld [vmem:[%s3642 + $0x70] sm:$0xf]
        %v3672 = vld [vmem:[%s3642 + $0x74] sm:$0xf]
        %v3673 = vld [vmem:[%s3642 + $0x78] sm:$0xf]
        %v3674 = vld [vmem:[%s3642 + $0x7c] sm:$0xf]
        %v3675 = vld [vmem:[%s3642 + $0x80] sm:$0xf]
        %v3676 = vld [vmem:[%s3642 + $0x84] sm:$0xf]
        %v3677 = vld [vmem:[%s3642 + $0x88] sm:$0xf]
        %v3678 = vld [vmem:[%s3642 + $0x8c] sm:$0xf]
        %v3679 = vld [vmem:[%s3642 + $0x90] sm:$0xf]
        %v3680 = vld [vmem:[%s3642 + $0x94] sm:$0xf]
        %v3681 = vld [vmem:[%s3642 + $0x98] sm:$0xf]
        %v3682 = vld [vmem:[%s3642 + $0x9c] sm:$0xf]
        %v3683 = vld [vmem:[%s3642 + $0xa0] sm:$0xf]
        %v3684 = vld [vmem:[%s3642 + $0xa4] sm:$0xf]
        %v3685 = vld [vmem:[%s3642 + $0xa8] sm:$0xf]
        %v3686 = vld [vmem:[%s3642 + $0xac] sm:$0xf]
        %v3687 = vld [vmem:[%s3642 + $0xb0] sm:$0xf]
        %v3688 = vld [vmem:[%s3642 + $0xb4] sm:$0xf]
        %v3689 = vld [vmem:[%s3642 + $0xb8] sm:$0xf]
        %v3690 = vld [vmem:[%s3642 + $0xbc] sm:$0xf]
        %v3755 = vunpack.c.l.b16 %v3578
        %v3756 = vunpack.c.h.b16 %v3578
        %v3757 = vunpack.c.l.b16 %v3579
        %v3758 = vunpack.c.l.b16 %v3580
        %v3759 = vunpack.c.h.b16 %v3580
        %v3760 = vunpack.c.l.b16 %v3581
        %v3761 = vunpack.c.l.b16 %v3582
        %v3762 = vunpack.c.h.b16 %v3582
        %v3763 = vunpack.c.l.b16 %v3583
        %v3764 = vunpack.c.l.b16 %v3584
        %v3765 = vunpack.c.h.b16 %v3584
        %v3766 = vunpack.c.l.b16 %v3585
        %v3767 = vunpack.c.l.b16 %v3586
        %v3768 = vunpack.c.h.b16 %v3586
        %v3769 = vunpack.c.l.b16 %v3587
        %v3770 = vunpack.c.l.b16 %v3588
        %v3771 = vunpack.c.h.b16 %v3588
        %v3772 = vunpack.c.l.b16 %v3589
        %v3773 = vunpack.c.l.b16 %v3590
        %v3774 = vunpack.c.h.b16 %v3590
        %v3775 = vunpack.c.l.b16 %v3591
        %v3776 = vunpack.c.l.b16 %v3592
        %v3777 = vunpack.c.h.b16 %v3592
        %v3778 = vunpack.c.l.b16 %v3593
        %v3779 = vunpack.c.l.b16 %v3594
        %v3780 = vunpack.c.h.b16 %v3594
        %v3781 = vunpack.c.l.b16 %v3595
        %v3782 = vunpack.c.l.b16 %v3596
        %v3783 = vunpack.c.h.b16 %v3596
        %v3784 = vunpack.c.l.b16 %v3597
        %v3785 = vunpack.c.l.b16 %v3598
        %v3786 = vunpack.c.h.b16 %v3598
        %v3787 = vunpack.c.l.b16 %v3599
        %v3788 = vunpack.c.l.b16 %v3600
        %v3789 = vunpack.c.h.b16 %v3600
        %v3790 = vunpack.c.l.b16 %v3601
        %v3791 = vunpack.c.l.b16 %v3602
        %v3792 = vunpack.c.h.b16 %v3602
        %v3793 = vunpack.c.l.b16 %v3603
        %v3794 = vunpack.c.l.b16 %v3604
        %v3795 = vunpack.c.h.b16 %v3604
        %v3796 = vunpack.c.l.b16 %v3605
        %v3797 = vunpack.c.l.b16 %v3606
        %v3798 = vunpack.c.h.b16 %v3606
        %v3799 = vunpack.c.l.b16 %v3607
        %v3800 = vunpack.c.l.b16 %v3608
        %v3801 = vunpack.c.h.b16 %v3608
        %v3802 = vunpack.c.l.b16 %v3609
        %v3803 = vunpack.c.l.b16 %v3610
        %v3804 = vunpack.c.h.b16 %v3610
        %v3805 = vunpack.c.l.b16 %v3611
        %v3806 = vunpack.c.l.b16 %v3612
        %v3807 = vunpack.c.h.b16 %v3612
        %v3808 = vunpack.c.l.b16 %v3613
        %v3809 = vunpack.c.l.b16 %v3614
        %v3810 = vunpack.c.h.b16 %v3614
        %v3811 = vunpack.c.l.b16 %v3615
        %v3812 = vunpack.c.l.b16 %v3616
        %v3813 = vunpack.c.h.b16 %v3616
        %v3814 = vunpack.c.l.b16 %v3617
        %v3815 = vunpack.c.l.b16 %v3618
        %v3816 = vunpack.c.h.b16 %v3618
        %v3817 = vunpack.c.l.b16 %v3619
        %v3818 = vunpack.c.l.b16 %v3620
        %v3819 = vunpack.c.h.b16 %v3620
        %v3820 = vunpack.c.l.b16 %v3621
        %v3821 = vunpack.c.l.b16 %v3622
        %v3822 = vunpack.c.h.b16 %v3622
        %v3823 = vunpack.c.l.b16 %v3623
        %v3824 = vunpack.c.l.b16 %v3624
        %v3825 = vunpack.c.h.b16 %v3624
        %v3826 = vunpack.c.l.b16 %v3625
        %v3827 = vunpack.c.l.b16 %v3626
        %v3828 = vunpack.c.h.b16 %v3626
        %v3829 = vunpack.c.l.b16 %v3627
        %v3830 = vunpack.c.l.b16 %v3628
        %v3831 = vunpack.c.h.b16 %v3628
        %v3832 = vunpack.c.l.b16 %v3629
        %v3833 = vunpack.c.l.b16 %v3630
        %v3834 = vunpack.c.h.b16 %v3630
        %v3835 = vunpack.c.l.b16 %v3631
        %v3836 = vunpack.c.l.b16 %v3632
        %v3837 = vunpack.c.h.b16 %v3632
        %v3838 = vunpack.c.l.b16 %v3633
        %v3839 = vunpack.c.l.b16 %v3634
        %v3840 = vunpack.c.h.b16 %v3634
        %v3841 = vunpack.c.l.b16 %v3635
        %v3842 = vunpack.c.l.b16 %v3636
        %v3843 = vunpack.c.h.b16 %v3636
        %v3844 = vunpack.c.l.b16 %v3637
        %v3845 = vunpack.c.l.b16 %v3638
        %v3846 = vunpack.c.h.b16 %v3638
        %v3847 = vunpack.c.l.b16 %v3639
        %v3848 = vunpack.c.l.b16 %v3640
        %v3849 = vunpack.c.h.b16 %v3640
        %v3850 = vunpack.c.l.b16 %v3641
        %v3851 = vpack.c.b16 %v3758, %v3755
        %v3852 = vpack.c.b16 %v3759, %v3756
        %v3853 = vpack.c.b16 %v3760, %v3757
        %v3854 = vpack.c.b16 %v3764, %v3761
        %v3855 = vpack.c.b16 %v3765, %v3762
        %v3856 = vpack.c.b16 %v3766, %v3763
        %v3857 = vpack.c.b16 %v3770, %v3767
        %v3858 = vpack.c.b16 %v3771, %v3768
        %v3859 = vpack.c.b16 %v3772, %v3769
        %v3860 = vpack.c.b16 %v3776, %v3773
        %v3861 = vpack.c.b16 %v3777, %v3774
        %v3862 = vpack.c.b16 %v3778, %v3775
        %v3863 = vpack.c.b16 %v3782, %v3779
        %v3864 = vpack.c.b16 %v3783, %v3780
        %v3865 = vpack.c.b16 %v3784, %v3781
        %v3866 = vpack.c.b16 %v3788, %v3785
        %v3867 = vpack.c.b16 %v3789, %v3786
        %v3868 = vpack.c.b16 %v3790, %v3787
        %v3869 = vpack.c.b16 %v3794, %v3791
        %v3870 = vpack.c.b16 %v3795, %v3792
        %v3871 = vpack.c.b16 %v3796, %v3793
        %v3872 = vpack.c.b16 %v3800, %v3797
        %v3873 = vpack.c.b16 %v3801, %v3798
        %v3874 = vpack.c.b16 %v3802, %v3799
        %v3875 = vpack.c.b16 %v3806, %v3803
        %v3876 = vpack.c.b16 %v3807, %v3804
        %v3877 = vpack.c.b16 %v3808, %v3805
        %v3878 = vpack.c.b16 %v3812, %v3809
        %v3879 = vpack.c.b16 %v3813, %v3810
        %v3880 = vpack.c.b16 %v3814, %v3811
        %v3881 = vpack.c.b16 %v3818, %v3815
        %v3882 = vpack.c.b16 %v3819, %v3816
        %v3883 = vpack.c.b16 %v3820, %v3817
        %v3884 = vpack.c.b16 %v3824, %v3821
        %v3885 = vpack.c.b16 %v3825, %v3822
        %v3886 = vpack.c.b16 %v3826, %v3823
        %v3887 = vpack.c.b16 %v3830, %v3827
        %v3888 = vpack.c.b16 %v3831, %v3828
        %v3889 = vpack.c.b16 %v3832, %v3829
        %v3890 = vpack.c.b16 %v3836, %v3833
        %v3891 = vpack.c.b16 %v3837, %v3834
        %v3892 = vpack.c.b16 %v3838, %v3835
        %v3893 = vpack.c.b16 %v3842, %v3839
        %v3894 = vpack.c.b16 %v3843, %v3840
        %v3895 = vpack.c.b16 %v3844, %v3841
        %v3896 = vpack.c.b16 %v3848, %v3845
        %v3897 = vpack.c.b16 %v3849, %v3846
        %v3898 = vpack.c.b16 %v3850, %v3847
        %v3995 = vunpack.c.l.b16 %v3643
        %v3996 = vunpack.c.l.b16 %v3644
        %v3997 = vunpack.c.l.b16 %v3645
        %v3998 = vunpack.c.l.b16 %v3646
        %v3999 = vunpack.c.l.b16 %v3647
        %v4000 = vunpack.c.l.b16 %v3648
        %v4001 = vunpack.c.l.b16 %v3649
        %v4002 = vunpack.c.l.b16 %v3650
        %v4003 = vunpack.c.l.b16 %v3651
        %v4004 = vunpack.c.l.b16 %v3652
        %v4005 = vunpack.c.l.b16 %v3653
        %v4006 = vunpack.c.l.b16 %v3654
        %v4007 = vunpack.c.l.b16 %v3655
        %v4008 = vunpack.c.l.b16 %v3656
        %v4009 = vunpack.c.l.b16 %v3657
        %v4010 = vunpack.c.l.b16 %v3658
        %v4011 = vunpack.c.l.b16 %v3659
        %v4012 = vunpack.c.l.b16 %v3660
        %v4013 = vunpack.c.l.b16 %v3661
        %v4014 = vunpack.c.l.b16 %v3662
        %v4015 = vunpack.c.l.b16 %v3663
        %v4016 = vunpack.c.l.b16 %v3664
        %v4017 = vunpack.c.l.b16 %v3665
        %v4018 = vunpack.c.l.b16 %v3666
        %v4019 = vunpack.c.l.b16 %v3667
        %v4020 = vunpack.c.l.b16 %v3668
        %v4021 = vunpack.c.l.b16 %v3669
        %v4022 = vunpack.c.l.b16 %v3670
        %v4023 = vunpack.c.l.b16 %v3671
        %v4024 = vunpack.c.l.b16 %v3672
        %v4025 = vunpack.c.l.b16 %v3673
        %v4026 = vunpack.c.l.b16 %v3674
        %v4027 = vunpack.c.l.b16 %v3675
        %v4028 = vunpack.c.l.b16 %v3676
        %v4029 = vunpack.c.l.b16 %v3677
        %v4030 = vunpack.c.l.b16 %v3678
        %v4031 = vunpack.c.l.b16 %v3679
        %v4032 = vunpack.c.l.b16 %v3680
        %v4033 = vunpack.c.l.b16 %v3681
        %v4034 = vunpack.c.l.b16 %v3682
        %v4035 = vunpack.c.l.b16 %v3683
        %v4036 = vunpack.c.l.b16 %v3684
        %v4037 = vunpack.c.l.b16 %v3685
        %v4038 = vunpack.c.l.b16 %v3686
        %v4039 = vunpack.c.l.b16 %v3687
        %v4040 = vunpack.c.l.b16 %v3688
        %v4041 = vunpack.c.l.b16 %v3689
        %v4042 = vunpack.c.l.b16 %v3690
        %v4043 = vpack.c.b16 %v3996, %v3995
        %v4044 = vpack.c.b16 %v3998, %v3997
        %v4045 = vpack.c.b16 %v4000, %v3999
        %v4046 = vpack.c.b16 %v4002, %v4001
        %v4047 = vpack.c.b16 %v4004, %v4003
        %v4048 = vpack.c.b16 %v4006, %v4005
        %v4049 = vpack.c.b16 %v4008, %v4007
        %v4050 = vpack.c.b16 %v4010, %v4009
        %v4051 = vpack.c.b16 %v4012, %v4011
        %v4052 = vpack.c.b16 %v4014, %v4013
        %v4053 = vpack.c.b16 %v4016, %v4015
        %v4054 = vpack.c.b16 %v4018, %v4017
        %v4055 = vpack.c.b16 %v4020, %v4019
        %v4056 = vpack.c.b16 %v4022, %v4021
        %v4057 = vpack.c.b16 %v4024, %v4023
        %v4058 = vpack.c.b16 %v4026, %v4025
        %v4059 = vpack.c.b16 %v4028, %v4027
        %v4060 = vpack.c.b16 %v4030, %v4029
        %v4061 = vpack.c.b16 %v4032, %v4031
        %v4062 = vpack.c.b16 %v4034, %v4033
        %v4063 = vpack.c.b16 %v4036, %v4035
        %v4064 = vpack.c.b16 %v4038, %v4037
        %v4065 = vpack.c.b16 %v4040, %v4039
        %v4066 = vpack.c.b16 %v4042, %v4041
        %4091 = vmatprep.subr.bf16.mxu0 0
        %4092 = vmatpush1.bf16.msra.mxu0 %v4050
        %4093 = vmatprep.subr.bf16.mxu0 0
        %4094 = vmatpush1.bf16.msra.mxu0 %v4049
        %4095 = vmatprep.subr.bf16.mxu0 0
        %4096 = vmatpush1.bf16.msra.mxu0 %v4048
        %4097 = vmatprep.subr.bf16.mxu0 0
        %4098 = vmatpush1.bf16.msra.mxu0 %v4047
        %4099 = vmatprep.subr.bf16.mxu0 0
        %4100 = vmatpush1.bf16.msra.mxu0 %v4046
        %4101 = vmatprep.subr.bf16.mxu0 0
        %4102 = vmatpush1.bf16.msra.mxu0 %v4045
        %4103 = vmatprep.subr.bf16.mxu0 0
        %4104 = vmatpush1.bf16.msra.mxu0 %v4044
        %4105 = vmatprep.subr.bf16.mxu0 0
        %4106 = vmatpush1.bf16.msra.mxu0 %v4043
        %4107 = vmatprep.subr.bf16.mxu0 0
        %4108 = vmatpush2.bf16.msra.mxu0 %v4058
        %4109 = vmatprep.subr.bf16.mxu0 0
        %4110 = vmatpush2.bf16.msra.mxu0 %v4057
        %4111 = vmatprep.subr.bf16.mxu0 0
        %4112 = vmatpush2.bf16.msra.mxu0 %v4056
        %4113 = vmatprep.subr.bf16.mxu0 0
        %4114 = vmatpush2.bf16.msra.mxu0 %v4055
        %4115 = vmatprep.subr.bf16.mxu0 0
        %4116 = vmatpush2.bf16.msra.mxu0 %v4054
        %4117 = vmatprep.subr.bf16.mxu0 0
        %4118 = vmatpush2.bf16.msra.mxu0 %v4053
        %4119 = vmatprep.subr.bf16.mxu0 0
        %4120 = vmatpush2.bf16.msra.mxu0 %v4052
        %4121 = vmatprep.subr.bf16.mxu0 0
        %4122 = vmatpush2.bf16.msra.mxu0 %v4051
        %4123 = vmatprep.mubr.bf16.mxu0 %v3852
        %4124 = vmatmul.mubr.bf16.gmra.mxu0 %v3851
        %v4125 = vpop.f32.mrf.mxu0
        %v4126 = vadd.f32 0.0, %v4125
        %v4127 = vpop.f32.mrf.mxu0
        %v4128 = vpop.f32.mrf.mxu0
        %v4129 = vadd.f32 0.0, %v4128
        %v4130 = vpop.f32.mrf.mxu0
        %4131 = vmatprep.mubr.bf16.mxu0 %v3855
        %4132 = vmatmul.mubr.bf16.gmra.mxu0 %v3854
        %v4133 = vpop.f32.mrf.mxu0
        %v4134 = vadd.f32 0.0, %v4133
        %v4135 = vpop.f32.mrf.mxu0
        %v4136 = vpop.f32.mrf.mxu0
        %v4137 = vadd.f32 0.0, %v4136
        %v4138 = vpop.f32.mrf.mxu0
        %4139 = vmatprep.mubr.bf16.mxu0 %v3858
        %4140 = vmatmul.mubr.bf16.gmra.mxu0 %v3857
        %v4141 = vpop.f32.mrf.mxu0
        %v4142 = vadd.f32 0.0, %v4141
        %v4143 = vpop.f32.mrf.mxu0
        %v4144 = vpop.f32.mrf.mxu0
        %v4145 = vadd.f32 0.0, %v4144
        %v4146 = vpop.f32.mrf.mxu0
        %4147 = vmatprep.mubr.bf16.mxu0 %v3861
        %4148 = vmatmul.mubr.bf16.gmra.mxu0 %v3860
        %v4149 = vpop.f32.mrf.mxu0
        %v4150 = vadd.f32 0.0, %v4149
        %v4151 = vpop.f32.mrf.mxu0
        %v4152 = vpop.f32.mrf.mxu0
        %v4153 = vadd.f32 0.0, %v4152
        %v4154 = vpop.f32.mrf.mxu0
        %4155 = vmatprep.mubr.bf16.mxu0 %v3864
        %4156 = vmatmul.mubr.bf16.gmra.mxu0 %v3863
        %v4157 = vpop.f32.mrf.mxu0
        %v4158 = vadd.f32 0.0, %v4157
        %v4159 = vpop.f32.mrf.mxu0
        %v4160 = vpop.f32.mrf.mxu0
        %v4161 = vadd.f32 0.0, %v4160
        %v4162 = vpop.f32.mrf.mxu0
        %4163 = vmatprep.mubr.bf16.mxu0 %v3867
        %4164 = vmatmul.mubr.bf16.gmra.mxu0 %v3866
        %v4165 = vpop.f32.mrf.mxu0
        %v4166 = vadd.f32 0.0, %v4165
        %v4167 = vpop.f32.mrf.mxu0
        %v4168 = vpop.f32.mrf.mxu0
        %v4169 = vadd.f32 0.0, %v4168
        %v4170 = vpop.f32.mrf.mxu0
        %4171 = vmatprep.mubr.bf16.mxu0 %v3870
        %4172 = vmatmul.mubr.bf16.gmra.mxu0 %v3869
        %v4173 = vpop.f32.mrf.mxu0
        %v4174 = vadd.f32 0.0, %v4173
        %v4175 = vpop.f32.mrf.mxu0
        %v4176 = vpop.f32.mrf.mxu0
        %v4177 = vadd.f32 0.0, %v4176
        %v4178 = vpop.f32.mrf.mxu0
        %4179 = vmatprep.mubr.bf16.mxu0 %v3873
        %4180 = vmatmul.mubr.bf16.gmra.mxu0 %v3872
        %v4181 = vpop.f32.mrf.mxu0
        %v4182 = vadd.f32 0.0, %v4181
        %v4183 = vpop.f32.mrf.mxu0
        %v4184 = vpop.f32.mrf.mxu0
        %v4185 = vadd.f32 0.0, %v4184
        %v4186 = vpop.f32.mrf.mxu0
        %4187 = vmatprep.mubr.bf16.mxu0 %v3876
        %4188 = vmatmul.mubr.bf16.gmra.mxu0 %v3875
        %v4189 = vpop.f32.mrf.mxu0
        %v4190 = vadd.f32 0.0, %v4189
        %v4191 = vpop.f32.mrf.mxu0
        %v4192 = vpop.f32.mrf.mxu0
        %v4193 = vadd.f32 0.0, %v4192
        %v4194 = vpop.f32.mrf.mxu0
        %4195 = vmatprep.mubr.bf16.mxu0 %v3879
        %4196 = vmatmul.mubr.bf16.gmra.mxu0 %v3878
        %v4197 = vpop.f32.mrf.mxu0
        %v4198 = vadd.f32 0.0, %v4197
        %v4199 = vpop.f32.mrf.mxu0
        %v4200 = vpop.f32.mrf.mxu0
        %v4201 = vadd.f32 0.0, %v4200
        %v4202 = vpop.f32.mrf.mxu0
        %4203 = vmatprep.mubr.bf16.mxu0 %v3882
        %4204 = vmatmul.mubr.bf16.gmra.mxu0 %v3881
        %v4205 = vpop.f32.mrf.mxu0
        %v4206 = vadd.f32 0.0, %v4205
        %v4207 = vpop.f32.mrf.mxu0
        %v4208 = vpop.f32.mrf.mxu0
        %v4209 = vadd.f32 0.0, %v4208
        %v4210 = vpop.f32.mrf.mxu0
        %4211 = vmatprep.mubr.bf16.mxu0 %v3885
        %4212 = vmatmul.mubr.bf16.gmra.mxu0 %v3884
        %v4213 = vpop.f32.mrf.mxu0
        %v4214 = vadd.f32 0.0, %v4213
        %v4215 = vpop.f32.mrf.mxu0
        %v4216 = vpop.f32.mrf.mxu0
        %v4217 = vadd.f32 0.0, %v4216
        %v4218 = vpop.f32.mrf.mxu0
        %4219 = vmatprep.mubr.bf16.mxu0 %v3888
        %4220 = vmatmul.mubr.bf16.gmra.mxu0 %v3887
        %v4221 = vpop.f32.mrf.mxu0
        %v4222 = vadd.f32 0.0, %v4221
        %v4223 = vpop.f32.mrf.mxu0
        %v4224 = vpop.f32.mrf.mxu0
        %v4225 = vadd.f32 0.0, %v4224
        %v4226 = vpop.f32.mrf.mxu0
        %4227 = vmatprep.mubr.bf16.mxu0 %v3891
        %4228 = vmatmul.mubr.bf16.gmra.mxu0 %v3890
        %v4229 = vpop.f32.mrf.mxu0
        %v4230 = vadd.f32 0.0, %v4229
        %v4231 = vpop.f32.mrf.mxu0
        %v4232 = vpop.f32.mrf.mxu0
        %v4233 = vadd.f32 0.0, %v4232
        %v4234 = vpop.f32.mrf.mxu0
        %4235 = vmatprep.mubr.bf16.mxu0 %v3894
        %4236 = vmatmul.mubr.bf16.gmra.mxu0 %v3893
        %v4237 = vpop.f32.mrf.mxu0
        %v4238 = vadd.f32 0.0, %v4237
        %v4239 = vpop.f32.mrf.mxu0
        %v4240 = vpop.f32.mrf.mxu0
        %v4241 = vadd.f32 0.0, %v4240
        %v4242 = vpop.f32.mrf.mxu0
        %4243 = vmatprep.mubr.bf16.mxu0 %v3897
        %4244 = vmatmul.mubr.bf16.gmra.mxu0 %v3896
        %v4245 = vpop.f32.mrf.mxu0
        %v4246 = vadd.f32 0.0, %v4245
        %v4247 = vpop.f32.mrf.mxu0
        %v4248 = vpop.f32.mrf.mxu0
        %v4249 = vadd.f32 0.0, %v4248
        %v4250 = vpop.f32.mrf.mxu0
        %4251 = vdwg.mxu0
        %4252 = vmatprep.subr.bf16.mxu0 0
        %4253 = vmatpush1.bf16.msra.mxu0 %v4066
        %4254 = vmatprep.subr.bf16.mxu0 0
        %4255 = vmatpush1.bf16.msra.mxu0 %v4065
        %4256 = vmatprep.subr.bf16.mxu0 0
        %4257 = vmatpush1.bf16.msra.mxu0 %v4064
        %4258 = vmatprep.subr.bf16.mxu0 0
        %4259 = vmatpush1.bf16.msra.mxu0 %v4063
        %4260 = vmatprep.subr.bf16.mxu0 0
        %4261 = vmatpush1.bf16.msra.mxu0 %v4062
        %4262 = vmatprep.subr.bf16.mxu0 0
        %4263 = vmatpush1.bf16.msra.mxu0 %v4061
        %4264 = vmatprep.subr.bf16.mxu0 0
        %4265 = vmatpush1.bf16.msra.mxu0 %v4060
        %4266 = vmatprep.subr.bf16.mxu0 0
        %4267 = vmatpush1.bf16.msra.mxu0 %v4059
        %4268 = vmatprep.subr.bf16.mxu0 0
        %4269 = vmatpush2.bf16.msra.mxu0 0
        %4270 = vmatprep.subr.bf16.mxu0 0
        %4271 = vmatpush2.bf16.msra.mxu0 0
        %4272 = vmatprep.subr.bf16.mxu0 0
        %4273 = vmatpush2.bf16.msra.mxu0 0
        %4274 = vmatprep.subr.bf16.mxu0 0
        %4275 = vmatpush2.bf16.msra.mxu0 0
        %4276 = vmatprep.subr.bf16.mxu0 0
        %4277 = vmatpush2.bf16.msra.mxu0 0
        %4278 = vmatprep.subr.bf16.mxu0 0
        %4279 = vmatpush2.bf16.msra.mxu0 0
        %4280 = vmatprep.subr.bf16.mxu0 0
        %4281 = vmatpush2.bf16.msra.mxu0 0
        %4282 = vmatprep.subr.bf16.mxu0 0
        %4283 = vmatpush2.bf16.msra.mxu0 0
        %4284 = vmatprep.mubr.bf16.mxu0 0
        %4285 = vmatmul.mubr.bf16.gmra.mxu0 %v3853
        %v4286 = vpop.f32.mrf.mxu0
        %v4287 = vadd.f32 %v4126, %v4286
        %v4288 = vpop.f32.mrf.mxu0
        %v4289 = vpop.f32.mrf.mxu0
        %v4290 = vadd.f32 %v4129, %v4289
        %v4291 = vpop.f32.mrf.mxu0
        %4292 = vmatprep.mubr.bf16.mxu0 0
        %4293 = vmatmul.mubr.bf16.gmra.mxu0 %v3856
        %v4294 = vpop.f32.mrf.mxu0
        %v4295 = vadd.f32 %v4134, %v4294
        %v4296 = vpop.f32.mrf.mxu0
        %v4297 = vpop.f32.mrf.mxu0
        %v4298 = vadd.f32 %v4137, %v4297
        %v4299 = vpop.f32.mrf.mxu0
        %4300 = vmatprep.mubr.bf16.mxu0 0
        %4301 = vmatmul.mubr.bf16.gmra.mxu0 %v3859
        %v4302 = vpop.f32.mrf.mxu0
        %v4303 = vadd.f32 %v4142, %v4302
        %v4304 = vpop.f32.mrf.mxu0
        %v4305 = vpop.f32.mrf.mxu0
        %v4306 = vadd.f32 %v4145, %v4305
        %v4307 = vpop.f32.mrf.mxu0
        %4308 = vmatprep.mubr.bf16.mxu0 0
        %4309 = vmatmul.mubr.bf16.gmra.mxu0 %v3862
        %v4310 = vpop.f32.mrf.mxu0
        %v4311 = vadd.f32 %v4150, %v4310
        %v4312 = vpop.f32.mrf.mxu0
        %v4313 = vpop.f32.mrf.mxu0
        %v4314 = vadd.f32 %v4153, %v4313
        %v4315 = vpop.f32.mrf.mxu0
        %4316 = vmatprep.mubr.bf16.mxu0 0
        %4317 = vmatmul.mubr.bf16.gmra.mxu0 %v3865
        %v4318 = vpop.f32.mrf.mxu0
        %v4319 = vadd.f32 %v4158, %v4318
        %v4320 = vpop.f32.mrf.mxu0
        %v4321 = vpop.f32.mrf.mxu0
        %v4322 = vadd.f32 %v4161, %v4321
        %v4323 = vpop.f32.mrf.mxu0
        %4324 = vmatprep.mubr.bf16.mxu0 0
        %4325 = vmatmul.mubr.bf16.gmra.mxu0 %v3868
        %v4326 = vpop.f32.mrf.mxu0
        %v4327 = vadd.f32 %v4166, %v4326
        %v4328 = vpop.f32.mrf.mxu0
        %v4329 = vpop.f32.mrf.mxu0
        %v4330 = vadd.f32 %v4169, %v4329
        %v4331 = vpop.f32.mrf.mxu0
        %4332 = vmatprep.mubr.bf16.mxu0 0
        %4333 = vmatmul.mubr.bf16.gmra.mxu0 %v3871
        %v4334 = vpop.f32.mrf.mxu0
        %v4335 = vadd.f32 %v4174, %v4334
        %v4336 = vpop.f32.mrf.mxu0
        %v4337 = vpop.f32.mrf.mxu0
        %v4338 = vadd.f32 %v4177, %v4337
        %v4339 = vpop.f32.mrf.mxu0
        %4340 = vmatprep.mubr.bf16.mxu0 0
        %4341 = vmatmul.mubr.bf16.gmra.mxu0 %v3874
        %v4342 = vpop.f32.mrf.mxu0
        %v4343 = vadd.f32 %v4182, %v4342
        %v4344 = vpop.f32.mrf.mxu0
        %v4345 = vpop.f32.mrf.mxu0
        %v4346 = vadd.f32 %v4185, %v4345
        %v4347 = vpop.f32.mrf.mxu0
        %4348 = vmatprep.mubr.bf16.mxu0 0
        %4349 = vmatmul.mubr.bf16.gmra.mxu0 %v3877
        %v4350 = vpop.f32.mrf.mxu0
        %v4351 = vadd.f32 %v4190, %v4350
        %v4352 = vpop.f32.mrf.mxu0
        %v4353 = vpop.f32.mrf.mxu0
        %v4354 = vadd.f32 %v4193, %v4353
        %v4355 = vpop.f32.mrf.mxu0
        %4356 = vmatprep.mubr.bf16.mxu0 0
        %4357 = vmatmul.mubr.bf16.gmra.mxu0 %v3880
        %v4358 = vpop.f32.mrf.mxu0
        %v4359 = vadd.f32 %v4198, %v4358
        %v4360 = vpop.f32.mrf.mxu0
        %v4361 = vpop.f32.mrf.mxu0
        %v4362 = vadd.f32 %v4201, %v4361
        %v4363 = vpop.f32.mrf.mxu0
        %4364 = vmatprep.mubr.bf16.mxu0 0
        %4365 = vmatmul.mubr.bf16.gmra.mxu0 %v3883
        %v4366 = vpop.f32.mrf.mxu0
        %v4367 = vadd.f32 %v4206, %v4366
        %v4368 = vpop.f32.mrf.mxu0
        %v4369 = vpop.f32.mrf.mxu0
        %v4370 = vadd.f32 %v4209, %v4369
        %v4371 = vpop.f32.mrf.mxu0
        %4372 = vmatprep.mubr.bf16.mxu0 0
        %4373 = vmatmul.mubr.bf16.gmra.mxu0 %v3886
        %v4374 = vpop.f32.mrf.mxu0
        %v4375 = vadd.f32 %v4214, %v4374
        %v4376 = vpop.f32.mrf.mxu0
        %v4377 = vpop.f32.mrf.mxu0
        %v4378 = vadd.f32 %v4217, %v4377
        %v4379 = vpop.f32.mrf.mxu0
        %4380 = vmatprep.mubr.bf16.mxu0 0
        %4381 = vmatmul.mubr.bf16.gmra.mxu0 %v3889
        %v4382 = vpop.f32.mrf.mxu0
        %v4383 = vadd.f32 %v4222, %v4382
        %v4384 = vpop.f32.mrf.mxu0
        %v4385 = vpop.f32.mrf.mxu0
        %v4386 = vadd.f32 %v4225, %v4385
        %v4387 = vpop.f32.mrf.mxu0
        %4388 = vmatprep.mubr.bf16.mxu0 0
        %4389 = vmatmul.mubr.bf16.gmra.mxu0 %v3892
        %v4390 = vpop.f32.mrf.mxu0
        %v4391 = vadd.f32 %v4230, %v4390
        %v4392 = vpop.f32.mrf.mxu0
        %v4393 = vpop.f32.mrf.mxu0
        %v4394 = vadd.f32 %v4233, %v4393
        %v4395 = vpop.f32.mrf.mxu0
        %4396 = vmatprep.mubr.bf16.mxu0 0
        %4397 = vmatmul.mubr.bf16.gmra.mxu0 %v3895
        %v4398 = vpop.f32.mrf.mxu0
        %v4399 = vadd.f32 %v4238, %v4398
        %v4400 = vpop.f32.mrf.mxu0
        %v4401 = vpop.f32.mrf.mxu0
        %v4402 = vadd.f32 %v4241, %v4401
        %v4403 = vpop.f32.mrf.mxu0
        %4404 = vmatprep.mubr.bf16.mxu0 0
        %4405 = vmatmul.mubr.bf16.gmra.mxu0 %v3898
        %v4406 = vpop.f32.mrf.mxu0
        %v4407 = vadd.f32 %v4246, %v4406
        %v4408 = vpop.f32.mrf.mxu0
        %v4409 = vpop.f32.mrf.mxu0
        %v4410 = vadd.f32 %v4249, %v4409
        %v4411 = vpop.f32.mrf.mxu0
        %4412 = vdwg.mxu0
        %v4413 = vld [vmem:[#allocation4] sm:$0xff]
        %v4414 = vld [vmem:[#allocation4 + $0x8] sm:$0xff]
        %v4415 = vld [vmem:[#allocation4 + $0x10] sm:$0xff]
        %v4416 = vld [vmem:[#allocation4 + $0x18] sm:$0xff]
        %v4417 = vld [vmem:[#allocation4 + $0x20] sm:$0xff]
        %v4418 = vld [vmem:[#allocation4 + $0x28] sm:$0xff]
        %v4419 = vld [vmem:[#allocation4 + $0x30] sm:$0xff]
        %v4420 = vld [vmem:[#allocation4 + $0x38] sm:$0xff]
        %v4421 = vld [vmem:[#allocation4 + $0x40] sm:$0xff]
        %v4422 = vld [vmem:[#allocation4 + $0x48] sm:$0xff]
        %v4423 = vld [vmem:[#allocation4 + $0x50] sm:$0xff]
        %v4424 = vld [vmem:[#allocation4 + $0x58] sm:$0xff]
        %v4425 = vld [vmem:[#allocation4 + $0x60] sm:$0xff]
        %v4426 = vld [vmem:[#allocation4 + $0x68] sm:$0xff]
        %v4427 = vld [vmem:[#allocation4 + $0x70] sm:$0xff]
        %v4428 = vld [vmem:[#allocation4 + $0x78] sm:$0xff]
        %v4429 = vld [vmem:[#allocation4 + $0x80] sm:$0xff]
        %v4430 = vld [vmem:[#allocation4 + $0x88] sm:$0xff]
        %v4431 = vld [vmem:[#allocation4 + $0x90] sm:$0xff]
        %v4432 = vld [vmem:[#allocation4 + $0x98] sm:$0xff]
        %v4433 = vld [vmem:[#allocation4 + $0xa0] sm:$0xff]
        %v4434 = vld [vmem:[#allocation4 + $0xa8] sm:$0xff]
        %v4435 = vld [vmem:[#allocation4 + $0xb0] sm:$0xff]
        %v4436 = vld [vmem:[#allocation4 + $0xb8] sm:$0xff]
        %v4437 = vld [vmem:[#allocation4 + $0xc0] sm:$0xff]
        %v4438 = vld [vmem:[#allocation4 + $0xc8] sm:$0xff]
        %v4439 = vld [vmem:[#allocation4 + $0xd0] sm:$0xff]
        %v4440 = vld [vmem:[#allocation4 + $0xd8] sm:$0xff]
        %v4441 = vld [vmem:[#allocation4 + $0xe0] sm:$0xff]
        %v4442 = vld [vmem:[#allocation4 + $0xe8] sm:$0xff]
        %v4443 = vld [vmem:[#allocation4 + $0xf0] sm:$0xff]
        %v4444 = vld [vmem:[#allocation4 + $0xf8] sm:$0xff]
        %v4445 = vadd.f32 %v4413, %v4287
        %v4446 = vadd.f32 %v4414, %v4290
        %v4447 = vadd.f32 %v4415, %v4295
        %v4448 = vadd.f32 %v4416, %v4298
        %v4449 = vadd.f32 %v4417, %v4303
        %v4450 = vadd.f32 %v4418, %v4306
        %v4451 = vadd.f32 %v4419, %v4311
        %v4452 = vadd.f32 %v4420, %v4314
        %v4453 = vadd.f32 %v4421, %v4319
        %v4454 = vadd.f32 %v4422, %v4322
        %v4455 = vadd.f32 %v4423, %v4327
        %v4456 = vadd.f32 %v4424, %v4330
        %v4457 = vadd.f32 %v4425, %v4335
        %v4458 = vadd.f32 %v4426, %v4338
        %v4459 = vadd.f32 %v4427, %v4343
        %v4460 = vadd.f32 %v4428, %v4346
        %v4461 = vadd.f32 %v4429, %v4351
        %v4462 = vadd.f32 %v4430, %v4354
        %v4463 = vadd.f32 %v4431, %v4359
        %v4464 = vadd.f32 %v4432, %v4362
        %v4465 = vadd.f32 %v4433, %v4367
        %v4466 = vadd.f32 %v4434, %v4370
        %v4467 = vadd.f32 %v4435, %v4375
        %v4468 = vadd.f32 %v4436, %v4378
        %v4469 = vadd.f32 %v4437, %v4383
        %v4470 = vadd.f32 %v4438, %v4386
        %v4471 = vadd.f32 %v4439, %v4391
        %v4472 = vadd.f32 %v4440, %v4394
        %v4473 = vadd.f32 %v4441, %v4399
        %v4474 = vadd.f32 %v4442, %v4402
        %v4475 = vadd.f32 %v4443, %v4407
        %v4476 = vadd.f32 %v4444, %v4410
        %4477 = vst [vmem:[#allocation4] sm:$0xff] %v4445
        %4478 = vst [vmem:[#allocation4 + $0x8] sm:$0xff] %v4446
        %4479 = vst [vmem:[#allocation4 + $0x10] sm:$0xff] %v4447
        %4480 = vst [vmem:[#allocation4 + $0x18] sm:$0xff] %v4448
        %4481 = vst [vmem:[#allocation4 + $0x20] sm:$0xff] %v4449
        %4482 = vst [vmem:[#allocation4 + $0x28] sm:$0xff] %v4450
        %4483 = vst [vmem:[#allocation4 + $0x30] sm:$0xff] %v4451
        %4484 = vst [vmem:[#allocation4 + $0x38] sm:$0xff] %v4452
        %4485 = vst [vmem:[#allocation4 + $0x40] sm:$0xff] %v4453
        %4486 = vst [vmem:[#allocation4 + $0x48] sm:$0xff] %v4454
        %4487 = vst [vmem:[#allocation4 + $0x50] sm:$0xff] %v4455
        %4488 = vst [vmem:[#allocation4 + $0x58] sm:$0xff] %v4456
        %4489 = vst [vmem:[#allocation4 + $0x60] sm:$0xff] %v4457
        %4490 = vst [vmem:[#allocation4 + $0x68] sm:$0xff] %v4458
        %4491 = vst [vmem:[#allocation4 + $0x70] sm:$0xff] %v4459
        %4492 = vst [vmem:[#allocation4 + $0x78] sm:$0xff] %v4460
        %4493 = vst [vmem:[#allocation4 + $0x80] sm:$0xff] %v4461
        %4494 = vst [vmem:[#allocation4 + $0x88] sm:$0xff] %v4462
        %4495 = vst [vmem:[#allocation4 + $0x90] sm:$0xff] %v4463
        %4496 = vst [vmem:[#allocation4 + $0x98] sm:$0xff] %v4464
        %4497 = vst [vmem:[#allocation4 + $0xa0] sm:$0xff] %v4465
        %4498 = vst [vmem:[#allocation4 + $0xa8] sm:$0xff] %v4466
        %4499 = vst [vmem:[#allocation4 + $0xb0] sm:$0xff] %v4467
        %4500 = vst [vmem:[#allocation4 + $0xb8] sm:$0xff] %v4468
        %4501 = vst [vmem:[#allocation4 + $0xc0] sm:$0xff] %v4469
        %4502 = vst [vmem:[#allocation4 + $0xc8] sm:$0xff] %v4470
        %4503 = vst [vmem:[#allocation4 + $0xd0] sm:$0xff] %v4471
        %4504 = vst [vmem:[#allocation4 + $0xd8] sm:$0xff] %v4472
        %4505 = vst [vmem:[#allocation4 + $0xe0] sm:$0xff] %v4473
        %4506 = vst [vmem:[#allocation4 + $0xe8] sm:$0xff] %v4474
        %4507 = vst [vmem:[#allocation4 + $0xf0] sm:$0xff] %v4475
        %4508 = vst [vmem:[#allocation4 + $0xf8] sm:$0xff] %v4476
        %v4509 = vld [vmem:[#allocation4] sm:$0xff]
        %v4510 = vld [vmem:[#allocation4 + $0x8] sm:$0xff]
        %v4511 = vld [vmem:[#allocation4 + $0x10] sm:$0xff]
        %v4512 = vld [vmem:[#allocation4 + $0x18] sm:$0xff]
        %v4513 = vld [vmem:[#allocation4 + $0x20] sm:$0xff]
        %v4514 = vld [vmem:[#allocation4 + $0x28] sm:$0xff]
        %v4515 = vld [vmem:[#allocation4 + $0x30] sm:$0xff]
        %v4516 = vld [vmem:[#allocation4 + $0x38] sm:$0xff]
        %v4517 = vld [vmem:[#allocation4 + $0x40] sm:$0xff]
        %v4518 = vld [vmem:[#allocation4 + $0x48] sm:$0xff]
        %v4519 = vld [vmem:[#allocation4 + $0x50] sm:$0xff]
        %v4520 = vld [vmem:[#allocation4 + $0x58] sm:$0xff]
        %v4521 = vld [vmem:[#allocation4 + $0x60] sm:$0xff]
        %v4522 = vld [vmem:[#allocation4 + $0x68] sm:$0xff]
        %v4523 = vld [vmem:[#allocation4 + $0x70] sm:$0xff]
        %v4524 = vld [vmem:[#allocation4 + $0x78] sm:$0xff]
        %v4525 = vld [vmem:[#allocation4 + $0x80] sm:$0xff]
        %v4526 = vld [vmem:[#allocation4 + $0x88] sm:$0xff]
        %v4527 = vld [vmem:[#allocation4 + $0x90] sm:$0xff]
        %v4528 = vld [vmem:[#allocation4 + $0x98] sm:$0xff]
        %v4529 = vld [vmem:[#allocation4 + $0xa0] sm:$0xff]
        %v4530 = vld [vmem:[#allocation4 + $0xa8] sm:$0xff]
        %v4531 = vld [vmem:[#allocation4 + $0xb0] sm:$0xff]
        %v4532 = vld [vmem:[#allocation4 + $0xb8] sm:$0xff]
        %v4533 = vld [vmem:[#allocation4 + $0xc0] sm:$0xff]
        %v4534 = vld [vmem:[#allocation4 + $0xc8] sm:$0xff]
        %v4535 = vld [vmem:[#allocation4 + $0xd0] sm:$0xff]
        %v4536 = vld [vmem:[#allocation4 + $0xd8] sm:$0xff]
        %v4537 = vld [vmem:[#allocation4 + $0xe0] sm:$0xff]
        %v4538 = vld [vmem:[#allocation4 + $0xe8] sm:$0xff]
        %v4539 = vld [vmem:[#allocation4 + $0xf0] sm:$0xff]
        %v4540 = vld [vmem:[#allocation4 + $0xf8] sm:$0xff]
        %v4541 = vadd.f32 %v4509, %v4510
        %v4542 = vadd.f32 %v4541, %v4511
        %v4543 = vadd.f32 %v4542, %v4512
        %v4544 = vadd.f32 %v4543, %v4513
        %v4545 = vadd.f32 %v4544, %v4514
        %v4546 = vadd.f32 %v4545, %v4515
        %v4547 = vadd.f32 %v4546, %v4516
        %v4548 = vadd.f32 %v4547, %v4517
        %v4549 = vadd.f32 %v4548, %v4518
        %v4550 = vadd.f32 %v4549, %v4519
        %v4551 = vadd.f32 %v4550, %v4520
        %v4552 = vadd.f32 %v4551, %v4521
        %v4553 = vadd.f32 %v4552, %v4522
        %v4554 = vadd.f32 %v4553, %v4523
        %v4555 = vadd.f32 %v4554, %v4524
        %v4556 = vadd.f32 %v4555, %v4525
        %v4557 = vadd.f32 %v4556, %v4526
        %v4558 = vadd.f32 %v4557, %v4527
        %v4559 = vadd.f32 %v4558, %v4528
        %v4560 = vadd.f32 %v4559, %v4529
        %v4561 = vadd.f32 %v4560, %v4530
        %v4562 = vadd.f32 %v4561, %v4531
        %v4563 = vadd.f32 %v4562, %v4532
        %v4564 = vadd.f32 %v4563, %v4533
        %v4565 = vadd.f32 %v4564, %v4534
        %v4566 = vadd.f32 %v4565, %v4535
        %v4567 = vadd.f32 %v4566, %v4536
        %v4568 = vadd.f32 %v4567, %v4537
        %v4569 = vadd.f32 %v4568, %v4538
        %v4570 = vadd.f32 %v4569, %v4539
        %v4571 = vadd.f32 %v4570, %v4540
        %v4572 = vrot.slane %v4571, 4
        %v4573 = vadd.f32 %v4571, %v4572
        %v4574 = vrot.slane %v4573, 2
        %v4575 = vadd.f32 %v4573, %v4574
        %v4576 = vrot.slane %v4575, 1
        %v4577 = vadd.f32 %v4575, %v4576
        %v4578 = vmul.f32 %v4509, %v4509
        %v4579 = vmul.f32 %v4510, %v4510
        %v4580 = vmul.f32 %v4511, %v4511
        %v4581 = vmul.f32 %v4512, %v4512
        %v4582 = vmul.f32 %v4513, %v4513
        %v4583 = vmul.f32 %v4514, %v4514
        %v4584 = vmul.f32 %v4515, %v4515
        %v4585 = vmul.f32 %v4516, %v4516
        %v4586 = vmul.f32 %v4517, %v4517
        %v4587 = vmul.f32 %v4518, %v4518
        %v4588 = vmul.f32 %v4519, %v4519
        %v4589 = vmul.f32 %v4520, %v4520
        %v4590 = vmul.f32 %v4521, %v4521
        %v4591 = vmul.f32 %v4522, %v4522
        %v4592 = vmul.f32 %v4523, %v4523
        %v4593 = vmul.f32 %v4524, %v4524
        %v4594 = vmul.f32 %v4525, %v4525
        %v4595 = vmul.f32 %v4526, %v4526
        %v4596 = vmul.f32 %v4527, %v4527
        %v4597 = vmul.f32 %v4528, %v4528
        %v4598 = vmul.f32 %v4529, %v4529
        %v4599 = vmul.f32 %v4530, %v4530
        %v4600 = vmul.f32 %v4531, %v4531
        %v4601 = vmul.f32 %v4532, %v4532
        %v4602 = vmul.f32 %v4533, %v4533
        %v4603 = vmul.f32 %v4534, %v4534
        %v4604 = vmul.f32 %v4535, %v4535
        %v4605 = vmul.f32 %v4536, %v4536
        %v4606 = vmul.f32 %v4537, %v4537
        %v4607 = vmul.f32 %v4538, %v4538
        %v4608 = vmul.f32 %v4539, %v4539
        %v4609 = vmul.f32 %v4540, %v4540
        %v4610 = vadd.f32 %v4578, %v4579
        %v4611 = vadd.f32 %v4610, %v4580
        %v4612 = vadd.f32 %v4611, %v4581
        %v4613 = vadd.f32 %v4612, %v4582
        %v4614 = vadd.f32 %v4613, %v4583
        %v4615 = vadd.f32 %v4614, %v4584
        %v4616 = vadd.f32 %v4615, %v4585
        %v4617 = vadd.f32 %v4616, %v4586
        %v4618 = vadd.f32 %v4617, %v4587
        %v4619 = vadd.f32 %v4618, %v4588
        %v4620 = vadd.f32 %v4619, %v4589
        %v4621 = vadd.f32 %v4620, %v4590
        %v4622 = vadd.f32 %v4621, %v4591
        %v4623 = vadd.f32 %v4622, %v4592
        %v4624 = vadd.f32 %v4623, %v4593
        %v4625 = vadd.f32 %v4624, %v4594
        %v4626 = vadd.f32 %v4625, %v4595
        %v4627 = vadd.f32 %v4626, %v4596
        %v4628 = vadd.f32 %v4627, %v4597
        %v4629 = vadd.f32 %v4628, %v4598
        %v4630 = vadd.f32 %v4629, %v4599
        %v4631 = vadd.f32 %v4630, %v4600
        %v4632 = vadd.f32 %v4631, %v4601
        %v4633 = vadd.f32 %v4632, %v4602
        %v4634 = vadd.f32 %v4633, %v4603
        %v4635 = vadd.f32 %v4634, %v4604
        %v4636 = vadd.f32 %v4635, %v4605
        %v4637 = vadd.f32 %v4636, %v4606
        %v4638 = vadd.f32 %v4637, %v4607
        %v4639 = vadd.f32 %v4638, %v4608
        %v4640 = vadd.f32 %v4639, %v4609
        %v4641 = vrot.slane %v4640, 4
        %v4642 = vadd.f32 %v4640, %v4641
        %v4643 = vrot.slane %v4642, 2
        %v4644 = vadd.f32 %v4642, %v4643
        %v4645 = vrot.slane %v4644, 1
        %v4646 = vadd.f32 %v4644, %v4645
        %vm4647 = vcmask 1040384
        %v4648 = vsel %vm4647, %v4577, %v4646
        %4649 = vst [vmem:[%s214] sm:$0x3] %v4648
        %v4650 = vpack.c.bf16 %v4510, %v4509
        %v4651 = vpack.c.bf16 %v4512, %v4511
        %v4652 = vpack.c.bf16 %v4514, %v4513
        %v4653 = vpack.c.bf16 %v4516, %v4515
        %v4654 = vpack.c.bf16 %v4518, %v4517
        %v4655 = vpack.c.bf16 %v4520, %v4519
        %v4656 = vpack.c.bf16 %v4522, %v4521
        %v4657 = vpack.c.bf16 %v4524, %v4523
        %v4658 = vpack.c.bf16 %v4526, %v4525
        %v4659 = vpack.c.bf16 %v4528, %v4527
        %v4660 = vpack.c.bf16 %v4530, %v4529
        %v4661 = vpack.c.bf16 %v4532, %v4531
        %v4662 = vpack.c.bf16 %v4534, %v4533
        %v4663 = vpack.c.bf16 %v4536, %v4535
        %v4664 = vpack.c.bf16 %v4538, %v4537
        %v4665 = vpack.c.bf16 %v4540, %v4539
        %v4682 = vunpack.c.l.b16 %v4650
        %v4683 = vunpack.c.h.b16 %v4650
        %v4684 = vunpack.c.l.b16 %v4651
        %v4685 = vunpack.c.h.b16 %v4651
        %v4686 = vunpack.c.l.b16 %v4652
        %v4687 = vunpack.c.h.b16 %v4652
        %v4688 = vunpack.c.l.b16 %v4653
        %v4689 = vunpack.c.h.b16 %v4653
        %v4690 = vunpack.c.l.b16 %v4654
        %v4691 = vunpack.c.h.b16 %v4654
        %v4692 = vunpack.c.l.b16 %v4655
        %v4693 = vunpack.c.h.b16 %v4655
        %v4694 = vunpack.c.l.b16 %v4656
        %v4695 = vunpack.c.h.b16 %v4656
        %v4696 = vunpack.c.l.b16 %v4657
        %v4697 = vunpack.c.h.b16 %v4657
        %v4698 = vunpack.c.l.b16 %v4658
        %v4699 = vunpack.c.h.b16 %v4658
        %v4700 = vunpack.c.l.b16 %v4659
        %v4701 = vunpack.c.h.b16 %v4659
        %v4702 = vunpack.c.l.b16 %v4660
        %v4703 = vunpack.c.h.b16 %v4660
        %v4704 = vunpack.c.l.b16 %v4661
        %v4705 = vunpack.c.h.b16 %v4661
        %v4706 = vunpack.c.l.b16 %v4662
        %v4707 = vunpack.c.h.b16 %v4662
        %v4708 = vunpack.c.l.b16 %v4663
        %v4709 = vunpack.c.h.b16 %v4663
        %v4710 = vunpack.c.l.b16 %v4664
        %v4711 = vunpack.c.h.b16 %v4664
        %v4712 = vunpack.c.l.b16 %v4665
        %v4713 = vunpack.c.h.b16 %v4665
        %v4714 = vpack.c.b16 %v4682, %v4682
        %v4715 = vpack.c.b16 %v4683, %v4683
        %v4716 = vpack.c.b16 %v4684, %v4684
        %v4717 = vpack.c.b16 %v4685, %v4685
        %v4718 = vpack.c.b16 %v4686, %v4686
        %v4719 = vpack.c.b16 %v4687, %v4687
        %v4720 = vpack.c.b16 %v4688, %v4688
        %v4721 = vpack.c.b16 %v4689, %v4689
        %v4722 = vpack.c.b16 %v4690, %v4690
        %v4723 = vpack.c.b16 %v4691, %v4691
        %v4724 = vpack.c.b16 %v4692, %v4692
        %v4725 = vpack.c.b16 %v4693, %v4693
        %v4726 = vpack.c.b16 %v4694, %v4694
        %v4727 = vpack.c.b16 %v4695, %v4695
        %v4728 = vpack.c.b16 %v4696, %v4696
        %v4729 = vpack.c.b16 %v4697, %v4697
        %v4730 = vpack.c.b16 %v4698, %v4698
        %v4731 = vpack.c.b16 %v4699, %v4699
        %v4732 = vpack.c.b16 %v4700, %v4700
        %v4733 = vpack.c.b16 %v4701, %v4701
        %v4734 = vpack.c.b16 %v4702, %v4702
        %v4735 = vpack.c.b16 %v4703, %v4703
        %v4736 = vpack.c.b16 %v4704, %v4704
        %v4737 = vpack.c.b16 %v4705, %v4705
        %v4738 = vpack.c.b16 %v4706, %v4706
        %v4739 = vpack.c.b16 %v4707, %v4707
        %v4740 = vpack.c.b16 %v4708, %v4708
        %v4741 = vpack.c.b16 %v4709, %v4709
        %v4742 = vpack.c.b16 %v4710, %v4710
        %v4743 = vpack.c.b16 %v4711, %v4711
        %v4744 = vpack.c.b16 %v4712, %v4712
        %v4745 = vpack.c.b16 %v4713, %v4713
        %4778 = vst [vmem:[%s207] sm:$0xf] %v4714
        %4779 = vst [vmem:[%s207 + $0x4] sm:$0xf] %v4715
        %4780 = vst [vmem:[%s207 + $0x8] sm:$0xf] %v4716
        %4781 = vst [vmem:[%s207 + $0xc] sm:$0xf] %v4717
        %4782 = vst [vmem:[%s207 + $0x10] sm:$0xf] %v4718
        %4783 = vst [vmem:[%s207 + $0x14] sm:$0xf] %v4719
        %4784 = vst [vmem:[%s207 + $0x18] sm:$0xf] %v4720
        %4785 = vst [vmem:[%s207 + $0x1c] sm:$0xf] %v4721
        %4786 = vst [vmem:[%s207 + $0x20] sm:$0xf] %v4722
        %4787 = vst [vmem:[%s207 + $0x24] sm:$0xf] %v4723
        %4788 = vst [vmem:[%s207 + $0x28] sm:$0xf] %v4724
        %4789 = vst [vmem:[%s207 + $0x2c] sm:$0xf] %v4725
        %4790 = vst [vmem:[%s207 + $0x30] sm:$0xf] %v4726
        %4791 = vst [vmem:[%s207 + $0x34] sm:$0xf] %v4727
        %4792 = vst [vmem:[%s207 + $0x38] sm:$0xf] %v4728
        %4793 = vst [vmem:[%s207 + $0x3c] sm:$0xf] %v4729
        %4794 = vst [vmem:[%s207 + $0x40] sm:$0xf] %v4730
        %4795 = vst [vmem:[%s207 + $0x44] sm:$0xf] %v4731
        %4796 = vst [vmem:[%s207 + $0x48] sm:$0xf] %v4732
        %4797 = vst [vmem:[%s207 + $0x4c] sm:$0xf] %v4733
        %4798 = vst [vmem:[%s207 + $0x50] sm:$0xf] %v4734
        %4799 = vst [vmem:[%s207 + $0x54] sm:$0xf] %v4735
        %4800 = vst [vmem:[%s207 + $0x58] sm:$0xf] %v4736
        %4801 = vst [vmem:[%s207 + $0x5c] sm:$0xf] %v4737
        %4802 = vst [vmem:[%s207 + $0x60] sm:$0xf] %v4738
        %4803 = vst [vmem:[%s207 + $0x64] sm:$0xf] %v4739
        %4804 = vst [vmem:[%s207 + $0x68] sm:$0xf] %v4740
        %4805 = vst [vmem:[%s207 + $0x6c] sm:$0xf] %v4741
        %4806 = vst [vmem:[%s207 + $0x70] sm:$0xf] %v4742
        %4807 = vst [vmem:[%s207 + $0x74] sm:$0xf] %v4743
        %4808 = vst [vmem:[%s207 + $0x78] sm:$0xf] %v4744
        %4809 = vst [vmem:[%s207 + $0x7c] sm:$0xf] %v4745
        %s4810 = sand.u32 %s80, 1
        %s4811 = scalar_lea.sflag [#allocation7], %s4810
        %s4812 = sand.u32 %s80, 1
        %s4813 = smul.addr %s4812, 128
        %s4814 = scalar_lea.vmem [#allocation10], %s4813
        %s4815 = sand.u32 %s106, 1
        %s4816 = scalar_lea.sflag [#allocation12], %s4815
        %s4817 = sand.u32 %s106, 1
        %s4818 = smul.addr %s4817, 2
        %s4819 = scalar_lea.vmem [#allocation11], %s4818
        // Predicated region
        $region37: #{tpu_custom_call.1} parent=27 // pred_check
          %p4820 = pneg %p90
        $region38: #{tpu_custom_call.1} parent=27 // pred_check_branch
          %4822 = sbr.rel (%p4820) target = $region40
        $region39: #{tpu_custom_call.1} parent=27 // pred_region
          %s4824 = ssub.s32 2048, 2048
          %4825 = vsyncadd %s4811, %s4824
          %s4826 = smul.addr %s25, 32
          %s4827 = smul.addr %s4826, 64
          %s4828 = scalar_lea.hbm %s2, %s4827
          %s4829 = sshll.u32 %s4814, 4
          %s4830 = int_to_ptr.vmem [resolvable:$true] %s4829
          %4835 = dma.vmem_to_hbm [thread:$0]  %s4830, 2048, %s4828, %s4811, 64, 64, 4
        $region40: #{tpu_custom_call.1} parent=27 // pred_fallthru
          _
        // Predicated region
        $region41: #{tpu_custom_call.1} parent=27 // pred_check
          %p4836 = pneg %p116
        $region42: #{tpu_custom_call.1} parent=27 // pred_check_branch
          %4838 = sbr.rel (%p4836) target = $region44
        $region43: #{tpu_custom_call.1} parent=27 // pred_region
          %s4840 = ssub.s32 32, 32
          %4841 = vsyncadd %s4816, %s4840
          %s4842 = smul.addr %s25, 32
          %s4843 = scalar_lea.hbm %s3, %s4842
          %s4845 = sshll.u32 %s4819, 4
          %s4846 = int_to_ptr.vmem [resolvable:$true] %s4845
          %4848 = dma.vmem_to_hbm [thread:$0]  %s4846, 32, %s4843, %s4816
        $region44: #{tpu_custom_call.1} parent=27 // pred_fallthru
          _
      $region28: #{tpu_custom_call.1} parent=5 // pred_fallthru
        _
      %p4849 = scmp.le.s32.totalorder 2, %s20
      // Predicated region
      $region45: #{tpu_custom_call.1} parent=5 // pred_check
        %p4850 = pneg %p4849
      $region46: #{tpu_custom_call.1} parent=5 // pred_check_branch
        %4852 = sbr.rel (%p4850) target = $region48
      $region47: #{tpu_custom_call.1} parent=5 // pred_region
        %s4853 = ssub.s32 %s20, 2
        // Predicated region
        $region49: #{tpu_custom_call.1} parent=47 // pred_check
          %p4854 = pneg %p96
        $region50: #{tpu_custom_call.1} parent=47 // pred_check_branch
          %4856 = sbr.rel (%p4854) target = $region52
        $region51: #{tpu_custom_call.1} parent=47 // pred_region
          %s4857 = sand.u32 %s81, 1
          %s4858 = scalar_lea.sflag [#allocation7], %s4857
          %s4859 = sand.u32 %s81, 1
          %s4860 = smul.addr %s4859, 128
          %s4861 = scalar_lea.vmem [#allocation10], %s4860
          %4862 = dma.done %s4858, 2048
        $region52: #{tpu_custom_call.1} parent=47 // pred_fallthru
          _
        // Predicated region
        $region53: #{tpu_custom_call.1} parent=47 // pred_check
          %p4863 = pneg %p122
        $region54: #{tpu_custom_call.1} parent=47 // pred_check_branch
          %4865 = sbr.rel (%p4863) target = $region56
        $region55: #{tpu_custom_call.1} parent=47 // pred_region
          %s4866 = sand.u32 %s107, 1
          %s4867 = scalar_lea.sflag [#allocation12], %s4866
          %s4868 = sand.u32 %s107, 1
          %s4869 = smul.addr %s4868, 2
          %s4870 = scalar_lea.vmem [#allocation11], %s4869
          %4871 = dma.done %s4867, 32
        $region56: #{tpu_custom_call.1} parent=47 // pred_fallthru
          _
      $region48: #{tpu_custom_call.1} parent=5 // pred_fallthru
        _
    $region6: #{tpu_custom_call.1} parent=1 // loop_footer
      %s24 = sadd.s32 1, %s20
    $region7: #{tpu_custom_call.1} parent=1 // loop_footer_branch
      %19 = sbr.rel target = $region3
    $region8: #{tpu_custom_call.1} parent=1 // loop_exit
      _
    %4872 = vsyncpa [#allocation6], 1
    %s4873 = scalar_lea.sflag [#allocation6], 1
    %4874 = vsyncpa %s4873, 1
    %4875 = vsyncpa [#allocation9], 1
    %4876 = vsyncpa [#allocation7], 1
    %s4877 = scalar_lea.sflag [#allocation7], 1
    %4878 = vsyncpa %s4877, 1
    %4879 = vsyncpa [#allocation12], 1
    %s4880 = scalar_lea.sflag [#allocation12], 1
    %4881 = vsyncpa %s4880, 1

</llo_original>
